<compile_context>
chip_gen: v5e
topology: v5e:2x2
jax: 0.10.0
libtpu: 0.0.40
codegen_flags: <defaults>
</compile_context>

<pallas_src>
import functools

import jax
import jax.numpy as jnp
from jax.experimental import pallas as pl
from jax.experimental.pallas import tpu as pltpu

_LANE = 128
_SUBLANE = 8
_VMEM_BUDGET = 20 * 1024 * 1024   # used to size tiles (leaves headroom)
_VMEM_LIMIT = 32 * 1024 * 1024    # safe on v5e/v6e (128 MiB) and v7x (64 MiB)


def _round_up(v, m):
    return ((v + m - 1) // m) * m


def _pick_tile_n(N, K, half):
    """Pick a lane-aligned batch tile from a VMEM budget (all Python ints)."""
    width = 2 * half
    k_pad = _round_up(max(K, 1), _SUBLANE)
    half_pad = _round_up(half, _SUBLANE)
    w_lanes = _round_up(width, _LANE)
    # f32 VMEM bytes per batch element in one grid step:
    #   2x double-buffered x^T block + proj/sin/cos (transposed layout)
    #   + transposed temps + 2x double-buffered natural-layout output block.
    bytes_per_n = 4 * (2 * k_pad + 3 * half_pad + 4 * w_lanes)
    tile_max = max(_VMEM_BUDGET // bytes_per_n, 2 * _LANE)
    tile_max = min((tile_max // _LANE) * _LANE, 16384)
    n_tiles = pl.cdiv(N, tile_max)
    if N >= 1024:
        n_tiles = max(n_tiles, 2)   # keep both v7x TensorCores busy
    tile_n = _round_up(pl.cdiv(N, n_tiles), _LANE)
    n_tiles = pl.cdiv(N, tile_n)
    return tile_n, n_tiles


def _project(bt_ref, xt_ref):
    """proj^T = B^T @ x^T : (half, tile_n), f32, batch on the lane axis."""
    bt = bt_ref[...]
    xt = xt_ref[...]
    k_dim = bt_ref.shape[1]
    if k_dim < 8:
        # Tiny contraction depth: VPU broadcast outer products (skip the MXU).
        proj = bt[:, 0:1] * xt[0:1, :]
        for k in range(1, k_dim):
            proj = proj + bt[:, k:k + 1] * xt[k:k + 1, :]
    else:
        proj = jnp.dot(bt, xt, preferred_element_type=jnp.float32)
    return proj


def _ff_kernel_natural(bt_ref, xt_ref, o_ref):
    # bt_ref: (half, K)  xt_ref: (K, tile_n)  o_ref: (tile_n, width)
    half = bt_ref.shape[0]
    proj = _project(bt_ref, xt_ref)                      # (half, tile_n)
    # sin/cos on full 128-lane vregs, then XLU flip to natural layout and
    # store directly -- no concatenate temp, no wrapper-side transpose.
    o_ref[:, :half] = jnp.sin(proj).T.astype(o_ref.dtype)
    o_ref[:, half:] = jnp.cos(proj).T.astype(o_ref.dtype)


def _ff_kernel_transposed(bt_ref, xt_ref, ot_ref):
    # Fallback path: bt_ref: (half, K)  xt_ref: (K, tile_n)  ot_ref: (width, tile_n)
    half = bt_ref.shape[0]
    proj = _project(bt_ref, xt_ref)
    ot_ref[:half, :] = jnp.sin(proj).astype(ot_ref.dtype)
    ot_ref[half:, :] = jnp.cos(proj).astype(ot_ref.dtype)


def _build_ff_call(N, K, half, dtype, natural):
    width = 2 * half
    tile_n, n_tiles = _pick_tile_n(N, K, half)
    in_specs = [
        pl.BlockSpec((half, K), lambda i: (0, 0)),      # B^T, resident
        pl.BlockSpec((K, tile_n), lambda i: (0, i)),    # x^T batch tile
    ]
    if natural:
        kernel = _ff_kernel_natural
        out_shape = jax.ShapeDtypeStruct((N, width), dtype)
        out_specs = pl.BlockSpec((tile_n, width), lambda i: (i, 0))
    else:
        kernel = _ff_kernel_transposed
        out_shape = jax.ShapeDtypeStruct((width, N), dtype)
        out_specs = pl.BlockSpec((width, tile_n), lambda i: (0, i))
    return pl.pallas_call(
        kernel,
        out_shape=out_shape,
        grid_spec=pltpu.PrefetchScalarGridSpec(
            num_scalar_prefetch=0,
            grid=(n_tiles,),
            in_specs=in_specs,
            out_specs=out_specs,
        ),
        compiler_params=pltpu.CompilerParams(
            dimension_semantics=("parallel",),   # batch tiles are independent
            vmem_limit_bytes=_VMEM_LIMIT,
        ),
        cost_estimate=pl.CostEstimate(
            flops=2 * N * K * half,
            transcendentals=N * width,
            bytes_accessed=4 * (N * K + K * half + N * width),
        ),
    )


@functools.lru_cache(maxsize=None)
def _natural_path_ok(K, half, dtype_name):
    """Probe-compile the natural-layout (in-kernel transpose) kernel once."""
    try:
        dtype = jnp.dtype(dtype_name)
        n = 256
        call = _build_ff_call(n, K, half, dtype, natural=True)
        b_t = jnp.zeros((half, K), dtype)
        x_t = jnp.zeros((K, n), dtype)
        jax.block_until_ready(jax.jit(call)(b_t, x_t))
        return True
    except Exception:
        return False


@functools.lru_cache(maxsize=None)
def _ff_compiled(N, K, half, dtype_name, natural):
    dtype = jnp.dtype(dtype_name)
    call = _build_ff_call(N, K, half, dtype, natural)

    def run(x, B):
        # x^T / B^T are negligible traffic for the module's tiny K and keep
        # the batch dimension lane-dense inside the kernel.
        out = call(B.T, x.T)
        return out if natural else out.T

    return jax.jit(run)


def fourier_features(x, B):
    """x: (N, K) f32; B: (K, width/2) f32 -> (N, width) f32."""
    N, K = x.shape
    Kb, half = B.shape
    assert K == Kb
    dtype_name = jnp.dtype(x.dtype).name
    natural = _natural_path_ok(K, half, dtype_name)
    return _ff_compiled(N, K, half, dtype_name, natural)(x, B)


if __name__ == "__main__":
    # Module defaults: n_input_dims=1, sigma=20, width=64; small batch.
    n_input_dims = 1
    sigma = 20
    width = 64
    batch = 8

    key = jax.random.PRNGKey(0)
    kB, kx = jax.random.split(key)

    # Parameter init matching: randn(n_input_dims, width/2) * sigma * 2 * pi
    B = (
        jax.random.normal(kB, (n_input_dims, width // 2), dtype=jnp.float32)
        * sigma
        * 2.0
        * jnp.pi
    )
    x = jax.random.normal(kx, (batch, n_input_dims), dtype=jnp.float32)

    out = jax.block_until_ready(fourier_features(x, B))

    # Correctness check against a plain-JAX reference.
    proj = x @ B
    ref = jnp.concatenate([jnp.sin(proj), jnp.cos(proj)], axis=1)
    assert out.shape == (batch, width)
    # sigma=20 pushes |x@B| into the hundreds; allow slack for sin/cos
    # range-reduction differences between the in-kernel and XLA paths.
    assert jnp.allclose(out, ref, atol=1e-3, rtol=1e-3)

    print("KERNEL_OK")
</pallas_src>

<mosaic_0001>
module attributes {stable_mosaic.version = 11 : i64} {
  func.func @_ff_kernel_natural(%arg0: i32, %arg1: memref<32x1xf32, #tpu.memory_space<vmem>>, %arg2: memref<1x256xf32, #tpu.memory_space<vmem>>, %arg3: memref<256x64xf32, #tpu.memory_space<vmem>>) attributes {dimension_semantics = [#tpu.dimension_semantics<parallel>], iteration_bounds = array<i64: 1>, scalar_prefetch = 0 : i64, scratch_operands = 0 : i64, tpu.core_type = #tpu.core_type<tc>, window_params = [{pipeline_mode = #tpu.pipeline_mode<synchronous>, transform_indices = @transform_0, window_bounds = array<i64: 32, 1>}, {transform_indices = @transform_1, window_bounds = array<i64: 1, 256>}, {transform_indices = @transform_2, window_bounds = array<i64: 256, 64>}]} {
    %c0 = arith.constant 0 : index
    %c0_0 = arith.constant 0 : index
    %0 = vector.load %arg1[%c0, %c0_0] : memref<32x1xf32, #tpu.memory_space<vmem>>, vector<32x1xf32>
    %c0_1 = arith.constant 0 : index
    %c0_2 = arith.constant 0 : index
    %1 = vector.load %arg2[%c0_1, %c0_2] : memref<1x256xf32, #tpu.memory_space<vmem>>, vector<1x256xf32>
    %2 = vector.broadcast %0 : vector<32x1xf32> to vector<32x256xf32>
    %3 = vector.broadcast %1 : vector<1x256xf32> to vector<32x256xf32>
    %4 = arith.mulf %2, %3 : vector<32x256xf32>
    %5 = math.sin %4 : vector<32x256xf32>
    %6 = tpu.transpose %5, [1, 0] : vector<32x256xf32> -> vector<256x32xf32>
    %c0_3 = arith.constant 0 : index
    %c0_4 = arith.constant 0 : index
    %7 = vector.load %arg3[%c0_3, %c0_4] : memref<256x64xf32, #tpu.memory_space<vmem>>, vector<256x32xf32>
    tpu.vector_store %arg3[%c0_3, %c0_4], %6 {strides = array<i32>} : memref<256x64xf32, #tpu.memory_space<vmem>>, vector<256x32xf32>,
    %8 = math.cos %4 : vector<32x256xf32>
    %9 = tpu.transpose %8, [1, 0] : vector<32x256xf32> -> vector<256x32xf32>
    %c0_5 = arith.constant 0 : index
    %c32 = arith.constant 32 : index
    %10 = vector.load %arg3[%c0_5, %c32] : memref<256x64xf32, #tpu.memory_space<vmem>>, vector<256x32xf32>
    tpu.vector_store %arg3[%c0_5, %c32], %9 {strides = array<i32>} : memref<256x64xf32, #tpu.memory_space<vmem>>, vector<256x32xf32>,
    return
  }
  func.func @transform_0(%arg0: i32) -> (i32, i32) {
    %c0_i32 = arith.constant 0 : i32
    %c0_i32_0 = arith.constant 0 : i32
    %c0_i32_1 = arith.constant 0 : i32
    return %c0_i32, %c0_i32_0 : i32, i32
  }
  func.func @transform_1(%arg0: i32) -> (i32, i32) {
    %c0_i32 = arith.constant 0 : i32
    %c0_i32_0 = arith.constant 0 : i32
    return %c0_i32, %arg0 : i32, i32
  }
  func.func @transform_2(%arg0: i32) -> (i32, i32) {
    %c0_i32 = arith.constant 0 : i32
    %c0_i32_0 = arith.constant 0 : i32
    return %arg0, %c0_i32 : i32, i32
  }
}

module attributes {stable_mosaic.version = 11 : i64} {
  func.func @_ff_kernel_transposed(%arg0: i32, %arg1: memref<32x1xf32, #tpu.memory_space<vmem>>, %arg2: memref<1x128xf32, #tpu.memory_space<vmem>>, %arg3: memref<64x128xf32, #tpu.memory_space<vmem>>) attributes {dimension_semantics = [#tpu.dimension_semantics<parallel>], iteration_bounds = array<i64: 1>, scalar_prefetch = 0 : i64, scratch_operands = 0 : i64, tpu.core_type = #tpu.core_type<tc>, window_params = [{pipeline_mode = #tpu.pipeline_mode<synchronous>, transform_indices = @transform_0, window_bounds = array<i64: 32, 1>}, {transform_indices = @transform_1, window_bounds = array<i64: 1, 128>}, {transform_indices = @transform_2, window_bounds = array<i64: 64, 128>}]} {
    %c0 = arith.constant 0 : index
    %c0_0 = arith.constant 0 : index
    %0 = vector.load %arg1[%c0, %c0_0] : memref<32x1xf32, #tpu.memory_space<vmem>>, vector<32x1xf32>
    %c0_1 = arith.constant 0 : index
    %c0_2 = arith.constant 0 : index
    %1 = vector.load %arg2[%c0_1, %c0_2] : memref<1x128xf32, #tpu.memory_space<vmem>>, vector<1x128xf32>
    %2 = vector.broadcast %0 : vector<32x1xf32> to vector<32x128xf32>
    %3 = vector.broadcast %1 : vector<1x128xf32> to vector<32x128xf32>
    %4 = arith.mulf %2, %3 : vector<32x128xf32>
    %5 = math.sin %4 : vector<32x128xf32>
    %c0_3 = arith.constant 0 : index
    %c0_4 = arith.constant 0 : index
    %6 = vector.load %arg3[%c0_3, %c0_4] : memref<64x128xf32, #tpu.memory_space<vmem>>, vector<32x128xf32>
    tpu.vector_store %arg3[%c0_3, %c0_4], %5 {strides = array<i32>} : memref<64x128xf32, #tpu.memory_space<vmem>>, vector<32x128xf32>,
    %7 = math.cos %4 : vector<32x128xf32>
    %c32 = arith.constant 32 : index
    %c0_5 = arith.constant 0 : index
    %8 = vector.load %arg3[%c32, %c0_5] : memref<64x128xf32, #tpu.memory_space<vmem>>, vector<32x128xf32>
    tpu.vector_store %arg3[%c32, %c0_5], %7 {strides = array<i32>} : memref<64x128xf32, #tpu.memory_space<vmem>>, vector<32x128xf32>,
    return
  }
  func.func @transform_0(%arg0: i32) -> (i32, i32) {
    %c0_i32 = arith.constant 0 : i32
    %c0_i32_0 = arith.constant 0 : i32
    %c0_i32_1 = arith.constant 0 : i32
    return %c0_i32, %c0_i32_0 : i32, i32
  }
  func.func @transform_1(%arg0: i32) -> (i32, i32) {
    %c0_i32 = arith.constant 0 : i32
    %c0_i32_0 = arith.constant 0 : i32
    return %c0_i32, %arg0 : i32, i32
  }
  func.func @transform_2(%arg0: i32) -> (i32, i32) {
    %c0_i32 = arith.constant 0 : i32
    %c0_i32_0 = arith.constant 0 : i32
    return %c0_i32, %arg0 : i32, i32
  }
}

</mosaic_0001>

<llo_original>
// kernel: tpu_custom_call.1
$region0: #{tpu_custom_call.1}
  #allocation0 [shape = 'u32[]', space=smem, size = 0x4, offset = 0x4, fixed_abs, tag = 'smem constant byte address 0x4 - core index']
  #allocation1 [shape = 'u32[72,128]{1,0:T(1,128)}', space=vmem, size = 0x9000, scoped, tag = 'internal scratch']
  %s0 = inlined_call_operand.vmem [shape: f32[32,1], index: 0, kind: input, shape index: {}]
  %s1 = inlined_call_operand.vmem [shape: f32[1,256], index: 1, kind: input, shape index: {}]
  %s2 = inlined_call_operand.vmem [shape: f32[256,64], index: 2, kind: output, shape index: {}]
  %s3 = sld [smem:[#allocation0]]
  $region18: #{tpu_custom_call.1} parent=0
    _
  %s5 = ssub.s32 1, %s3
  %s6 = scalar_select 0, %s5, %s3
  // Predicated region
  $region2: #{tpu_custom_call.1} parent=0 // pred_check
    _
  $region3: #{tpu_custom_call.1} parent=0 // pred_check_branch
    %8 = sbr.rel (0) target = $region5
  $region4: #{tpu_custom_call.1} parent=0 // pred_region
    _
  $region5: #{tpu_custom_call.1} parent=0 // pred_fallthru
    _
  // Predicated region
  $region6: #{tpu_custom_call.1} parent=0 // pred_check
    _
  $region7: #{tpu_custom_call.1} parent=0 // pred_check_branch
    %10 = sbr.rel (0) target = $region9
  $region8: #{tpu_custom_call.1} parent=0 // pred_region
    _
  $region9: #{tpu_custom_call.1} parent=0 // pred_fallthru
    _
  %v11 = vld [vmem:[%s0] sm:$0xff]
  %v12 = vld [vmem:[%s0 + $0x8] sm:$0xff]
  %v13 = vld [vmem:[%s0 + $0x10] sm:$0xff]
  %v14 = vld [vmem:[%s0 + $0x18] sm:$0xff]
  %v15 = vld [vmem:[%s1] sm:$0x3]
  %17 = vset.pattern.permute.xlu0 0
  %18 = vperm.xlu0 %17, %v11
  %v19 = vpop.permute.xlu0 %18
  %22 = vset.pattern.permute.xlu0 0
  %23 = vperm.xlu0 %22, %v12
  %v24 = vpop.permute.xlu0 %23
  %27 = vset.pattern.permute.xlu0 0
  %28 = vperm.xlu0 %27, %v13
  %v29 = vpop.permute.xlu0 %28
  %32 = vset.pattern.permute.xlu0 0
  %33 = vperm.xlu0 %32, %v14
  %v34 = vpop.permute.xlu0 %33
  %v37 = vperm.slane %v15, 0
  %v38 = vperm.slane %v15, 1
  %v41 = vmul.f32 %v19, %v37
  %v42 = vmul.f32 %v19, %v38
  %v43 = vmul.f32 %v24, %v37
  %v44 = vmul.f32 %v24, %v38
  %v45 = vmul.f32 %v29, %v37
  %v46 = vmul.f32 %v29, %v38
  %v47 = vmul.f32 %v34, %v37
  %v48 = vmul.f32 %v34, %v38
  %v49 = vand.u32 2147483647, %v41
  %vm50 = vcmp.le.f32.partialorder %v49, 0.7853982
  %vm51 = vcmp.lt.s32.totalorder %v41, 0
  %v52 = vand.u32 %v41, 2139095040
  %v53 = vshrl.u32 %v52, 23
  %v54 = vsub.s32 %v53, 127
  %v55 = vand.u32 2147483647, %v41
  %v56 = vand.u32 %v55, 8388607
  %v57 = vor.u32 %v56, 8388608
  %v58 = vsub.s32 0, %v57
  %v59 = vadd.s32 %v54, 1
  %vm60 = vcmp.gt.s32.totalorder %v59, 0
  %v61 = vsel %vm60, %v59, 0
  %v62 = vshrl.u32 %v61, 5
  %v63 = vand.u32 %v61, 31
  %v64 = vsub.s32 32, %v63
  %v65 = vshrl.u32 683565275, %v64
  %v66 = vshll.u32 683565275, %v63
  %v67 = vshrl.u32 2475754826, %v64
  %v68 = vor.u32 %v66, %v67
  %v69 = vshll.u32 2475754826, %v63
  %v70 = vshrl.u32 2131351028, %v64
  %v71 = vor.u32 %v69, %v70
  %v72 = vshll.u32 2131351028, %v63
  %v73 = vshrl.u32 2102212464, %v64
  %v74 = vor.u32 %v72, %v73
  %v75 = vshll.u32 2102212464, %v63
  %v76 = vshrl.u32 920167782, %v64
  %v77 = vor.u32 %v75, %v76
  %v78 = vshll.u32 920167782, %v63
  %v79 = vshrl.u32 1326507024, %v64
  %v80 = vor.u32 %v78, %v79
  %vm81 = vcmp.lt.s32.totalorder %v62, 1
  %vm82 = vcmp.lt.s32.totalorder %v62, 2
  %vm83 = vcmp.lt.s32.totalorder %v62, 3
  %vm84 = vcmp.lt.s32.totalorder %v62, 4
  %v85 = vsel %vm81, %v65, %v68
  %v86 = vsel %vm84, %v74, 2102212464
  %v87 = vsel %vm83, %v71, %v86
  %v88 = vsel %vm82, %v85, %v87
  %v89 = vsel %vm81, %v68, %v71
  %v90 = vsel %vm84, %v77, 920167782
  %v91 = vsel %vm83, %v74, %v90
  %v92 = vsel %vm82, %v89, %v91
  %v93 = vsel %vm81, %v71, %v74
  %v94 = vsel %vm84, %v80, 1326507024
  %v95 = vsel %vm83, %v77, %v94
  %v96 = vsel %vm82, %v93, %v95
  %v97 = vshll.u32 %v57, 8
  %v98 = vand.u32 %v97, 65535
  %v99 = vshrl.u32 %v97, 16
  %v100 = vand.u32 %v96, 65535
  %v101 = vshrl.u32 %v96, 16
  %v102 = vmul.u32 %v98, %v100
  %v103 = vmul.u32 %v98, %v101
  %v104 = vmul.u32 %v99, %v100
  %v105 = vmul.u32 %v99, %v101
  %v106 = vshll.u32 %v103, 16
  %v107 = vshrl.u32 %v103, 16
  %v108 = vshll.u32 %v104, 16
  %v109 = vshrl.u32 %v104, 16
  %vm110 = vc.u32 %v102, %v106
  %v111 = vsel %vm110, 1, 0
  %v112 = vadd.s32 %v102, %v106
  %v113 = vadd.s32 %v105, %v111
  %vm114 = vc.u32 %v112, %v108
  %v115 = vsel %vm114, 1, 0
  %v116 = vadd.s32 %v112, %v108
  %v117 = vadd.s32 %v113, %v115
  %v118 = vadd.s32 %v117, %v107
  %v119 = vadd.s32 %v118, %v109
  %v120 = vand.u32 %v97, 65535
  %v121 = vshrl.u32 %v97, 16
  %v122 = vand.u32 %v92, 65535
  %v123 = vshrl.u32 %v92, 16
  %v124 = vmul.u32 %v120, %v122
  %v125 = vmul.u32 %v120, %v123
  %v126 = vmul.u32 %v121, %v122
  %v127 = vmul.u32 %v121, %v123
  %v128 = vshll.u32 %v125, 16
  %v129 = vshrl.u32 %v125, 16
  %v130 = vshll.u32 %v126, 16
  %v131 = vshrl.u32 %v126, 16
  %vm132 = vc.u32 %v124, %v128
  %v133 = vsel %vm132, 1, 0
  %v134 = vadd.s32 %v124, %v128
  %v135 = vadd.s32 %v127, %v133
  %vm136 = vc.u32 %v134, %v130
  %v137 = vsel %vm136, 1, 0
  %v138 = vadd.s32 %v134, %v130
  %v139 = vadd.s32 %v135, %v137
  %v140 = vadd.s32 %v139, %v129
  %v141 = vadd.s32 %v140, %v131
  %v142 = vmul.u32 %v97, %v88
  %v143 = vadd.s32 %v119, %v138
  %vm144 = vc.u32 %v119, %v138
  %v145 = vadd.s32 %v141, 1
  %v146 = vsel %vm144, %v145, %v141
  %v147 = vadd.s32 %v142, %v146
  %v148 = vadd.s32 %v147, 536870912
  %v149 = vshrl.u32 %v148, 30
  %v150 = vshll.u32 %v149, 30
  %v151 = vsub.s32 %v147, %v150
  %vm152 = vcmp.lt.s32.totalorder %v151, 0
  %v153 = vsub.s32 0, %v151
  %v154 = vsel %vm152, %v153, %v151
  %v155 = vclz %v154
  %v156 = vsub.s32 %v155, 2
  %vm157 = vcmp.gt.s32.totalorder 0, %v156
  %v158 = vsel %vm157, 0, %v156
  %v159 = vsub.s32 32, %v158
  %v160 = vshll.u32 %v151, %v158
  %v161 = vshrl.u32 %v143, %v159
  %v162 = vor.u32 %v160, %v161
  %v163 = vsub.s32 4294967266, %v158
  %v164 = vadd.s32 %v163, 127
  %v165 = vshll.u32 %v164, 23
  %v166 = vor.u32 4788187, %v165
  %v167 = vand.u32 2147483647, %v166
  %v169 = vcvt.s32.f32 %v162
  %v170 = vmul.f32 %v169, %v167
  %v171 = vxor.u32 %v170, 2147483648
  %v172 = vsel %vm51, %v171, %v170
  %v173 = vsub.s32 4, %v149
  %v174 = vsel %vm51, %v173, %v149
  %v175 = vsel %vm50, %v41, %v172
  %v176 = vsel %vm50, 0, %v174
  %v177 = vmul.f32 %v175, %v175
  %v178 = vmul.f32 %v177, -0.001358992
  %v179 = vadd.f32 %v178, 0.041655596
  %v180 = vmul.f32 %v177, %v179
  %v181 = vadd.f32 %v180, -0.4999988
  %v182 = vmul.f32 %v177, %v181
  %v183 = vadd.f32 1.0, %v182
  %v184 = vmul.f32 %v175, %v175
  %v185 = vmul.f32 %v184, -0.00019511016
  %v186 = vadd.f32 %v185, 0.008332121
  %v187 = vmul.f32 %v184, %v186
  %v188 = vadd.f32 %v187, -0.16666654
  %v189 = vmul.f32 %v184, %v188
  %v190 = vadd.f32 %v189, 1.0
  %v191 = vmul.f32 %v190, %v175
  %vm192 = vweird.f32 %v41
  %v193 = vadd.s32 %v176, 3
  %v194 = vand.u32 %v193, 3
  %vm195 = vcmp.lt.s32.totalorder %v194, 2
  %vm196 = vcmp.eq.s32.totalorder %v194, 0
  %v197 = vxor.u32 %v191, 2147483648
  %v198 = vsel %vm196, %v183, %v197
  %vm199 = vcmp.eq.s32.totalorder %v194, 2
  %v200 = vxor.u32 %v183, 2147483648
  %v201 = vsel %vm199, %v200, %v191
  %v202 = vsel %vm195, %v198, %v201
  %v203 = vsel %vm192, nan, %v202
  %v204 = vand.u32 2147483647, %v42
  %vm205 = vcmp.le.f32.partialorder %v204, 0.7853982
  %vm206 = vcmp.lt.s32.totalorder %v42, 0
  %v207 = vand.u32 %v42, 2139095040
  %v208 = vshrl.u32 %v207, 23
  %v209 = vsub.s32 %v208, 127
  %v210 = vand.u32 2147483647, %v42
  %v211 = vand.u32 %v210, 8388607
  %v212 = vor.u32 %v211, 8388608
  %v213 = vsub.s32 0, %v212
  %v214 = vadd.s32 %v209, 1
  %vm215 = vcmp.gt.s32.totalorder %v214, 0
  %v216 = vsel %vm215, %v214, 0
  %v217 = vshrl.u32 %v216, 5
  %v218 = vand.u32 %v216, 31
  %v219 = vsub.s32 32, %v218
  %v220 = vshrl.u32 683565275, %v219
  %v221 = vshll.u32 683565275, %v218
  %v222 = vshrl.u32 2475754826, %v219
  %v223 = vor.u32 %v221, %v222
  %v224 = vshll.u32 2475754826, %v218
  %v225 = vshrl.u32 2131351028, %v219
  %v226 = vor.u32 %v224, %v225
  %v227 = vshll.u32 2131351028, %v218
  %v228 = vshrl.u32 2102212464, %v219
  %v229 = vor.u32 %v227, %v228
  %v230 = vshll.u32 2102212464, %v218
  %v231 = vshrl.u32 920167782, %v219
  %v232 = vor.u32 %v230, %v231
  %v233 = vshll.u32 920167782, %v218
  %v234 = vshrl.u32 1326507024, %v219
  %v235 = vor.u32 %v233, %v234
  %vm236 = vcmp.lt.s32.totalorder %v217, 1
  %vm237 = vcmp.lt.s32.totalorder %v217, 2
  %vm238 = vcmp.lt.s32.totalorder %v217, 3
  %vm239 = vcmp.lt.s32.totalorder %v217, 4
  %v240 = vsel %vm236, %v220, %v223
  %v241 = vsel %vm239, %v229, 2102212464
  %v242 = vsel %vm238, %v226, %v241
  %v243 = vsel %vm237, %v240, %v242
  %v244 = vsel %vm236, %v223, %v226
  %v245 = vsel %vm239, %v232, 920167782
  %v246 = vsel %vm238, %v229, %v245
  %v247 = vsel %vm237, %v244, %v246
  %v248 = vsel %vm236, %v226, %v229
  %v249 = vsel %vm239, %v235, 1326507024
  %v250 = vsel %vm238, %v232, %v249
  %v251 = vsel %vm237, %v248, %v250
  %v252 = vshll.u32 %v212, 8
  %v253 = vand.u32 %v252, 65535
  %v254 = vshrl.u32 %v252, 16
  %v255 = vand.u32 %v251, 65535
  %v256 = vshrl.u32 %v251, 16
  %v257 = vmul.u32 %v253, %v255
  %v258 = vmul.u32 %v253, %v256
  %v259 = vmul.u32 %v254, %v255
  %v260 = vmul.u32 %v254, %v256
  %v261 = vshll.u32 %v258, 16
  %v262 = vshrl.u32 %v258, 16
  %v263 = vshll.u32 %v259, 16
  %v264 = vshrl.u32 %v259, 16
  %vm265 = vc.u32 %v257, %v261
  %v266 = vsel %vm265, 1, 0
  %v267 = vadd.s32 %v257, %v261
  %v268 = vadd.s32 %v260, %v266
  %vm269 = vc.u32 %v267, %v263
  %v270 = vsel %vm269, 1, 0
  %v271 = vadd.s32 %v267, %v263
  %v272 = vadd.s32 %v268, %v270
  %v273 = vadd.s32 %v272, %v262
  %v274 = vadd.s32 %v273, %v264
  %v275 = vand.u32 %v252, 65535
  %v276 = vshrl.u32 %v252, 16
  %v277 = vand.u32 %v247, 65535
  %v278 = vshrl.u32 %v247, 16
  %v279 = vmul.u32 %v275, %v277
  %v280 = vmul.u32 %v275, %v278
  %v281 = vmul.u32 %v276, %v277
  %v282 = vmul.u32 %v276, %v278
  %v283 = vshll.u32 %v280, 16
  %v284 = vshrl.u32 %v280, 16
  %v285 = vshll.u32 %v281, 16
  %v286 = vshrl.u32 %v281, 16
  %vm287 = vc.u32 %v279, %v283
  %v288 = vsel %vm287, 1, 0
  %v289 = vadd.s32 %v279, %v283
  %v290 = vadd.s32 %v282, %v288
  %vm291 = vc.u32 %v289, %v285
  %v292 = vsel %vm291, 1, 0
  %v293 = vadd.s32 %v289, %v285
  %v294 = vadd.s32 %v290, %v292
  %v295 = vadd.s32 %v294, %v284
  %v296 = vadd.s32 %v295, %v286
  %v297 = vmul.u32 %v252, %v243
  %v298 = vadd.s32 %v274, %v293
  %vm299 = vc.u32 %v274, %v293
  %v300 = vadd.s32 %v296, 1
  %v301 = vsel %vm299, %v300, %v296
  %v302 = vadd.s32 %v297, %v301
  %v303 = vadd.s32 %v302, 536870912
  %v304 = vshrl.u32 %v303, 30
  %v305 = vshll.u32 %v304, 30
  %v306 = vsub.s32 %v302, %v305
  %vm307 = vcmp.lt.s32.totalorder %v306, 0
  %v308 = vsub.s32 0, %v306
  %v309 = vsel %vm307, %v308, %v306
  %v310 = vclz %v309
  %v311 = vsub.s32 %v310, 2
  %vm312 = vcmp.gt.s32.totalorder 0, %v311
  %v313 = vsel %vm312, 0, %v311
  %v314 = vsub.s32 32, %v313
  %v315 = vshll.u32 %v306, %v313
  %v316 = vshrl.u32 %v298, %v314
  %v317 = vor.u32 %v315, %v316
  %v318 = vsub.s32 4294967266, %v313
  %v319 = vadd.s32 %v318, 127
  %v320 = vshll.u32 %v319, 23
  %v321 = vor.u32 4788187, %v320
  %v322 = vand.u32 2147483647, %v321
  %v324 = vcvt.s32.f32 %v317
  %v325 = vmul.f32 %v324, %v322
  %v326 = vxor.u32 %v325, 2147483648
  %v327 = vsel %vm206, %v326, %v325
  %v328 = vsub.s32 4, %v304
  %v329 = vsel %vm206, %v328, %v304
  %v330 = vsel %vm205, %v42, %v327
  %v331 = vsel %vm205, 0, %v329
  %v332 = vmul.f32 %v330, %v330
  %v333 = vmul.f32 %v332, -0.001358992
  %v334 = vadd.f32 %v333, 0.041655596
  %v335 = vmul.f32 %v332, %v334
  %v336 = vadd.f32 %v335, -0.4999988
  %v337 = vmul.f32 %v332, %v336
  %v338 = vadd.f32 1.0, %v337
  %v339 = vmul.f32 %v330, %v330
  %v340 = vmul.f32 %v339, -0.00019511016
  %v341 = vadd.f32 %v340, 0.008332121
  %v342 = vmul.f32 %v339, %v341
  %v343 = vadd.f32 %v342, -0.16666654
  %v344 = vmul.f32 %v339, %v343
  %v345 = vadd.f32 %v344, 1.0
  %v346 = vmul.f32 %v345, %v330
  %vm347 = vweird.f32 %v42
  %v348 = vadd.s32 %v331, 3
  %v349 = vand.u32 %v348, 3
  %vm350 = vcmp.lt.s32.totalorder %v349, 2
  %vm351 = vcmp.eq.s32.totalorder %v349, 0
  %v352 = vxor.u32 %v346, 2147483648
  %v353 = vsel %vm351, %v338, %v352
  %vm354 = vcmp.eq.s32.totalorder %v349, 2
  %v355 = vxor.u32 %v338, 2147483648
  %v356 = vsel %vm354, %v355, %v346
  %v357 = vsel %vm350, %v353, %v356
  %v358 = vsel %vm347, nan, %v357
  %v359 = vand.u32 2147483647, %v43
  %vm360 = vcmp.le.f32.partialorder %v359, 0.7853982
  %vm361 = vcmp.lt.s32.totalorder %v43, 0
  %v362 = vand.u32 %v43, 2139095040
  %v363 = vshrl.u32 %v362, 23
  %v364 = vsub.s32 %v363, 127
  %v365 = vand.u32 2147483647, %v43
  %v366 = vand.u32 %v365, 8388607
  %v367 = vor.u32 %v366, 8388608
  %v368 = vsub.s32 0, %v367
  %v369 = vadd.s32 %v364, 1
  %vm370 = vcmp.gt.s32.totalorder %v369, 0
  %v371 = vsel %vm370, %v369, 0
  %v372 = vshrl.u32 %v371, 5
  %v373 = vand.u32 %v371, 31
  %v374 = vsub.s32 32, %v373
  %v375 = vshrl.u32 683565275, %v374
  %v376 = vshll.u32 683565275, %v373
  %v377 = vshrl.u32 2475754826, %v374
  %v378 = vor.u32 %v376, %v377
  %v379 = vshll.u32 2475754826, %v373
  %v380 = vshrl.u32 2131351028, %v374
  %v381 = vor.u32 %v379, %v380
  %v382 = vshll.u32 2131351028, %v373
  %v383 = vshrl.u32 2102212464, %v374
  %v384 = vor.u32 %v382, %v383
  %v385 = vshll.u32 2102212464, %v373
  %v386 = vshrl.u32 920167782, %v374
  %v387 = vor.u32 %v385, %v386
  %v388 = vshll.u32 920167782, %v373
  %v389 = vshrl.u32 1326507024, %v374
  %v390 = vor.u32 %v388, %v389
  %vm391 = vcmp.lt.s32.totalorder %v372, 1
  %vm392 = vcmp.lt.s32.totalorder %v372, 2
  %vm393 = vcmp.lt.s32.totalorder %v372, 3
  %vm394 = vcmp.lt.s32.totalorder %v372, 4
  %v395 = vsel %vm391, %v375, %v378
  %v396 = vsel %vm394, %v384, 2102212464
  %v397 = vsel %vm393, %v381, %v396
  %v398 = vsel %vm392, %v395, %v397
  %v399 = vsel %vm391, %v378, %v381
  %v400 = vsel %vm394, %v387, 920167782
  %v401 = vsel %vm393, %v384, %v400
  %v402 = vsel %vm392, %v399, %v401
  %v403 = vsel %vm391, %v381, %v384
  %v404 = vsel %vm394, %v390, 1326507024
  %v405 = vsel %vm393, %v387, %v404
  %v406 = vsel %vm392, %v403, %v405
  %v407 = vshll.u32 %v367, 8
  %v408 = vand.u32 %v407, 65535
  %v409 = vshrl.u32 %v407, 16
  %v410 = vand.u32 %v406, 65535
  %v411 = vshrl.u32 %v406, 16
  %v412 = vmul.u32 %v408, %v410
  %v413 = vmul.u32 %v408, %v411
  %v414 = vmul.u32 %v409, %v410
  %v415 = vmul.u32 %v409, %v411
  %v416 = vshll.u32 %v413, 16
  %v417 = vshrl.u32 %v413, 16
  %v418 = vshll.u32 %v414, 16
  %v419 = vshrl.u32 %v414, 16
  %vm420 = vc.u32 %v412, %v416
  %v421 = vsel %vm420, 1, 0
  %v422 = vadd.s32 %v412, %v416
  %v423 = vadd.s32 %v415, %v421
  %vm424 = vc.u32 %v422, %v418
  %v425 = vsel %vm424, 1, 0
  %v426 = vadd.s32 %v422, %v418
  %v427 = vadd.s32 %v423, %v425
  %v428 = vadd.s32 %v427, %v417
  %v429 = vadd.s32 %v428, %v419
  %v430 = vand.u32 %v407, 65535
  %v431 = vshrl.u32 %v407, 16
  %v432 = vand.u32 %v402, 65535
  %v433 = vshrl.u32 %v402, 16
  %v434 = vmul.u32 %v430, %v432
  %v435 = vmul.u32 %v430, %v433
  %v436 = vmul.u32 %v431, %v432
  %v437 = vmul.u32 %v431, %v433
  %v438 = vshll.u32 %v435, 16
  %v439 = vshrl.u32 %v435, 16
  %v440 = vshll.u32 %v436, 16
  %v441 = vshrl.u32 %v436, 16
  %vm442 = vc.u32 %v434, %v438
  %v443 = vsel %vm442, 1, 0
  %v444 = vadd.s32 %v434, %v438
  %v445 = vadd.s32 %v437, %v443
  %vm446 = vc.u32 %v444, %v440
  %v447 = vsel %vm446, 1, 0
  %v448 = vadd.s32 %v444, %v440
  %v449 = vadd.s32 %v445, %v447
  %v450 = vadd.s32 %v449, %v439
  %v451 = vadd.s32 %v450, %v441
  %v452 = vmul.u32 %v407, %v398
  %v453 = vadd.s32 %v429, %v448
  %vm454 = vc.u32 %v429, %v448
  %v455 = vadd.s32 %v451, 1
  %v456 = vsel %vm454, %v455, %v451
  %v457 = vadd.s32 %v452, %v456
  %v458 = vadd.s32 %v457, 536870912
  %v459 = vshrl.u32 %v458, 30
  %v460 = vshll.u32 %v459, 30
  %v461 = vsub.s32 %v457, %v460
  %vm462 = vcmp.lt.s32.totalorder %v461, 0
  %v463 = vsub.s32 0, %v461
  %v464 = vsel %vm462, %v463, %v461
  %v465 = vclz %v464
  %v466 = vsub.s32 %v465, 2
  %vm467 = vcmp.gt.s32.totalorder 0, %v466
  %v468 = vsel %vm467, 0, %v466
  %v469 = vsub.s32 32, %v468
  %v470 = vshll.u32 %v461, %v468
  %v471 = vshrl.u32 %v453, %v469
  %v472 = vor.u32 %v470, %v471
  %v473 = vsub.s32 4294967266, %v468
  %v474 = vadd.s32 %v473, 127
  %v475 = vshll.u32 %v474, 23
  %v476 = vor.u32 4788187, %v475
  %v477 = vand.u32 2147483647, %v476
  %v479 = vcvt.s32.f32 %v472
  %v480 = vmul.f32 %v479, %v477
  %v481 = vxor.u32 %v480, 2147483648
  %v482 = vsel %vm361, %v481, %v480
  %v483 = vsub.s32 4, %v459
  %v484 = vsel %vm361, %v483, %v459
  %v485 = vsel %vm360, %v43, %v482
  %v486 = vsel %vm360, 0, %v484
  %v487 = vmul.f32 %v485, %v485
  %v488 = vmul.f32 %v487, -0.001358992
  %v489 = vadd.f32 %v488, 0.041655596
  %v490 = vmul.f32 %v487, %v489
  %v491 = vadd.f32 %v490, -0.4999988
  %v492 = vmul.f32 %v487, %v491
  %v493 = vadd.f32 1.0, %v492
  %v494 = vmul.f32 %v485, %v485
  %v495 = vmul.f32 %v494, -0.00019511016
  %v496 = vadd.f32 %v495, 0.008332121
  %v497 = vmul.f32 %v494, %v496
  %v498 = vadd.f32 %v497, -0.16666654
  %v499 = vmul.f32 %v494, %v498
  %v500 = vadd.f32 %v499, 1.0
  %v501 = vmul.f32 %v500, %v485
  %vm502 = vweird.f32 %v43
  %v503 = vadd.s32 %v486, 3
  %v504 = vand.u32 %v503, 3
  %vm505 = vcmp.lt.s32.totalorder %v504, 2
  %vm506 = vcmp.eq.s32.totalorder %v504, 0
  %v507 = vxor.u32 %v501, 2147483648
  %v508 = vsel %vm506, %v493, %v507
  %vm509 = vcmp.eq.s32.totalorder %v504, 2
  %v510 = vxor.u32 %v493, 2147483648
  %v511 = vsel %vm509, %v510, %v501
  %v512 = vsel %vm505, %v508, %v511
  %v513 = vsel %vm502, nan, %v512
  %v514 = vand.u32 2147483647, %v44
  %vm515 = vcmp.le.f32.partialorder %v514, 0.7853982
  %vm516 = vcmp.lt.s32.totalorder %v44, 0
  %v517 = vand.u32 %v44, 2139095040
  %v518 = vshrl.u32 %v517, 23
  %v519 = vsub.s32 %v518, 127
  %v520 = vand.u32 2147483647, %v44
  %v521 = vand.u32 %v520, 8388607
  %v522 = vor.u32 %v521, 8388608
  %v523 = vsub.s32 0, %v522
  %v524 = vadd.s32 %v519, 1
  %vm525 = vcmp.gt.s32.totalorder %v524, 0
  %v526 = vsel %vm525, %v524, 0
  %v527 = vshrl.u32 %v526, 5
  %v528 = vand.u32 %v526, 31
  %v529 = vsub.s32 32, %v528
  %v530 = vshrl.u32 683565275, %v529
  %v531 = vshll.u32 683565275, %v528
  %v532 = vshrl.u32 2475754826, %v529
  %v533 = vor.u32 %v531, %v532
  %v534 = vshll.u32 2475754826, %v528
  %v535 = vshrl.u32 2131351028, %v529
  %v536 = vor.u32 %v534, %v535
  %v537 = vshll.u32 2131351028, %v528
  %v538 = vshrl.u32 2102212464, %v529
  %v539 = vor.u32 %v537, %v538
  %v540 = vshll.u32 2102212464, %v528
  %v541 = vshrl.u32 920167782, %v529
  %v542 = vor.u32 %v540, %v541
  %v543 = vshll.u32 920167782, %v528
  %v544 = vshrl.u32 1326507024, %v529
  %v545 = vor.u32 %v543, %v544
  %vm546 = vcmp.lt.s32.totalorder %v527, 1
  %vm547 = vcmp.lt.s32.totalorder %v527, 2
  %vm548 = vcmp.lt.s32.totalorder %v527, 3
  %vm549 = vcmp.lt.s32.totalorder %v527, 4
  %v550 = vsel %vm546, %v530, %v533
  %v551 = vsel %vm549, %v539, 2102212464
  %v552 = vsel %vm548, %v536, %v551
  %v553 = vsel %vm547, %v550, %v552
  %v554 = vsel %vm546, %v533, %v536
  %v555 = vsel %vm549, %v542, 920167782
  %v556 = vsel %vm548, %v539, %v555
  %v557 = vsel %vm547, %v554, %v556
  %v558 = vsel %vm546, %v536, %v539
  %v559 = vsel %vm549, %v545, 1326507024
  %v560 = vsel %vm548, %v542, %v559
  %v561 = vsel %vm547, %v558, %v560
  %v562 = vshll.u32 %v522, 8
  %v563 = vand.u32 %v562, 65535
  %v564 = vshrl.u32 %v562, 16
  %v565 = vand.u32 %v561, 65535
  %v566 = vshrl.u32 %v561, 16
  %v567 = vmul.u32 %v563, %v565
  %v568 = vmul.u32 %v563, %v566
  %v569 = vmul.u32 %v564, %v565
  %v570 = vmul.u32 %v564, %v566
  %v571 = vshll.u32 %v568, 16
  %v572 = vshrl.u32 %v568, 16
  %v573 = vshll.u32 %v569, 16
  %v574 = vshrl.u32 %v569, 16
  %vm575 = vc.u32 %v567, %v571
  %v576 = vsel %vm575, 1, 0
  %v577 = vadd.s32 %v567, %v571
  %v578 = vadd.s32 %v570, %v576
  %vm579 = vc.u32 %v577, %v573
  %v580 = vsel %vm579, 1, 0
  %v581 = vadd.s32 %v577, %v573
  %v582 = vadd.s32 %v578, %v580
  %v583 = vadd.s32 %v582, %v572
  %v584 = vadd.s32 %v583, %v574
  %v585 = vand.u32 %v562, 65535
  %v586 = vshrl.u32 %v562, 16
  %v587 = vand.u32 %v557, 65535
  %v588 = vshrl.u32 %v557, 16
  %v589 = vmul.u32 %v585, %v587
  %v590 = vmul.u32 %v585, %v588
  %v591 = vmul.u32 %v586, %v587
  %v592 = vmul.u32 %v586, %v588
  %v593 = vshll.u32 %v590, 16
  %v594 = vshrl.u32 %v590, 16
  %v595 = vshll.u32 %v591, 16
  %v596 = vshrl.u32 %v591, 16
  %vm597 = vc.u32 %v589, %v593
  %v598 = vsel %vm597, 1, 0
  %v599 = vadd.s32 %v589, %v593
  %v600 = vadd.s32 %v592, %v598
  %vm601 = vc.u32 %v599, %v595
  %v602 = vsel %vm601, 1, 0
  %v603 = vadd.s32 %v599, %v595
  %v604 = vadd.s32 %v600, %v602
  %v605 = vadd.s32 %v604, %v594
  %v606 = vadd.s32 %v605, %v596
  %v607 = vmul.u32 %v562, %v553
  %v608 = vadd.s32 %v584, %v603
  %vm609 = vc.u32 %v584, %v603
  %v610 = vadd.s32 %v606, 1
  %v611 = vsel %vm609, %v610, %v606
  %v612 = vadd.s32 %v607, %v611
  %v613 = vadd.s32 %v612, 536870912
  %v614 = vshrl.u32 %v613, 30
  %v615 = vshll.u32 %v614, 30
  %v616 = vsub.s32 %v612, %v615
  %vm617 = vcmp.lt.s32.totalorder %v616, 0
  %v618 = vsub.s32 0, %v616
  %v619 = vsel %vm617, %v618, %v616
  %v620 = vclz %v619
  %v621 = vsub.s32 %v620, 2
  %vm622 = vcmp.gt.s32.totalorder 0, %v621
  %v623 = vsel %vm622, 0, %v621
  %v624 = vsub.s32 32, %v623
  %v625 = vshll.u32 %v616, %v623
  %v626 = vshrl.u32 %v608, %v624
  %v627 = vor.u32 %v625, %v626
  %v628 = vsub.s32 4294967266, %v623
  %v629 = vadd.s32 %v628, 127
  %v630 = vshll.u32 %v629, 23
  %v631 = vor.u32 4788187, %v630
  %v632 = vand.u32 2147483647, %v631
  %v634 = vcvt.s32.f32 %v627
  %v635 = vmul.f32 %v634, %v632
  %v636 = vxor.u32 %v635, 2147483648
  %v637 = vsel %vm516, %v636, %v635
  %v638 = vsub.s32 4, %v614
  %v639 = vsel %vm516, %v638, %v614
  %v640 = vsel %vm515, %v44, %v637
  %v641 = vsel %vm515, 0, %v639
  %v642 = vmul.f32 %v640, %v640
  %v643 = vmul.f32 %v642, -0.001358992
  %v644 = vadd.f32 %v643, 0.041655596
  %v645 = vmul.f32 %v642, %v644
  %v646 = vadd.f32 %v645, -0.4999988
  %v647 = vmul.f32 %v642, %v646
  %v648 = vadd.f32 1.0, %v647
  %v649 = vmul.f32 %v640, %v640
  %v650 = vmul.f32 %v649, -0.00019511016
  %v651 = vadd.f32 %v650, 0.008332121
  %v652 = vmul.f32 %v649, %v651
  %v653 = vadd.f32 %v652, -0.16666654
  %v654 = vmul.f32 %v649, %v653
  %v655 = vadd.f32 %v654, 1.0
  %v656 = vmul.f32 %v655, %v640
  %vm657 = vweird.f32 %v44
  %v658 = vadd.s32 %v641, 3
  %v659 = vand.u32 %v658, 3
  %vm660 = vcmp.lt.s32.totalorder %v659, 2
  %vm661 = vcmp.eq.s32.totalorder %v659, 0
  %v662 = vxor.u32 %v656, 2147483648
  %v663 = vsel %vm661, %v648, %v662
  %vm664 = vcmp.eq.s32.totalorder %v659, 2
  %v665 = vxor.u32 %v648, 2147483648
  %v666 = vsel %vm664, %v665, %v656
  %v667 = vsel %vm660, %v663, %v666
  %v668 = vsel %vm657, nan, %v667
  %v669 = vand.u32 2147483647, %v45
  %vm670 = vcmp.le.f32.partialorder %v669, 0.7853982
  %vm671 = vcmp.lt.s32.totalorder %v45, 0
  %v672 = vand.u32 %v45, 2139095040
  %v673 = vshrl.u32 %v672, 23
  %v674 = vsub.s32 %v673, 127
  %v675 = vand.u32 2147483647, %v45
  %v676 = vand.u32 %v675, 8388607
  %v677 = vor.u32 %v676, 8388608
  %v678 = vsub.s32 0, %v677
  %v679 = vadd.s32 %v674, 1
  %vm680 = vcmp.gt.s32.totalorder %v679, 0
  %v681 = vsel %vm680, %v679, 0
  %v682 = vshrl.u32 %v681, 5
  %v683 = vand.u32 %v681, 31
  %v684 = vsub.s32 32, %v683
  %v685 = vshrl.u32 683565275, %v684
  %v686 = vshll.u32 683565275, %v683
  %v687 = vshrl.u32 2475754826, %v684
  %v688 = vor.u32 %v686, %v687
  %v689 = vshll.u32 2475754826, %v683
  %v690 = vshrl.u32 2131351028, %v684
  %v691 = vor.u32 %v689, %v690
  %v692 = vshll.u32 2131351028, %v683
  %v693 = vshrl.u32 2102212464, %v684
  %v694 = vor.u32 %v692, %v693
  %v695 = vshll.u32 2102212464, %v683
  %v696 = vshrl.u32 920167782, %v684
  %v697 = vor.u32 %v695, %v696
  %v698 = vshll.u32 920167782, %v683
  %v699 = vshrl.u32 1326507024, %v684
  %v700 = vor.u32 %v698, %v699
  %vm701 = vcmp.lt.s32.totalorder %v682, 1
  %vm702 = vcmp.lt.s32.totalorder %v682, 2
  %vm703 = vcmp.lt.s32.totalorder %v682, 3
  %vm704 = vcmp.lt.s32.totalorder %v682, 4
  %v705 = vsel %vm701, %v685, %v688
  %v706 = vsel %vm704, %v694, 2102212464
  %v707 = vsel %vm703, %v691, %v706
  %v708 = vsel %vm702, %v705, %v707
  %v709 = vsel %vm701, %v688, %v691
  %v710 = vsel %vm704, %v697, 920167782
  %v711 = vsel %vm703, %v694, %v710
  %v712 = vsel %vm702, %v709, %v711
  %v713 = vsel %vm701, %v691, %v694
  %v714 = vsel %vm704, %v700, 1326507024
  %v715 = vsel %vm703, %v697, %v714
  %v716 = vsel %vm702, %v713, %v715
  %v717 = vshll.u32 %v677, 8
  %v718 = vand.u32 %v717, 65535
  %v719 = vshrl.u32 %v717, 16
  %v720 = vand.u32 %v716, 65535
  %v721 = vshrl.u32 %v716, 16
  %v722 = vmul.u32 %v718, %v720
  %v723 = vmul.u32 %v718, %v721
  %v724 = vmul.u32 %v719, %v720
  %v725 = vmul.u32 %v719, %v721
  %v726 = vshll.u32 %v723, 16
  %v727 = vshrl.u32 %v723, 16
  %v728 = vshll.u32 %v724, 16
  %v729 = vshrl.u32 %v724, 16
  %vm730 = vc.u32 %v722, %v726
  %v731 = vsel %vm730, 1, 0
  %v732 = vadd.s32 %v722, %v726
  %v733 = vadd.s32 %v725, %v731
  %vm734 = vc.u32 %v732, %v728
  %v735 = vsel %vm734, 1, 0
  %v736 = vadd.s32 %v732, %v728
  %v737 = vadd.s32 %v733, %v735
  %v738 = vadd.s32 %v737, %v727
  %v739 = vadd.s32 %v738, %v729
  %v740 = vand.u32 %v717, 65535
  %v741 = vshrl.u32 %v717, 16
  %v742 = vand.u32 %v712, 65535
  %v743 = vshrl.u32 %v712, 16
  %v744 = vmul.u32 %v740, %v742
  %v745 = vmul.u32 %v740, %v743
  %v746 = vmul.u32 %v741, %v742
  %v747 = vmul.u32 %v741, %v743
  %v748 = vshll.u32 %v745, 16
  %v749 = vshrl.u32 %v745, 16
  %v750 = vshll.u32 %v746, 16
  %v751 = vshrl.u32 %v746, 16
  %vm752 = vc.u32 %v744, %v748
  %v753 = vsel %vm752, 1, 0
  %v754 = vadd.s32 %v744, %v748
  %v755 = vadd.s32 %v747, %v753
  %vm756 = vc.u32 %v754, %v750
  %v757 = vsel %vm756, 1, 0
  %v758 = vadd.s32 %v754, %v750
  %v759 = vadd.s32 %v755, %v757
  %v760 = vadd.s32 %v759, %v749
  %v761 = vadd.s32 %v760, %v751
  %v762 = vmul.u32 %v717, %v708
  %v763 = vadd.s32 %v739, %v758
  %vm764 = vc.u32 %v739, %v758
  %v765 = vadd.s32 %v761, 1
  %v766 = vsel %vm764, %v765, %v761
  %v767 = vadd.s32 %v762, %v766
  %v768 = vadd.s32 %v767, 536870912
  %v769 = vshrl.u32 %v768, 30
  %v770 = vshll.u32 %v769, 30
  %v771 = vsub.s32 %v767, %v770
  %vm772 = vcmp.lt.s32.totalorder %v771, 0
  %v773 = vsub.s32 0, %v771
  %v774 = vsel %vm772, %v773, %v771
  %v775 = vclz %v774
  %v776 = vsub.s32 %v775, 2
  %vm777 = vcmp.gt.s32.totalorder 0, %v776
  %v778 = vsel %vm777, 0, %v776
  %v779 = vsub.s32 32, %v778
  %v780 = vshll.u32 %v771, %v778
  %v781 = vshrl.u32 %v763, %v779
  %v782 = vor.u32 %v780, %v781
  %v783 = vsub.s32 4294967266, %v778
  %v784 = vadd.s32 %v783, 127
  %v785 = vshll.u32 %v784, 23
  %v786 = vor.u32 4788187, %v785
  %v787 = vand.u32 2147483647, %v786
  %v789 = vcvt.s32.f32 %v782
  %v790 = vmul.f32 %v789, %v787
  %v791 = vxor.u32 %v790, 2147483648
  %v792 = vsel %vm671, %v791, %v790
  %v793 = vsub.s32 4, %v769
  %v794 = vsel %vm671, %v793, %v769
  %v795 = vsel %vm670, %v45, %v792
  %v796 = vsel %vm670, 0, %v794
  %v797 = vmul.f32 %v795, %v795
  %v798 = vmul.f32 %v797, -0.001358992
  %v799 = vadd.f32 %v798, 0.041655596
  %v800 = vmul.f32 %v797, %v799
  %v801 = vadd.f32 %v800, -0.4999988
  %v802 = vmul.f32 %v797, %v801
  %v803 = vadd.f32 1.0, %v802
  %v804 = vmul.f32 %v795, %v795
  %v805 = vmul.f32 %v804, -0.00019511016
  %v806 = vadd.f32 %v805, 0.008332121
  %v807 = vmul.f32 %v804, %v806
  %v808 = vadd.f32 %v807, -0.16666654
  %v809 = vmul.f32 %v804, %v808
  %v810 = vadd.f32 %v809, 1.0
  %v811 = vmul.f32 %v810, %v795
  %vm812 = vweird.f32 %v45
  %v813 = vadd.s32 %v796, 3
  %v814 = vand.u32 %v813, 3
  %vm815 = vcmp.lt.s32.totalorder %v814, 2
  %vm816 = vcmp.eq.s32.totalorder %v814, 0
  %v817 = vxor.u32 %v811, 2147483648
  %v818 = vsel %vm816, %v803, %v817
  %vm819 = vcmp.eq.s32.totalorder %v814, 2
  %v820 = vxor.u32 %v803, 2147483648
  %v821 = vsel %vm819, %v820, %v811
  %v822 = vsel %vm815, %v818, %v821
  %v823 = vsel %vm812, nan, %v822
  %v824 = vand.u32 2147483647, %v46
  %vm825 = vcmp.le.f32.partialorder %v824, 0.7853982
  %vm826 = vcmp.lt.s32.totalorder %v46, 0
  %v827 = vand.u32 %v46, 2139095040
  %v828 = vshrl.u32 %v827, 23
  %v829 = vsub.s32 %v828, 127
  %v830 = vand.u32 2147483647, %v46
  %v831 = vand.u32 %v830, 8388607
  %v832 = vor.u32 %v831, 8388608
  %v833 = vsub.s32 0, %v832
  %v834 = vadd.s32 %v829, 1
  %vm835 = vcmp.gt.s32.totalorder %v834, 0
  %v836 = vsel %vm835, %v834, 0
  %v837 = vshrl.u32 %v836, 5
  %v838 = vand.u32 %v836, 31
  %v839 = vsub.s32 32, %v838
  %v840 = vshrl.u32 683565275, %v839
  %v841 = vshll.u32 683565275, %v838
  %v842 = vshrl.u32 2475754826, %v839
  %v843 = vor.u32 %v841, %v842
  %v844 = vshll.u32 2475754826, %v838
  %v845 = vshrl.u32 2131351028, %v839
  %v846 = vor.u32 %v844, %v845
  %v847 = vshll.u32 2131351028, %v838
  %v848 = vshrl.u32 2102212464, %v839
  %v849 = vor.u32 %v847, %v848
  %v850 = vshll.u32 2102212464, %v838
  %v851 = vshrl.u32 920167782, %v839
  %v852 = vor.u32 %v850, %v851
  %v853 = vshll.u32 920167782, %v838
  %v854 = vshrl.u32 1326507024, %v839
  %v855 = vor.u32 %v853, %v854
  %vm856 = vcmp.lt.s32.totalorder %v837, 1
  %vm857 = vcmp.lt.s32.totalorder %v837, 2
  %vm858 = vcmp.lt.s32.totalorder %v837, 3
  %vm859 = vcmp.lt.s32.totalorder %v837, 4
  %v860 = vsel %vm856, %v840, %v843
  %v861 = vsel %vm859, %v849, 2102212464
  %v862 = vsel %vm858, %v846, %v861
  %v863 = vsel %vm857, %v860, %v862
  %v864 = vsel %vm856, %v843, %v846
  %v865 = vsel %vm859, %v852, 920167782
  %v866 = vsel %vm858, %v849, %v865
  %v867 = vsel %vm857, %v864, %v866
  %v868 = vsel %vm856, %v846, %v849
  %v869 = vsel %vm859, %v855, 1326507024
  %v870 = vsel %vm858, %v852, %v869
  %v871 = vsel %vm857, %v868, %v870
  %v872 = vshll.u32 %v832, 8
  %v873 = vand.u32 %v872, 65535
  %v874 = vshrl.u32 %v872, 16
  %v875 = vand.u32 %v871, 65535
  %v876 = vshrl.u32 %v871, 16
  %v877 = vmul.u32 %v873, %v875
  %v878 = vmul.u32 %v873, %v876
  %v879 = vmul.u32 %v874, %v875
  %v880 = vmul.u32 %v874, %v876
  %v881 = vshll.u32 %v878, 16
  %v882 = vshrl.u32 %v878, 16
  %v883 = vshll.u32 %v879, 16
  %v884 = vshrl.u32 %v879, 16
  %vm885 = vc.u32 %v877, %v881
  %v886 = vsel %vm885, 1, 0
  %v887 = vadd.s32 %v877, %v881
  %v888 = vadd.s32 %v880, %v886
  %vm889 = vc.u32 %v887, %v883
  %v890 = vsel %vm889, 1, 0
  %v891 = vadd.s32 %v887, %v883
  %v892 = vadd.s32 %v888, %v890
  %v893 = vadd.s32 %v892, %v882
  %v894 = vadd.s32 %v893, %v884
  %v895 = vand.u32 %v872, 65535
  %v896 = vshrl.u32 %v872, 16
  %v897 = vand.u32 %v867, 65535
  %v898 = vshrl.u32 %v867, 16
  %v899 = vmul.u32 %v895, %v897
  %v900 = vmul.u32 %v895, %v898
  %v901 = vmul.u32 %v896, %v897
  %v902 = vmul.u32 %v896, %v898
  %v903 = vshll.u32 %v900, 16
  %v904 = vshrl.u32 %v900, 16
  %v905 = vshll.u32 %v901, 16
  %v906 = vshrl.u32 %v901, 16
  %vm907 = vc.u32 %v899, %v903
  %v908 = vsel %vm907, 1, 0
  %v909 = vadd.s32 %v899, %v903
  %v910 = vadd.s32 %v902, %v908
  %vm911 = vc.u32 %v909, %v905
  %v912 = vsel %vm911, 1, 0
  %v913 = vadd.s32 %v909, %v905
  %v914 = vadd.s32 %v910, %v912
  %v915 = vadd.s32 %v914, %v904
  %v916 = vadd.s32 %v915, %v906
  %v917 = vmul.u32 %v872, %v863
  %v918 = vadd.s32 %v894, %v913
  %vm919 = vc.u32 %v894, %v913
  %v920 = vadd.s32 %v916, 1
  %v921 = vsel %vm919, %v920, %v916
  %v922 = vadd.s32 %v917, %v921
  %v923 = vadd.s32 %v922, 536870912
  %v924 = vshrl.u32 %v923, 30
  %v925 = vshll.u32 %v924, 30
  %v926 = vsub.s32 %v922, %v925
  %vm927 = vcmp.lt.s32.totalorder %v926, 0
  %v928 = vsub.s32 0, %v926
  %v929 = vsel %vm927, %v928, %v926
  %v930 = vclz %v929
  %v931 = vsub.s32 %v930, 2
  %vm932 = vcmp.gt.s32.totalorder 0, %v931
  %v933 = vsel %vm932, 0, %v931
  %v934 = vsub.s32 32, %v933
  %v935 = vshll.u32 %v926, %v933
  %v936 = vshrl.u32 %v918, %v934
  %v937 = vor.u32 %v935, %v936
  %v938 = vsub.s32 4294967266, %v933
  %v939 = vadd.s32 %v938, 127
  %v940 = vshll.u32 %v939, 23
  %v941 = vor.u32 4788187, %v940
  %v942 = vand.u32 2147483647, %v941
  %v944 = vcvt.s32.f32 %v937
  %v945 = vmul.f32 %v944, %v942
  %v946 = vxor.u32 %v945, 2147483648
  %v947 = vsel %vm826, %v946, %v945
  %v948 = vsub.s32 4, %v924
  %v949 = vsel %vm826, %v948, %v924
  %v950 = vsel %vm825, %v46, %v947
  %v951 = vsel %vm825, 0, %v949
  %v952 = vmul.f32 %v950, %v950
  %v953 = vmul.f32 %v952, -0.001358992
  %v954 = vadd.f32 %v953, 0.041655596
  %v955 = vmul.f32 %v952, %v954
  %v956 = vadd.f32 %v955, -0.4999988
  %v957 = vmul.f32 %v952, %v956
  %v958 = vadd.f32 1.0, %v957
  %v959 = vmul.f32 %v950, %v950
  %v960 = vmul.f32 %v959, -0.00019511016
  %v961 = vadd.f32 %v960, 0.008332121
  %v962 = vmul.f32 %v959, %v961
  %v963 = vadd.f32 %v962, -0.16666654
  %v964 = vmul.f32 %v959, %v963
  %v965 = vadd.f32 %v964, 1.0
  %v966 = vmul.f32 %v965, %v950
  %vm967 = vweird.f32 %v46
  %v968 = vadd.s32 %v951, 3
  %v969 = vand.u32 %v968, 3
  %vm970 = vcmp.lt.s32.totalorder %v969, 2
  %vm971 = vcmp.eq.s32.totalorder %v969, 0
  %v972 = vxor.u32 %v966, 2147483648
  %v973 = vsel %vm971, %v958, %v972
  %vm974 = vcmp.eq.s32.totalorder %v969, 2
  %v975 = vxor.u32 %v958, 2147483648
  %v976 = vsel %vm974, %v975, %v966
  %v977 = vsel %vm970, %v973, %v976
  %v978 = vsel %vm967, nan, %v977
  %v979 = vand.u32 2147483647, %v47
  %vm980 = vcmp.le.f32.partialorder %v979, 0.7853982
  %vm981 = vcmp.lt.s32.totalorder %v47, 0
  %v982 = vand.u32 %v47, 2139095040
  %v983 = vshrl.u32 %v982, 23
  %v984 = vsub.s32 %v983, 127
  %v985 = vand.u32 2147483647, %v47
  %v986 = vand.u32 %v985, 8388607
  %v987 = vor.u32 %v986, 8388608
  %v988 = vsub.s32 0, %v987
  %v989 = vadd.s32 %v984, 1
  %vm990 = vcmp.gt.s32.totalorder %v989, 0
  %v991 = vsel %vm990, %v989, 0
  %v992 = vshrl.u32 %v991, 5
  %v993 = vand.u32 %v991, 31
  %v994 = vsub.s32 32, %v993
  %v995 = vshrl.u32 683565275, %v994
  %v996 = vshll.u32 683565275, %v993
  %v997 = vshrl.u32 2475754826, %v994
  %v998 = vor.u32 %v996, %v997
  %v999 = vshll.u32 2475754826, %v993
  %v1000 = vshrl.u32 2131351028, %v994
  %v1001 = vor.u32 %v999, %v1000
  %v1002 = vshll.u32 2131351028, %v993
  %v1003 = vshrl.u32 2102212464, %v994
  %v1004 = vor.u32 %v1002, %v1003
  %v1005 = vshll.u32 2102212464, %v993
  %v1006 = vshrl.u32 920167782, %v994
  %v1007 = vor.u32 %v1005, %v1006
  %v1008 = vshll.u32 920167782, %v993
  %v1009 = vshrl.u32 1326507024, %v994
  %v1010 = vor.u32 %v1008, %v1009
  %vm1011 = vcmp.lt.s32.totalorder %v992, 1
  %vm1012 = vcmp.lt.s32.totalorder %v992, 2
  %vm1013 = vcmp.lt.s32.totalorder %v992, 3
  %vm1014 = vcmp.lt.s32.totalorder %v992, 4
  %v1015 = vsel %vm1011, %v995, %v998
  %v1016 = vsel %vm1014, %v1004, 2102212464
  %v1017 = vsel %vm1013, %v1001, %v1016
  %v1018 = vsel %vm1012, %v1015, %v1017
  %v1019 = vsel %vm1011, %v998, %v1001
  %v1020 = vsel %vm1014, %v1007, 920167782
  %v1021 = vsel %vm1013, %v1004, %v1020
  %v1022 = vsel %vm1012, %v1019, %v1021
  %v1023 = vsel %vm1011, %v1001, %v1004
  %v1024 = vsel %vm1014, %v1010, 1326507024
  %v1025 = vsel %vm1013, %v1007, %v1024
  %v1026 = vsel %vm1012, %v1023, %v1025
  %v1027 = vshll.u32 %v987, 8
  %v1028 = vand.u32 %v1027, 65535
  %v1029 = vshrl.u32 %v1027, 16
  %v1030 = vand.u32 %v1026, 65535
  %v1031 = vshrl.u32 %v1026, 16
  %v1032 = vmul.u32 %v1028, %v1030
  %v1033 = vmul.u32 %v1028, %v1031
  %v1034 = vmul.u32 %v1029, %v1030
  %v1035 = vmul.u32 %v1029, %v1031
  %v1036 = vshll.u32 %v1033, 16
  %v1037 = vshrl.u32 %v1033, 16
  %v1038 = vshll.u32 %v1034, 16
  %v1039 = vshrl.u32 %v1034, 16
  %vm1040 = vc.u32 %v1032, %v1036
  %v1041 = vsel %vm1040, 1, 0
  %v1042 = vadd.s32 %v1032, %v1036
  %v1043 = vadd.s32 %v1035, %v1041
  %vm1044 = vc.u32 %v1042, %v1038
  %v1045 = vsel %vm1044, 1, 0
  %v1046 = vadd.s32 %v1042, %v1038
  %v1047 = vadd.s32 %v1043, %v1045
  %v1048 = vadd.s32 %v1047, %v1037
  %v1049 = vadd.s32 %v1048, %v1039
  %v1050 = vand.u32 %v1027, 65535
  %v1051 = vshrl.u32 %v1027, 16
  %v1052 = vand.u32 %v1022, 65535
  %v1053 = vshrl.u32 %v1022, 16
  %v1054 = vmul.u32 %v1050, %v1052
  %v1055 = vmul.u32 %v1050, %v1053
  %v1056 = vmul.u32 %v1051, %v1052
  %v1057 = vmul.u32 %v1051, %v1053
  %v1058 = vshll.u32 %v1055, 16
  %v1059 = vshrl.u32 %v1055, 16
  %v1060 = vshll.u32 %v1056, 16
  %v1061 = vshrl.u32 %v1056, 16
  %vm1062 = vc.u32 %v1054, %v1058
  %v1063 = vsel %vm1062, 1, 0
  %v1064 = vadd.s32 %v1054, %v1058
  %v1065 = vadd.s32 %v1057, %v1063
  %vm1066 = vc.u32 %v1064, %v1060
  %v1067 = vsel %vm1066, 1, 0
  %v1068 = vadd.s32 %v1064, %v1060
  %v1069 = vadd.s32 %v1065, %v1067
  %v1070 = vadd.s32 %v1069, %v1059
  %v1071 = vadd.s32 %v1070, %v1061
  %v1072 = vmul.u32 %v1027, %v1018
  %v1073 = vadd.s32 %v1049, %v1068
  %vm1074 = vc.u32 %v1049, %v1068
  %v1075 = vadd.s32 %v1071, 1
  %v1076 = vsel %vm1074, %v1075, %v1071
  %v1077 = vadd.s32 %v1072, %v1076
  %v1078 = vadd.s32 %v1077, 536870912
  %v1079 = vshrl.u32 %v1078, 30
  %v1080 = vshll.u32 %v1079, 30
  %v1081 = vsub.s32 %v1077, %v1080
  %vm1082 = vcmp.lt.s32.totalorder %v1081, 0
  %v1083 = vsub.s32 0, %v1081
  %v1084 = vsel %vm1082, %v1083, %v1081
  %v1085 = vclz %v1084
  %v1086 = vsub.s32 %v1085, 2
  %vm1087 = vcmp.gt.s32.totalorder 0, %v1086
  %v1088 = vsel %vm1087, 0, %v1086
  %v1089 = vsub.s32 32, %v1088
  %v1090 = vshll.u32 %v1081, %v1088
  %v1091 = vshrl.u32 %v1073, %v1089
  %v1092 = vor.u32 %v1090, %v1091
  %v1093 = vsub.s32 4294967266, %v1088
  %v1094 = vadd.s32 %v1093, 127
  %v1095 = vshll.u32 %v1094, 23
  %v1096 = vor.u32 4788187, %v1095
  %v1097 = vand.u32 2147483647, %v1096
  %v1099 = vcvt.s32.f32 %v1092
  %v1100 = vmul.f32 %v1099, %v1097
  %v1101 = vxor.u32 %v1100, 2147483648
  %v1102 = vsel %vm981, %v1101, %v1100
  %v1103 = vsub.s32 4, %v1079
  %v1104 = vsel %vm981, %v1103, %v1079
  %v1105 = vsel %vm980, %v47, %v1102
  %v1106 = vsel %vm980, 0, %v1104
  %v1107 = vmul.f32 %v1105, %v1105
  %v1108 = vmul.f32 %v1107, -0.001358992
  %v1109 = vadd.f32 %v1108, 0.041655596
  %v1110 = vmul.f32 %v1107, %v1109
  %v1111 = vadd.f32 %v1110, -0.4999988
  %v1112 = vmul.f32 %v1107, %v1111
  %v1113 = vadd.f32 1.0, %v1112
  %v1114 = vmul.f32 %v1105, %v1105
  %v1115 = vmul.f32 %v1114, -0.00019511016
  %v1116 = vadd.f32 %v1115, 0.008332121
  %v1117 = vmul.f32 %v1114, %v1116
  %v1118 = vadd.f32 %v1117, -0.16666654
  %v1119 = vmul.f32 %v1114, %v1118
  %v1120 = vadd.f32 %v1119, 1.0
  %v1121 = vmul.f32 %v1120, %v1105
  %vm1122 = vweird.f32 %v47
  %v1123 = vadd.s32 %v1106, 3
  %v1124 = vand.u32 %v1123, 3
  %vm1125 = vcmp.lt.s32.totalorder %v1124, 2
  %vm1126 = vcmp.eq.s32.totalorder %v1124, 0
  %v1127 = vxor.u32 %v1121, 2147483648
  %v1128 = vsel %vm1126, %v1113, %v1127
  %vm1129 = vcmp.eq.s32.totalorder %v1124, 2
  %v1130 = vxor.u32 %v1113, 2147483648
  %v1131 = vsel %vm1129, %v1130, %v1121
  %v1132 = vsel %vm1125, %v1128, %v1131
  %v1133 = vsel %vm1122, nan, %v1132
  %v1134 = vand.u32 2147483647, %v48
  %vm1135 = vcmp.le.f32.partialorder %v1134, 0.7853982
  %vm1136 = vcmp.lt.s32.totalorder %v48, 0
  %v1137 = vand.u32 %v48, 2139095040
  %v1138 = vshrl.u32 %v1137, 23
  %v1139 = vsub.s32 %v1138, 127
  %v1140 = vand.u32 2147483647, %v48
  %v1141 = vand.u32 %v1140, 8388607
  %v1142 = vor.u32 %v1141, 8388608
  %v1143 = vsub.s32 0, %v1142
  %v1144 = vadd.s32 %v1139, 1
  %vm1145 = vcmp.gt.s32.totalorder %v1144, 0
  %v1146 = vsel %vm1145, %v1144, 0
  %v1147 = vshrl.u32 %v1146, 5
  %v1148 = vand.u32 %v1146, 31
  %v1149 = vsub.s32 32, %v1148
  %v1150 = vshrl.u32 683565275, %v1149
  %v1151 = vshll.u32 683565275, %v1148
  %v1152 = vshrl.u32 2475754826, %v1149
  %v1153 = vor.u32 %v1151, %v1152
  %v1154 = vshll.u32 2475754826, %v1148
  %v1155 = vshrl.u32 2131351028, %v1149
  %v1156 = vor.u32 %v1154, %v1155
  %v1157 = vshll.u32 2131351028, %v1148
  %v1158 = vshrl.u32 2102212464, %v1149
  %v1159 = vor.u32 %v1157, %v1158
  %v1160 = vshll.u32 2102212464, %v1148
  %v1161 = vshrl.u32 920167782, %v1149
  %v1162 = vor.u32 %v1160, %v1161
  %v1163 = vshll.u32 920167782, %v1148
  %v1164 = vshrl.u32 1326507024, %v1149
  %v1165 = vor.u32 %v1163, %v1164
  %vm1166 = vcmp.lt.s32.totalorder %v1147, 1
  %vm1167 = vcmp.lt.s32.totalorder %v1147, 2
  %vm1168 = vcmp.lt.s32.totalorder %v1147, 3
  %vm1169 = vcmp.lt.s32.totalorder %v1147, 4
  %v1170 = vsel %vm1166, %v1150, %v1153
  %v1171 = vsel %vm1169, %v1159, 2102212464
  %v1172 = vsel %vm1168, %v1156, %v1171
  %v1173 = vsel %vm1167, %v1170, %v1172
  %v1174 = vsel %vm1166, %v1153, %v1156
  %v1175 = vsel %vm1169, %v1162, 920167782
  %v1176 = vsel %vm1168, %v1159, %v1175
  %v1177 = vsel %vm1167, %v1174, %v1176
  %v1178 = vsel %vm1166, %v1156, %v1159
  %v1179 = vsel %vm1169, %v1165, 1326507024
  %v1180 = vsel %vm1168, %v1162, %v1179
  %v1181 = vsel %vm1167, %v1178, %v1180
  %v1182 = vshll.u32 %v1142, 8
  %v1183 = vand.u32 %v1182, 65535
  %v1184 = vshrl.u32 %v1182, 16
  %v1185 = vand.u32 %v1181, 65535
  %v1186 = vshrl.u32 %v1181, 16
  %v1187 = vmul.u32 %v1183, %v1185
  %v1188 = vmul.u32 %v1183, %v1186
  %v1189 = vmul.u32 %v1184, %v1185
  %v1190 = vmul.u32 %v1184, %v1186
  %v1191 = vshll.u32 %v1188, 16
  %v1192 = vshrl.u32 %v1188, 16
  %v1193 = vshll.u32 %v1189, 16
  %v1194 = vshrl.u32 %v1189, 16
  %vm1195 = vc.u32 %v1187, %v1191
  %v1196 = vsel %vm1195, 1, 0
  %v1197 = vadd.s32 %v1187, %v1191
  %v1198 = vadd.s32 %v1190, %v1196
  %vm1199 = vc.u32 %v1197, %v1193
  %v1200 = vsel %vm1199, 1, 0
  %v1201 = vadd.s32 %v1197, %v1193
  %v1202 = vadd.s32 %v1198, %v1200
  %v1203 = vadd.s32 %v1202, %v1192
  %v1204 = vadd.s32 %v1203, %v1194
  %v1205 = vand.u32 %v1182, 65535
  %v1206 = vshrl.u32 %v1182, 16
  %v1207 = vand.u32 %v1177, 65535
  %v1208 = vshrl.u32 %v1177, 16
  %v1209 = vmul.u32 %v1205, %v1207
  %v1210 = vmul.u32 %v1205, %v1208
  %v1211 = vmul.u32 %v1206, %v1207
  %v1212 = vmul.u32 %v1206, %v1208
  %v1213 = vshll.u32 %v1210, 16
  %v1214 = vshrl.u32 %v1210, 16
  %v1215 = vshll.u32 %v1211, 16
  %v1216 = vshrl.u32 %v1211, 16
  %vm1217 = vc.u32 %v1209, %v1213
  %v1218 = vsel %vm1217, 1, 0
  %v1219 = vadd.s32 %v1209, %v1213
  %v1220 = vadd.s32 %v1212, %v1218
  %vm1221 = vc.u32 %v1219, %v1215
  %v1222 = vsel %vm1221, 1, 0
  %v1223 = vadd.s32 %v1219, %v1215
  %v1224 = vadd.s32 %v1220, %v1222
  %v1225 = vadd.s32 %v1224, %v1214
  %v1226 = vadd.s32 %v1225, %v1216
  %v1227 = vmul.u32 %v1182, %v1173
  %v1228 = vadd.s32 %v1204, %v1223
  %vm1229 = vc.u32 %v1204, %v1223
  %v1230 = vadd.s32 %v1226, 1
  %v1231 = vsel %vm1229, %v1230, %v1226
  %v1232 = vadd.s32 %v1227, %v1231
  %v1233 = vadd.s32 %v1232, 536870912
  %v1234 = vshrl.u32 %v1233, 30
  %v1235 = vshll.u32 %v1234, 30
  %v1236 = vsub.s32 %v1232, %v1235
  %vm1237 = vcmp.lt.s32.totalorder %v1236, 0
  %v1238 = vsub.s32 0, %v1236
  %v1239 = vsel %vm1237, %v1238, %v1236
  %v1240 = vclz %v1239
  %v1241 = vsub.s32 %v1240, 2
  %vm1242 = vcmp.gt.s32.totalorder 0, %v1241
  %v1243 = vsel %vm1242, 0, %v1241
  %v1244 = vsub.s32 32, %v1243
  %v1245 = vshll.u32 %v1236, %v1243
  %v1246 = vshrl.u32 %v1228, %v1244
  %v1247 = vor.u32 %v1245, %v1246
  %v1248 = vsub.s32 4294967266, %v1243
  %v1249 = vadd.s32 %v1248, 127
  %v1250 = vshll.u32 %v1249, 23
  %v1251 = vor.u32 4788187, %v1250
  %v1252 = vand.u32 2147483647, %v1251
  %v1254 = vcvt.s32.f32 %v1247
  %v1255 = vmul.f32 %v1254, %v1252
  %v1256 = vxor.u32 %v1255, 2147483648
  %v1257 = vsel %vm1136, %v1256, %v1255
  %v1258 = vsub.s32 4, %v1234
  %v1259 = vsel %vm1136, %v1258, %v1234
  %v1260 = vsel %vm1135, %v48, %v1257
  %v1261 = vsel %vm1135, 0, %v1259
  %v1262 = vmul.f32 %v1260, %v1260
  %v1263 = vmul.f32 %v1262, -0.001358992
  %v1264 = vadd.f32 %v1263, 0.041655596
  %v1265 = vmul.f32 %v1262, %v1264
  %v1266 = vadd.f32 %v1265, -0.4999988
  %v1267 = vmul.f32 %v1262, %v1266
  %v1268 = vadd.f32 1.0, %v1267
  %v1269 = vmul.f32 %v1260, %v1260
  %v1270 = vmul.f32 %v1269, -0.00019511016
  %v1271 = vadd.f32 %v1270, 0.008332121
  %v1272 = vmul.f32 %v1269, %v1271
  %v1273 = vadd.f32 %v1272, -0.16666654
  %v1274 = vmul.f32 %v1269, %v1273
  %v1275 = vadd.f32 %v1274, 1.0
  %v1276 = vmul.f32 %v1275, %v1260
  %vm1277 = vweird.f32 %v48
  %v1278 = vadd.s32 %v1261, 3
  %v1279 = vand.u32 %v1278, 3
  %vm1280 = vcmp.lt.s32.totalorder %v1279, 2
  %vm1281 = vcmp.eq.s32.totalorder %v1279, 0
  %v1282 = vxor.u32 %v1276, 2147483648
  %v1283 = vsel %vm1281, %v1268, %v1282
  %vm1284 = vcmp.eq.s32.totalorder %v1279, 2
  %v1285 = vxor.u32 %v1268, 2147483648
  %v1286 = vsel %vm1284, %v1285, %v1276
  %v1287 = vsel %vm1280, %v1283, %v1286
  %v1288 = vsel %vm1277, nan, %v1287
  %1289 = vxpose.xlu0.b32.start [1/16] %v203, 128
  %1290 = vxpose.xlu0.b32.cont [2/16] %v513, 128
  %1291 = vxpose.xlu0.b32.cont [3/16] %v823, 128
  %1292 = vxpose.xlu0.b32.cont [4/16] %v1133, 128
  %1293 = vxpose.xlu0.b32.cont [5/16] 0.0, 128
  %1294 = vxpose.xlu0.b32.cont [6/16] 0.0, 128
  %1295 = vxpose.xlu0.b32.cont [7/16] 0.0, 128
  %1296 = vxpose.xlu0.b32.cont [8/16] 0.0, 128
  %1297 = vxpose.xlu0.b32.cont [9/16] 0.0, 128
  %1298 = vxpose.xlu0.b32.cont [10/16] 0.0, 128
  %1299 = vxpose.xlu0.b32.cont [11/16] 0.0, 128
  %1300 = vxpose.xlu0.b32.cont [12/16] 0.0, 128
  %1301 = vxpose.xlu0.b32.cont [13/16] 0.0, 128
  %1302 = vxpose.xlu0.b32.cont [14/16] 0.0, 128
  %1303 = vxpose.xlu0.b32.cont [15/16] 0.0, 128
  %1304 = vxpose.xlu0.b32.end [16/16] 0.0, 128
  %v1305 = vpop.trf.xlu0
  %v1306 = vpop.trf.xlu0
  %v1307 = vpop.trf.xlu0
  %v1308 = vpop.trf.xlu0
  %v1309 = vpop.trf.xlu0
  %v1310 = vpop.trf.xlu0
  %v1311 = vpop.trf.xlu0
  %v1312 = vpop.trf.xlu0
  %v1313 = vpop.trf.xlu0
  %v1314 = vpop.trf.xlu0
  %v1315 = vpop.trf.xlu0
  %v1316 = vpop.trf.xlu0
  %v1317 = vpop.trf.xlu0
  %v1318 = vpop.trf.xlu0
  %v1319 = vpop.trf.xlu0
  %v1320 = vpop.trf.xlu0
  %1321 = vxpose.xlu0.b32.start [1/16] %v358, 128
  %1322 = vxpose.xlu0.b32.cont [2/16] %v668, 128
  %1323 = vxpose.xlu0.b32.cont [3/16] %v978, 128
  %1324 = vxpose.xlu0.b32.cont [4/16] %v1288, 128
  %1325 = vxpose.xlu0.b32.cont [5/16] 0.0, 128
  %1326 = vxpose.xlu0.b32.cont [6/16] 0.0, 128
  %1327 = vxpose.xlu0.b32.cont [7/16] 0.0, 128
  %1328 = vxpose.xlu0.b32.cont [8/16] 0.0, 128
  %1329 = vxpose.xlu0.b32.cont [9/16] 0.0, 128
  %1330 = vxpose.xlu0.b32.cont [10/16] 0.0, 128
  %1331 = vxpose.xlu0.b32.cont [11/16] 0.0, 128
  %1332 = vxpose.xlu0.b32.cont [12/16] 0.0, 128
  %1333 = vxpose.xlu0.b32.cont [13/16] 0.0, 128
  %1334 = vxpose.xlu0.b32.cont [14/16] 0.0, 128
  %1335 = vxpose.xlu0.b32.cont [15/16] 0.0, 128
  %1336 = vxpose.xlu0.b32.end [16/16] 0.0, 128
  %v1337 = vpop.trf.xlu0
  %v1338 = vpop.trf.xlu0
  %v1339 = vpop.trf.xlu0
  %v1340 = vpop.trf.xlu0
  %v1341 = vpop.trf.xlu0
  %v1342 = vpop.trf.xlu0
  %v1343 = vpop.trf.xlu0
  %v1344 = vpop.trf.xlu0
  %v1345 = vpop.trf.xlu0
  %v1346 = vpop.trf.xlu0
  %v1347 = vpop.trf.xlu0
  %v1348 = vpop.trf.xlu0
  %v1349 = vpop.trf.xlu0
  %v1350 = vpop.trf.xlu0
  %v1351 = vpop.trf.xlu0
  %v1352 = vpop.trf.xlu0
  %vm1353 = vcmask 261120
  %1354 = vst.msk [vmem:[%s2] sm:$0xff] %vm1353, %v1305
  %1355 = vst.msk [vmem:[%s2 + $0x8] sm:$0xff] %vm1353, %v1306
  %1356 = vst.msk [vmem:[%s2 + $0x10] sm:$0xff] %vm1353, %v1307
  %1357 = vst.msk [vmem:[%s2 + $0x18] sm:$0xff] %vm1353, %v1308
  %1358 = vst.msk [vmem:[%s2 + $0x20] sm:$0xff] %vm1353, %v1309
  %1359 = vst.msk [vmem:[%s2 + $0x28] sm:$0xff] %vm1353, %v1310
  %1360 = vst.msk [vmem:[%s2 + $0x30] sm:$0xff] %vm1353, %v1311
  %1361 = vst.msk [vmem:[%s2 + $0x38] sm:$0xff] %vm1353, %v1312
  %1362 = vst.msk [vmem:[%s2 + $0x40] sm:$0xff] %vm1353, %v1313
  %1363 = vst.msk [vmem:[%s2 + $0x48] sm:$0xff] %vm1353, %v1314
  %1364 = vst.msk [vmem:[%s2 + $0x50] sm:$0xff] %vm1353, %v1315
  %1365 = vst.msk [vmem:[%s2 + $0x58] sm:$0xff] %vm1353, %v1316
  %1366 = vst.msk [vmem:[%s2 + $0x60] sm:$0xff] %vm1353, %v1317
  %1367 = vst.msk [vmem:[%s2 + $0x68] sm:$0xff] %vm1353, %v1318
  %1368 = vst.msk [vmem:[%s2 + $0x70] sm:$0xff] %vm1353, %v1319
  %1369 = vst.msk [vmem:[%s2 + $0x78] sm:$0xff] %vm1353, %v1320
  %1370 = vst.msk [vmem:[%s2 + $0x80] sm:$0xff] %vm1353, %v1337
  %1371 = vst.msk [vmem:[%s2 + $0x88] sm:$0xff] %vm1353, %v1338
  %1372 = vst.msk [vmem:[%s2 + $0x90] sm:$0xff] %vm1353, %v1339
  %1373 = vst.msk [vmem:[%s2 + $0x98] sm:$0xff] %vm1353, %v1340
  %1374 = vst.msk [vmem:[%s2 + $0xa0] sm:$0xff] %vm1353, %v1341
  %1375 = vst.msk [vmem:[%s2 + $0xa8] sm:$0xff] %vm1353, %v1342
  %1376 = vst.msk [vmem:[%s2 + $0xb0] sm:$0xff] %vm1353, %v1343
  %1377 = vst.msk [vmem:[%s2 + $0xb8] sm:$0xff] %vm1353, %v1344
  %1378 = vst.msk [vmem:[%s2 + $0xc0] sm:$0xff] %vm1353, %v1345
  %1379 = vst.msk [vmem:[%s2 + $0xc8] sm:$0xff] %vm1353, %v1346
  %1380 = vst.msk [vmem:[%s2 + $0xd0] sm:$0xff] %vm1353, %v1347
  %1381 = vst.msk [vmem:[%s2 + $0xd8] sm:$0xff] %vm1353, %v1348
  %1382 = vst.msk [vmem:[%s2 + $0xe0] sm:$0xff] %vm1353, %v1349
  %1383 = vst.msk [vmem:[%s2 + $0xe8] sm:$0xff] %vm1353, %v1350
  %1384 = vst.msk [vmem:[%s2 + $0xf0] sm:$0xff] %vm1353, %v1351
  %1385 = vst.msk [vmem:[%s2 + $0xf8] sm:$0xff] %vm1353, %v1352
  %v1386 = vand.u32 2147483647, %v41
  %vm1387 = vcmp.le.f32.partialorder %v1386, 0.7853982
  %vm1388 = vcmp.lt.s32.totalorder %v41, 0
  %v1389 = vand.u32 %v41, 2139095040
  %v1390 = vshrl.u32 %v1389, 23
  %v1391 = vsub.s32 %v1390, 127
  %v1392 = vand.u32 2147483647, %v41
  %v1393 = vand.u32 %v1392, 8388607
  %v1394 = vor.u32 %v1393, 8388608
  %v1395 = vsub.s32 0, %v1394
  %v1396 = vadd.s32 %v1391, 1
  %vm1397 = vcmp.gt.s32.totalorder %v1396, 0
  %v1398 = vsel %vm1397, %v1396, 0
  %v1399 = vshrl.u32 %v1398, 5
  %v1400 = vand.u32 %v1398, 31
  %v1401 = vsub.s32 32, %v1400
  %v1402 = vshrl.u32 683565275, %v1401
  %v1403 = vshll.u32 683565275, %v1400
  %v1404 = vshrl.u32 2475754826, %v1401
  %v1405 = vor.u32 %v1403, %v1404
  %v1406 = vshll.u32 2475754826, %v1400
  %v1407 = vshrl.u32 2131351028, %v1401
  %v1408 = vor.u32 %v1406, %v1407
  %v1409 = vshll.u32 2131351028, %v1400
  %v1410 = vshrl.u32 2102212464, %v1401
  %v1411 = vor.u32 %v1409, %v1410
  %v1412 = vshll.u32 2102212464, %v1400
  %v1413 = vshrl.u32 920167782, %v1401
  %v1414 = vor.u32 %v1412, %v1413
  %v1415 = vshll.u32 920167782, %v1400
  %v1416 = vshrl.u32 1326507024, %v1401
  %v1417 = vor.u32 %v1415, %v1416
  %vm1418 = vcmp.lt.s32.totalorder %v1399, 1
  %vm1419 = vcmp.lt.s32.totalorder %v1399, 2
  %vm1420 = vcmp.lt.s32.totalorder %v1399, 3
  %vm1421 = vcmp.lt.s32.totalorder %v1399, 4
  %v1422 = vsel %vm1418, %v1402, %v1405
  %v1423 = vsel %vm1421, %v1411, 2102212464
  %v1424 = vsel %vm1420, %v1408, %v1423
  %v1425 = vsel %vm1419, %v1422, %v1424
  %v1426 = vsel %vm1418, %v1405, %v1408
  %v1427 = vsel %vm1421, %v1414, 920167782
  %v1428 = vsel %vm1420, %v1411, %v1427
  %v1429 = vsel %vm1419, %v1426, %v1428
  %v1430 = vsel %vm1418, %v1408, %v1411
  %v1431 = vsel %vm1421, %v1417, 1326507024
  %v1432 = vsel %vm1420, %v1414, %v1431
  %v1433 = vsel %vm1419, %v1430, %v1432
  %v1434 = vshll.u32 %v1394, 8
  %v1435 = vand.u32 %v1434, 65535
  %v1436 = vshrl.u32 %v1434, 16
  %v1437 = vand.u32 %v1433, 65535
  %v1438 = vshrl.u32 %v1433, 16
  %v1439 = vmul.u32 %v1435, %v1437
  %v1440 = vmul.u32 %v1435, %v1438
  %v1441 = vmul.u32 %v1436, %v1437
  %v1442 = vmul.u32 %v1436, %v1438
  %v1443 = vshll.u32 %v1440, 16
  %v1444 = vshrl.u32 %v1440, 16
  %v1445 = vshll.u32 %v1441, 16
  %v1446 = vshrl.u32 %v1441, 16
  %vm1447 = vc.u32 %v1439, %v1443
  %v1448 = vsel %vm1447, 1, 0
  %v1449 = vadd.s32 %v1439, %v1443
  %v1450 = vadd.s32 %v1442, %v1448
  %vm1451 = vc.u32 %v1449, %v1445
  %v1452 = vsel %vm1451, 1, 0
  %v1453 = vadd.s32 %v1449, %v1445
  %v1454 = vadd.s32 %v1450, %v1452
  %v1455 = vadd.s32 %v1454, %v1444
  %v1456 = vadd.s32 %v1455, %v1446
  %v1457 = vand.u32 %v1434, 65535
  %v1458 = vshrl.u32 %v1434, 16
  %v1459 = vand.u32 %v1429, 65535
  %v1460 = vshrl.u32 %v1429, 16
  %v1461 = vmul.u32 %v1457, %v1459
  %v1462 = vmul.u32 %v1457, %v1460
  %v1463 = vmul.u32 %v1458, %v1459
  %v1464 = vmul.u32 %v1458, %v1460
  %v1465 = vshll.u32 %v1462, 16
  %v1466 = vshrl.u32 %v1462, 16
  %v1467 = vshll.u32 %v1463, 16
  %v1468 = vshrl.u32 %v1463, 16
  %vm1469 = vc.u32 %v1461, %v1465
  %v1470 = vsel %vm1469, 1, 0
  %v1471 = vadd.s32 %v1461, %v1465
  %v1472 = vadd.s32 %v1464, %v1470
  %vm1473 = vc.u32 %v1471, %v1467
  %v1474 = vsel %vm1473, 1, 0
  %v1475 = vadd.s32 %v1471, %v1467
  %v1476 = vadd.s32 %v1472, %v1474
  %v1477 = vadd.s32 %v1476, %v1466
  %v1478 = vadd.s32 %v1477, %v1468
  %v1479 = vmul.u32 %v1434, %v1425
  %v1480 = vadd.s32 %v1456, %v1475
  %vm1481 = vc.u32 %v1456, %v1475
  %v1482 = vadd.s32 %v1478, 1
  %v1483 = vsel %vm1481, %v1482, %v1478
  %v1484 = vadd.s32 %v1479, %v1483
  %v1485 = vadd.s32 %v1484, 536870912
  %v1486 = vshrl.u32 %v1485, 30
  %v1487 = vshll.u32 %v1486, 30
  %v1488 = vsub.s32 %v1484, %v1487
  %vm1489 = vcmp.lt.s32.totalorder %v1488, 0
  %v1490 = vsub.s32 0, %v1488
  %v1491 = vsel %vm1489, %v1490, %v1488
  %v1492 = vclz %v1491
  %v1493 = vsub.s32 %v1492, 2
  %vm1494 = vcmp.gt.s32.totalorder 0, %v1493
  %v1495 = vsel %vm1494, 0, %v1493
  %v1496 = vsub.s32 32, %v1495
  %v1497 = vshll.u32 %v1488, %v1495
  %v1498 = vshrl.u32 %v1480, %v1496
  %v1499 = vor.u32 %v1497, %v1498
  %v1500 = vsub.s32 4294967266, %v1495
  %v1501 = vadd.s32 %v1500, 127
  %v1502 = vshll.u32 %v1501, 23
  %v1503 = vor.u32 4788187, %v1502
  %v1504 = vand.u32 2147483647, %v1503
  %v1506 = vcvt.s32.f32 %v1499
  %v1507 = vmul.f32 %v1506, %v1504
  %v1508 = vxor.u32 %v1507, 2147483648
  %v1509 = vsel %vm1388, %v1508, %v1507
  %v1510 = vsub.s32 4, %v1486
  %v1511 = vsel %vm1388, %v1510, %v1486
  %v1512 = vsel %vm1387, %v41, %v1509
  %v1513 = vsel %vm1387, 0, %v1511
  %v1514 = vmul.f32 %v1512, %v1512
  %v1515 = vmul.f32 %v1514, -0.001358992
  %v1516 = vadd.f32 %v1515, 0.041655596
  %v1517 = vmul.f32 %v1514, %v1516
  %v1518 = vadd.f32 %v1517, -0.4999988
  %v1519 = vmul.f32 %v1514, %v1518
  %v1520 = vadd.f32 1.0, %v1519
  %v1521 = vmul.f32 %v1512, %v1512
  %v1522 = vmul.f32 %v1521, -0.00019511016
  %v1523 = vadd.f32 %v1522, 0.008332121
  %v1524 = vmul.f32 %v1521, %v1523
  %v1525 = vadd.f32 %v1524, -0.16666654
  %v1526 = vmul.f32 %v1521, %v1525
  %v1527 = vadd.f32 %v1526, 1.0
  %v1528 = vmul.f32 %v1527, %v1512
  %vm1529 = vweird.f32 %v41
  %v1530 = vand.u32 %v1513, 3
  %vm1531 = vcmp.lt.s32.totalorder %v1530, 2
  %vm1532 = vcmp.eq.s32.totalorder %v1530, 0
  %v1533 = vxor.u32 %v1528, 2147483648
  %v1534 = vsel %vm1532, %v1520, %v1533
  %vm1535 = vcmp.eq.s32.totalorder %v1530, 2
  %v1536 = vxor.u32 %v1520, 2147483648
  %v1537 = vsel %vm1535, %v1536, %v1528
  %v1538 = vsel %vm1531, %v1534, %v1537
  %v1539 = vsel %vm1529, nan, %v1538
  %v1540 = vand.u32 2147483647, %v42
  %vm1541 = vcmp.le.f32.partialorder %v1540, 0.7853982
  %vm1542 = vcmp.lt.s32.totalorder %v42, 0
  %v1543 = vand.u32 %v42, 2139095040
  %v1544 = vshrl.u32 %v1543, 23
  %v1545 = vsub.s32 %v1544, 127
  %v1546 = vand.u32 2147483647, %v42
  %v1547 = vand.u32 %v1546, 8388607
  %v1548 = vor.u32 %v1547, 8388608
  %v1549 = vsub.s32 0, %v1548
  %v1550 = vadd.s32 %v1545, 1
  %vm1551 = vcmp.gt.s32.totalorder %v1550, 0
  %v1552 = vsel %vm1551, %v1550, 0
  %v1553 = vshrl.u32 %v1552, 5
  %v1554 = vand.u32 %v1552, 31
  %v1555 = vsub.s32 32, %v1554
  %v1556 = vshrl.u32 683565275, %v1555
  %v1557 = vshll.u32 683565275, %v1554
  %v1558 = vshrl.u32 2475754826, %v1555
  %v1559 = vor.u32 %v1557, %v1558
  %v1560 = vshll.u32 2475754826, %v1554
  %v1561 = vshrl.u32 2131351028, %v1555
  %v1562 = vor.u32 %v1560, %v1561
  %v1563 = vshll.u32 2131351028, %v1554
  %v1564 = vshrl.u32 2102212464, %v1555
  %v1565 = vor.u32 %v1563, %v1564
  %v1566 = vshll.u32 2102212464, %v1554
  %v1567 = vshrl.u32 920167782, %v1555
  %v1568 = vor.u32 %v1566, %v1567
  %v1569 = vshll.u32 920167782, %v1554
  %v1570 = vshrl.u32 1326507024, %v1555
  %v1571 = vor.u32 %v1569, %v1570
  %vm1572 = vcmp.lt.s32.totalorder %v1553, 1
  %vm1573 = vcmp.lt.s32.totalorder %v1553, 2
  %vm1574 = vcmp.lt.s32.totalorder %v1553, 3
  %vm1575 = vcmp.lt.s32.totalorder %v1553, 4
  %v1576 = vsel %vm1572, %v1556, %v1559
  %v1577 = vsel %vm1575, %v1565, 2102212464
  %v1578 = vsel %vm1574, %v1562, %v1577
  %v1579 = vsel %vm1573, %v1576, %v1578
  %v1580 = vsel %vm1572, %v1559, %v1562
  %v1581 = vsel %vm1575, %v1568, 920167782
  %v1582 = vsel %vm1574, %v1565, %v1581
  %v1583 = vsel %vm1573, %v1580, %v1582
  %v1584 = vsel %vm1572, %v1562, %v1565
  %v1585 = vsel %vm1575, %v1571, 1326507024
  %v1586 = vsel %vm1574, %v1568, %v1585
  %v1587 = vsel %vm1573, %v1584, %v1586
  %v1588 = vshll.u32 %v1548, 8
  %v1589 = vand.u32 %v1588, 65535
  %v1590 = vshrl.u32 %v1588, 16
  %v1591 = vand.u32 %v1587, 65535
  %v1592 = vshrl.u32 %v1587, 16
  %v1593 = vmul.u32 %v1589, %v1591
  %v1594 = vmul.u32 %v1589, %v1592
  %v1595 = vmul.u32 %v1590, %v1591
  %v1596 = vmul.u32 %v1590, %v1592
  %v1597 = vshll.u32 %v1594, 16
  %v1598 = vshrl.u32 %v1594, 16
  %v1599 = vshll.u32 %v1595, 16
  %v1600 = vshrl.u32 %v1595, 16
  %vm1601 = vc.u32 %v1593, %v1597
  %v1602 = vsel %vm1601, 1, 0
  %v1603 = vadd.s32 %v1593, %v1597
  %v1604 = vadd.s32 %v1596, %v1602
  %vm1605 = vc.u32 %v1603, %v1599
  %v1606 = vsel %vm1605, 1, 0
  %v1607 = vadd.s32 %v1603, %v1599
  %v1608 = vadd.s32 %v1604, %v1606
  %v1609 = vadd.s32 %v1608, %v1598
  %v1610 = vadd.s32 %v1609, %v1600
  %v1611 = vand.u32 %v1588, 65535
  %v1612 = vshrl.u32 %v1588, 16
  %v1613 = vand.u32 %v1583, 65535
  %v1614 = vshrl.u32 %v1583, 16
  %v1615 = vmul.u32 %v1611, %v1613
  %v1616 = vmul.u32 %v1611, %v1614
  %v1617 = vmul.u32 %v1612, %v1613
  %v1618 = vmul.u32 %v1612, %v1614
  %v1619 = vshll.u32 %v1616, 16
  %v1620 = vshrl.u32 %v1616, 16
  %v1621 = vshll.u32 %v1617, 16
  %v1622 = vshrl.u32 %v1617, 16
  %vm1623 = vc.u32 %v1615, %v1619
  %v1624 = vsel %vm1623, 1, 0
  %v1625 = vadd.s32 %v1615, %v1619
  %v1626 = vadd.s32 %v1618, %v1624
  %vm1627 = vc.u32 %v1625, %v1621
  %v1628 = vsel %vm1627, 1, 0
  %v1629 = vadd.s32 %v1625, %v1621
  %v1630 = vadd.s32 %v1626, %v1628
  %v1631 = vadd.s32 %v1630, %v1620
  %v1632 = vadd.s32 %v1631, %v1622
  %v1633 = vmul.u32 %v1588, %v1579
  %v1634 = vadd.s32 %v1610, %v1629
  %vm1635 = vc.u32 %v1610, %v1629
  %v1636 = vadd.s32 %v1632, 1
  %v1637 = vsel %vm1635, %v1636, %v1632
  %v1638 = vadd.s32 %v1633, %v1637
  %v1639 = vadd.s32 %v1638, 536870912
  %v1640 = vshrl.u32 %v1639, 30
  %v1641 = vshll.u32 %v1640, 30
  %v1642 = vsub.s32 %v1638, %v1641
  %vm1643 = vcmp.lt.s32.totalorder %v1642, 0
  %v1644 = vsub.s32 0, %v1642
  %v1645 = vsel %vm1643, %v1644, %v1642
  %v1646 = vclz %v1645
  %v1647 = vsub.s32 %v1646, 2
  %vm1648 = vcmp.gt.s32.totalorder 0, %v1647
  %v1649 = vsel %vm1648, 0, %v1647
  %v1650 = vsub.s32 32, %v1649
  %v1651 = vshll.u32 %v1642, %v1649
  %v1652 = vshrl.u32 %v1634, %v1650
  %v1653 = vor.u32 %v1651, %v1652
  %v1654 = vsub.s32 4294967266, %v1649
  %v1655 = vadd.s32 %v1654, 127
  %v1656 = vshll.u32 %v1655, 23
  %v1657 = vor.u32 4788187, %v1656
  %v1658 = vand.u32 2147483647, %v1657
  %v1660 = vcvt.s32.f32 %v1653
  %v1661 = vmul.f32 %v1660, %v1658
  %v1662 = vxor.u32 %v1661, 2147483648
  %v1663 = vsel %vm1542, %v1662, %v1661
  %v1664 = vsub.s32 4, %v1640
  %v1665 = vsel %vm1542, %v1664, %v1640
  %v1666 = vsel %vm1541, %v42, %v1663
  %v1667 = vsel %vm1541, 0, %v1665
  %v1668 = vmul.f32 %v1666, %v1666
  %v1669 = vmul.f32 %v1668, -0.001358992
  %v1670 = vadd.f32 %v1669, 0.041655596
  %v1671 = vmul.f32 %v1668, %v1670
  %v1672 = vadd.f32 %v1671, -0.4999988
  %v1673 = vmul.f32 %v1668, %v1672
  %v1674 = vadd.f32 1.0, %v1673
  %v1675 = vmul.f32 %v1666, %v1666
  %v1676 = vmul.f32 %v1675, -0.00019511016
  %v1677 = vadd.f32 %v1676, 0.008332121
  %v1678 = vmul.f32 %v1675, %v1677
  %v1679 = vadd.f32 %v1678, -0.16666654
  %v1680 = vmul.f32 %v1675, %v1679
  %v1681 = vadd.f32 %v1680, 1.0
  %v1682 = vmul.f32 %v1681, %v1666
  %vm1683 = vweird.f32 %v42
  %v1684 = vand.u32 %v1667, 3
  %vm1685 = vcmp.lt.s32.totalorder %v1684, 2
  %vm1686 = vcmp.eq.s32.totalorder %v1684, 0
  %v1687 = vxor.u32 %v1682, 2147483648
  %v1688 = vsel %vm1686, %v1674, %v1687
  %vm1689 = vcmp.eq.s32.totalorder %v1684, 2
  %v1690 = vxor.u32 %v1674, 2147483648
  %v1691 = vsel %vm1689, %v1690, %v1682
  %v1692 = vsel %vm1685, %v1688, %v1691
  %v1693 = vsel %vm1683, nan, %v1692
  %v1694 = vand.u32 2147483647, %v43
  %vm1695 = vcmp.le.f32.partialorder %v1694, 0.7853982
  %vm1696 = vcmp.lt.s32.totalorder %v43, 0
  %v1697 = vand.u32 %v43, 2139095040
  %v1698 = vshrl.u32 %v1697, 23
  %v1699 = vsub.s32 %v1698, 127
  %v1700 = vand.u32 2147483647, %v43
  %v1701 = vand.u32 %v1700, 8388607
  %v1702 = vor.u32 %v1701, 8388608
  %v1703 = vsub.s32 0, %v1702
  %v1704 = vadd.s32 %v1699, 1
  %vm1705 = vcmp.gt.s32.totalorder %v1704, 0
  %v1706 = vsel %vm1705, %v1704, 0
  %v1707 = vshrl.u32 %v1706, 5
  %v1708 = vand.u32 %v1706, 31
  %v1709 = vsub.s32 32, %v1708
  %v1710 = vshrl.u32 683565275, %v1709
  %v1711 = vshll.u32 683565275, %v1708
  %v1712 = vshrl.u32 2475754826, %v1709
  %v1713 = vor.u32 %v1711, %v1712
  %v1714 = vshll.u32 2475754826, %v1708
  %v1715 = vshrl.u32 2131351028, %v1709
  %v1716 = vor.u32 %v1714, %v1715
  %v1717 = vshll.u32 2131351028, %v1708
  %v1718 = vshrl.u32 2102212464, %v1709
  %v1719 = vor.u32 %v1717, %v1718
  %v1720 = vshll.u32 2102212464, %v1708
  %v1721 = vshrl.u32 920167782, %v1709
  %v1722 = vor.u32 %v1720, %v1721
  %v1723 = vshll.u32 920167782, %v1708
  %v1724 = vshrl.u32 1326507024, %v1709
  %v1725 = vor.u32 %v1723, %v1724
  %vm1726 = vcmp.lt.s32.totalorder %v1707, 1
  %vm1727 = vcmp.lt.s32.totalorder %v1707, 2
  %vm1728 = vcmp.lt.s32.totalorder %v1707, 3
  %vm1729 = vcmp.lt.s32.totalorder %v1707, 4
  %v1730 = vsel %vm1726, %v1710, %v1713
  %v1731 = vsel %vm1729, %v1719, 2102212464
  %v1732 = vsel %vm1728, %v1716, %v1731
  %v1733 = vsel %vm1727, %v1730, %v1732
  %v1734 = vsel %vm1726, %v1713, %v1716
  %v1735 = vsel %vm1729, %v1722, 920167782
  %v1736 = vsel %vm1728, %v1719, %v1735
  %v1737 = vsel %vm1727, %v1734, %v1736
  %v1738 = vsel %vm1726, %v1716, %v1719
  %v1739 = vsel %vm1729, %v1725, 1326507024
  %v1740 = vsel %vm1728, %v1722, %v1739
  %v1741 = vsel %vm1727, %v1738, %v1740
  %v1742 = vshll.u32 %v1702, 8
  %v1743 = vand.u32 %v1742, 65535
  %v1744 = vshrl.u32 %v1742, 16
  %v1745 = vand.u32 %v1741, 65535
  %v1746 = vshrl.u32 %v1741, 16
  %v1747 = vmul.u32 %v1743, %v1745
  %v1748 = vmul.u32 %v1743, %v1746
  %v1749 = vmul.u32 %v1744, %v1745
  %v1750 = vmul.u32 %v1744, %v1746
  %v1751 = vshll.u32 %v1748, 16
  %v1752 = vshrl.u32 %v1748, 16
  %v1753 = vshll.u32 %v1749, 16
  %v1754 = vshrl.u32 %v1749, 16
  %vm1755 = vc.u32 %v1747, %v1751
  %v1756 = vsel %vm1755, 1, 0
  %v1757 = vadd.s32 %v1747, %v1751
  %v1758 = vadd.s32 %v1750, %v1756
  %vm1759 = vc.u32 %v1757, %v1753
  %v1760 = vsel %vm1759, 1, 0
  %v1761 = vadd.s32 %v1757, %v1753
  %v1762 = vadd.s32 %v1758, %v1760
  %v1763 = vadd.s32 %v1762, %v1752
  %v1764 = vadd.s32 %v1763, %v1754
  %v1765 = vand.u32 %v1742, 65535
  %v1766 = vshrl.u32 %v1742, 16
  %v1767 = vand.u32 %v1737, 65535
  %v1768 = vshrl.u32 %v1737, 16
  %v1769 = vmul.u32 %v1765, %v1767
  %v1770 = vmul.u32 %v1765, %v1768
  %v1771 = vmul.u32 %v1766, %v1767
  %v1772 = vmul.u32 %v1766, %v1768
  %v1773 = vshll.u32 %v1770, 16
  %v1774 = vshrl.u32 %v1770, 16
  %v1775 = vshll.u32 %v1771, 16
  %v1776 = vshrl.u32 %v1771, 16
  %vm1777 = vc.u32 %v1769, %v1773
  %v1778 = vsel %vm1777, 1, 0
  %v1779 = vadd.s32 %v1769, %v1773
  %v1780 = vadd.s32 %v1772, %v1778
  %vm1781 = vc.u32 %v1779, %v1775
  %v1782 = vsel %vm1781, 1, 0
  %v1783 = vadd.s32 %v1779, %v1775
  %v1784 = vadd.s32 %v1780, %v1782
  %v1785 = vadd.s32 %v1784, %v1774
  %v1786 = vadd.s32 %v1785, %v1776
  %v1787 = vmul.u32 %v1742, %v1733
  %v1788 = vadd.s32 %v1764, %v1783
  %vm1789 = vc.u32 %v1764, %v1783
  %v1790 = vadd.s32 %v1786, 1
  %v1791 = vsel %vm1789, %v1790, %v1786
  %v1792 = vadd.s32 %v1787, %v1791
  %v1793 = vadd.s32 %v1792, 536870912
  %v1794 = vshrl.u32 %v1793, 30
  %v1795 = vshll.u32 %v1794, 30
  %v1796 = vsub.s32 %v1792, %v1795
  %vm1797 = vcmp.lt.s32.totalorder %v1796, 0
  %v1798 = vsub.s32 0, %v1796
  %v1799 = vsel %vm1797, %v1798, %v1796
  %v1800 = vclz %v1799
  %v1801 = vsub.s32 %v1800, 2
  %vm1802 = vcmp.gt.s32.totalorder 0, %v1801
  %v1803 = vsel %vm1802, 0, %v1801
  %v1804 = vsub.s32 32, %v1803
  %v1805 = vshll.u32 %v1796, %v1803
  %v1806 = vshrl.u32 %v1788, %v1804
  %v1807 = vor.u32 %v1805, %v1806
  %v1808 = vsub.s32 4294967266, %v1803
  %v1809 = vadd.s32 %v1808, 127
  %v1810 = vshll.u32 %v1809, 23
  %v1811 = vor.u32 4788187, %v1810
  %v1812 = vand.u32 2147483647, %v1811
  %v1814 = vcvt.s32.f32 %v1807
  %v1815 = vmul.f32 %v1814, %v1812
  %v1816 = vxor.u32 %v1815, 2147483648
  %v1817 = vsel %vm1696, %v1816, %v1815
  %v1818 = vsub.s32 4, %v1794
  %v1819 = vsel %vm1696, %v1818, %v1794
  %v1820 = vsel %vm1695, %v43, %v1817
  %v1821 = vsel %vm1695, 0, %v1819
  %v1822 = vmul.f32 %v1820, %v1820
  %v1823 = vmul.f32 %v1822, -0.001358992
  %v1824 = vadd.f32 %v1823, 0.041655596
  %v1825 = vmul.f32 %v1822, %v1824
  %v1826 = vadd.f32 %v1825, -0.4999988
  %v1827 = vmul.f32 %v1822, %v1826
  %v1828 = vadd.f32 1.0, %v1827
  %v1829 = vmul.f32 %v1820, %v1820
  %v1830 = vmul.f32 %v1829, -0.00019511016
  %v1831 = vadd.f32 %v1830, 0.008332121
  %v1832 = vmul.f32 %v1829, %v1831
  %v1833 = vadd.f32 %v1832, -0.16666654
  %v1834 = vmul.f32 %v1829, %v1833
  %v1835 = vadd.f32 %v1834, 1.0
  %v1836 = vmul.f32 %v1835, %v1820
  %vm1837 = vweird.f32 %v43
  %v1838 = vand.u32 %v1821, 3
  %vm1839 = vcmp.lt.s32.totalorder %v1838, 2
  %vm1840 = vcmp.eq.s32.totalorder %v1838, 0
  %v1841 = vxor.u32 %v1836, 2147483648
  %v1842 = vsel %vm1840, %v1828, %v1841
  %vm1843 = vcmp.eq.s32.totalorder %v1838, 2
  %v1844 = vxor.u32 %v1828, 2147483648
  %v1845 = vsel %vm1843, %v1844, %v1836
  %v1846 = vsel %vm1839, %v1842, %v1845
  %v1847 = vsel %vm1837, nan, %v1846
  %v1848 = vand.u32 2147483647, %v44
  %vm1849 = vcmp.le.f32.partialorder %v1848, 0.7853982
  %vm1850 = vcmp.lt.s32.totalorder %v44, 0
  %v1851 = vand.u32 %v44, 2139095040
  %v1852 = vshrl.u32 %v1851, 23
  %v1853 = vsub.s32 %v1852, 127
  %v1854 = vand.u32 2147483647, %v44
  %v1855 = vand.u32 %v1854, 8388607
  %v1856 = vor.u32 %v1855, 8388608
  %v1857 = vsub.s32 0, %v1856
  %v1858 = vadd.s32 %v1853, 1
  %vm1859 = vcmp.gt.s32.totalorder %v1858, 0
  %v1860 = vsel %vm1859, %v1858, 0
  %v1861 = vshrl.u32 %v1860, 5
  %v1862 = vand.u32 %v1860, 31
  %v1863 = vsub.s32 32, %v1862
  %v1864 = vshrl.u32 683565275, %v1863
  %v1865 = vshll.u32 683565275, %v1862
  %v1866 = vshrl.u32 2475754826, %v1863
  %v1867 = vor.u32 %v1865, %v1866
  %v1868 = vshll.u32 2475754826, %v1862
  %v1869 = vshrl.u32 2131351028, %v1863
  %v1870 = vor.u32 %v1868, %v1869
  %v1871 = vshll.u32 2131351028, %v1862
  %v1872 = vshrl.u32 2102212464, %v1863
  %v1873 = vor.u32 %v1871, %v1872
  %v1874 = vshll.u32 2102212464, %v1862
  %v1875 = vshrl.u32 920167782, %v1863
  %v1876 = vor.u32 %v1874, %v1875
  %v1877 = vshll.u32 920167782, %v1862
  %v1878 = vshrl.u32 1326507024, %v1863
  %v1879 = vor.u32 %v1877, %v1878
  %vm1880 = vcmp.lt.s32.totalorder %v1861, 1
  %vm1881 = vcmp.lt.s32.totalorder %v1861, 2
  %vm1882 = vcmp.lt.s32.totalorder %v1861, 3
  %vm1883 = vcmp.lt.s32.totalorder %v1861, 4
  %v1884 = vsel %vm1880, %v1864, %v1867
  %v1885 = vsel %vm1883, %v1873, 2102212464
  %v1886 = vsel %vm1882, %v1870, %v1885
  %v1887 = vsel %vm1881, %v1884, %v1886
  %v1888 = vsel %vm1880, %v1867, %v1870
  %v1889 = vsel %vm1883, %v1876, 920167782
  %v1890 = vsel %vm1882, %v1873, %v1889
  %v1891 = vsel %vm1881, %v1888, %v1890
  %v1892 = vsel %vm1880, %v1870, %v1873
  %v1893 = vsel %vm1883, %v1879, 1326507024
  %v1894 = vsel %vm1882, %v1876, %v1893
  %v1895 = vsel %vm1881, %v1892, %v1894
  %v1896 = vshll.u32 %v1856, 8
  %v1897 = vand.u32 %v1896, 65535
  %v1898 = vshrl.u32 %v1896, 16
  %v1899 = vand.u32 %v1895, 65535
  %v1900 = vshrl.u32 %v1895, 16
  %v1901 = vmul.u32 %v1897, %v1899
  %v1902 = vmul.u32 %v1897, %v1900
  %v1903 = vmul.u32 %v1898, %v1899
  %v1904 = vmul.u32 %v1898, %v1900
  %v1905 = vshll.u32 %v1902, 16
  %v1906 = vshrl.u32 %v1902, 16
  %v1907 = vshll.u32 %v1903, 16
  %v1908 = vshrl.u32 %v1903, 16
  %vm1909 = vc.u32 %v1901, %v1905
  %v1910 = vsel %vm1909, 1, 0
  %v1911 = vadd.s32 %v1901, %v1905
  %v1912 = vadd.s32 %v1904, %v1910
  %vm1913 = vc.u32 %v1911, %v1907
  %v1914 = vsel %vm1913, 1, 0
  %v1915 = vadd.s32 %v1911, %v1907
  %v1916 = vadd.s32 %v1912, %v1914
  %v1917 = vadd.s32 %v1916, %v1906
  %v1918 = vadd.s32 %v1917, %v1908
  %v1919 = vand.u32 %v1896, 65535
  %v1920 = vshrl.u32 %v1896, 16
  %v1921 = vand.u32 %v1891, 65535
  %v1922 = vshrl.u32 %v1891, 16
  %v1923 = vmul.u32 %v1919, %v1921
  %v1924 = vmul.u32 %v1919, %v1922
  %v1925 = vmul.u32 %v1920, %v1921
  %v1926 = vmul.u32 %v1920, %v1922
  %v1927 = vshll.u32 %v1924, 16
  %v1928 = vshrl.u32 %v1924, 16
  %v1929 = vshll.u32 %v1925, 16
  %v1930 = vshrl.u32 %v1925, 16
  %vm1931 = vc.u32 %v1923, %v1927
  %v1932 = vsel %vm1931, 1, 0
  %v1933 = vadd.s32 %v1923, %v1927
  %v1934 = vadd.s32 %v1926, %v1932
  %vm1935 = vc.u32 %v1933, %v1929
  %v1936 = vsel %vm1935, 1, 0
  %v1937 = vadd.s32 %v1933, %v1929
  %v1938 = vadd.s32 %v1934, %v1936
  %v1939 = vadd.s32 %v1938, %v1928
  %v1940 = vadd.s32 %v1939, %v1930
  %v1941 = vmul.u32 %v1896, %v1887
  %v1942 = vadd.s32 %v1918, %v1937
  %vm1943 = vc.u32 %v1918, %v1937
  %v1944 = vadd.s32 %v1940, 1
  %v1945 = vsel %vm1943, %v1944, %v1940
  %v1946 = vadd.s32 %v1941, %v1945
  %v1947 = vadd.s32 %v1946, 536870912
  %v1948 = vshrl.u32 %v1947, 30
  %v1949 = vshll.u32 %v1948, 30
  %v1950 = vsub.s32 %v1946, %v1949
  %vm1951 = vcmp.lt.s32.totalorder %v1950, 0
  %v1952 = vsub.s32 0, %v1950
  %v1953 = vsel %vm1951, %v1952, %v1950
  %v1954 = vclz %v1953
  %v1955 = vsub.s32 %v1954, 2
  %vm1956 = vcmp.gt.s32.totalorder 0, %v1955
  %v1957 = vsel %vm1956, 0, %v1955
  %v1958 = vsub.s32 32, %v1957
  %v1959 = vshll.u32 %v1950, %v1957
  %v1960 = vshrl.u32 %v1942, %v1958
  %v1961 = vor.u32 %v1959, %v1960
  %v1962 = vsub.s32 4294967266, %v1957
  %v1963 = vadd.s32 %v1962, 127
  %v1964 = vshll.u32 %v1963, 23
  %v1965 = vor.u32 4788187, %v1964
  %v1966 = vand.u32 2147483647, %v1965
  %v1968 = vcvt.s32.f32 %v1961
  %v1969 = vmul.f32 %v1968, %v1966
  %v1970 = vxor.u32 %v1969, 2147483648
  %v1971 = vsel %vm1850, %v1970, %v1969
  %v1972 = vsub.s32 4, %v1948
  %v1973 = vsel %vm1850, %v1972, %v1948
  %v1974 = vsel %vm1849, %v44, %v1971
  %v1975 = vsel %vm1849, 0, %v1973
  %v1976 = vmul.f32 %v1974, %v1974
  %v1977 = vmul.f32 %v1976, -0.001358992
  %v1978 = vadd.f32 %v1977, 0.041655596
  %v1979 = vmul.f32 %v1976, %v1978
  %v1980 = vadd.f32 %v1979, -0.4999988
  %v1981 = vmul.f32 %v1976, %v1980
  %v1982 = vadd.f32 1.0, %v1981
  %v1983 = vmul.f32 %v1974, %v1974
  %v1984 = vmul.f32 %v1983, -0.00019511016
  %v1985 = vadd.f32 %v1984, 0.008332121
  %v1986 = vmul.f32 %v1983, %v1985
  %v1987 = vadd.f32 %v1986, -0.16666654
  %v1988 = vmul.f32 %v1983, %v1987
  %v1989 = vadd.f32 %v1988, 1.0
  %v1990 = vmul.f32 %v1989, %v1974
  %vm1991 = vweird.f32 %v44
  %v1992 = vand.u32 %v1975, 3
  %vm1993 = vcmp.lt.s32.totalorder %v1992, 2
  %vm1994 = vcmp.eq.s32.totalorder %v1992, 0
  %v1995 = vxor.u32 %v1990, 2147483648
  %v1996 = vsel %vm1994, %v1982, %v1995
  %vm1997 = vcmp.eq.s32.totalorder %v1992, 2
  %v1998 = vxor.u32 %v1982, 2147483648
  %v1999 = vsel %vm1997, %v1998, %v1990
  %v2000 = vsel %vm1993, %v1996, %v1999
  %v2001 = vsel %vm1991, nan, %v2000
  %v2002 = vand.u32 2147483647, %v45
  %vm2003 = vcmp.le.f32.partialorder %v2002, 0.7853982
  %vm2004 = vcmp.lt.s32.totalorder %v45, 0
  %v2005 = vand.u32 %v45, 2139095040
  %v2006 = vshrl.u32 %v2005, 23
  %v2007 = vsub.s32 %v2006, 127
  %v2008 = vand.u32 2147483647, %v45
  %v2009 = vand.u32 %v2008, 8388607
  %v2010 = vor.u32 %v2009, 8388608
  %v2011 = vsub.s32 0, %v2010
  %v2012 = vadd.s32 %v2007, 1
  %vm2013 = vcmp.gt.s32.totalorder %v2012, 0
  %v2014 = vsel %vm2013, %v2012, 0
  %v2015 = vshrl.u32 %v2014, 5
  %v2016 = vand.u32 %v2014, 31
  %v2017 = vsub.s32 32, %v2016
  %v2018 = vshrl.u32 683565275, %v2017
  %v2019 = vshll.u32 683565275, %v2016
  %v2020 = vshrl.u32 2475754826, %v2017
  %v2021 = vor.u32 %v2019, %v2020
  %v2022 = vshll.u32 2475754826, %v2016
  %v2023 = vshrl.u32 2131351028, %v2017
  %v2024 = vor.u32 %v2022, %v2023
  %v2025 = vshll.u32 2131351028, %v2016
  %v2026 = vshrl.u32 2102212464, %v2017
  %v2027 = vor.u32 %v2025, %v2026
  %v2028 = vshll.u32 2102212464, %v2016
  %v2029 = vshrl.u32 920167782, %v2017
  %v2030 = vor.u32 %v2028, %v2029
  %v2031 = vshll.u32 920167782, %v2016
  %v2032 = vshrl.u32 1326507024, %v2017
  %v2033 = vor.u32 %v2031, %v2032
  %vm2034 = vcmp.lt.s32.totalorder %v2015, 1
  %vm2035 = vcmp.lt.s32.totalorder %v2015, 2
  %vm2036 = vcmp.lt.s32.totalorder %v2015, 3
  %vm2037 = vcmp.lt.s32.totalorder %v2015, 4
  %v2038 = vsel %vm2034, %v2018, %v2021
  %v2039 = vsel %vm2037, %v2027, 2102212464
  %v2040 = vsel %vm2036, %v2024, %v2039
  %v2041 = vsel %vm2035, %v2038, %v2040
  %v2042 = vsel %vm2034, %v2021, %v2024
  %v2043 = vsel %vm2037, %v2030, 920167782
  %v2044 = vsel %vm2036, %v2027, %v2043
  %v2045 = vsel %vm2035, %v2042, %v2044
  %v2046 = vsel %vm2034, %v2024, %v2027
  %v2047 = vsel %vm2037, %v2033, 1326507024
  %v2048 = vsel %vm2036, %v2030, %v2047
  %v2049 = vsel %vm2035, %v2046, %v2048
  %v2050 = vshll.u32 %v2010, 8
  %v2051 = vand.u32 %v2050, 65535
  %v2052 = vshrl.u32 %v2050, 16
  %v2053 = vand.u32 %v2049, 65535
  %v2054 = vshrl.u32 %v2049, 16
  %v2055 = vmul.u32 %v2051, %v2053
  %v2056 = vmul.u32 %v2051, %v2054
  %v2057 = vmul.u32 %v2052, %v2053
  %v2058 = vmul.u32 %v2052, %v2054
  %v2059 = vshll.u32 %v2056, 16
  %v2060 = vshrl.u32 %v2056, 16
  %v2061 = vshll.u32 %v2057, 16
  %v2062 = vshrl.u32 %v2057, 16
  %vm2063 = vc.u32 %v2055, %v2059
  %v2064 = vsel %vm2063, 1, 0
  %v2065 = vadd.s32 %v2055, %v2059
  %v2066 = vadd.s32 %v2058, %v2064
  %vm2067 = vc.u32 %v2065, %v2061
  %v2068 = vsel %vm2067, 1, 0
  %v2069 = vadd.s32 %v2065, %v2061
  %v2070 = vadd.s32 %v2066, %v2068
  %v2071 = vadd.s32 %v2070, %v2060
  %v2072 = vadd.s32 %v2071, %v2062
  %v2073 = vand.u32 %v2050, 65535
  %v2074 = vshrl.u32 %v2050, 16
  %v2075 = vand.u32 %v2045, 65535
  %v2076 = vshrl.u32 %v2045, 16
  %v2077 = vmul.u32 %v2073, %v2075
  %v2078 = vmul.u32 %v2073, %v2076
  %v2079 = vmul.u32 %v2074, %v2075
  %v2080 = vmul.u32 %v2074, %v2076
  %v2081 = vshll.u32 %v2078, 16
  %v2082 = vshrl.u32 %v2078, 16
  %v2083 = vshll.u32 %v2079, 16
  %v2084 = vshrl.u32 %v2079, 16
  %vm2085 = vc.u32 %v2077, %v2081
  %v2086 = vsel %vm2085, 1, 0
  %v2087 = vadd.s32 %v2077, %v2081
  %v2088 = vadd.s32 %v2080, %v2086
  %vm2089 = vc.u32 %v2087, %v2083
  %v2090 = vsel %vm2089, 1, 0
  %v2091 = vadd.s32 %v2087, %v2083
  %v2092 = vadd.s32 %v2088, %v2090
  %v2093 = vadd.s32 %v2092, %v2082
  %v2094 = vadd.s32 %v2093, %v2084
  %v2095 = vmul.u32 %v2050, %v2041
  %v2096 = vadd.s32 %v2072, %v2091
  %vm2097 = vc.u32 %v2072, %v2091
  %v2098 = vadd.s32 %v2094, 1
  %v2099 = vsel %vm2097, %v2098, %v2094
  %v2100 = vadd.s32 %v2095, %v2099
  %v2101 = vadd.s32 %v2100, 536870912
  %v2102 = vshrl.u32 %v2101, 30
  %v2103 = vshll.u32 %v2102, 30
  %v2104 = vsub.s32 %v2100, %v2103
  %vm2105 = vcmp.lt.s32.totalorder %v2104, 0
  %v2106 = vsub.s32 0, %v2104
  %v2107 = vsel %vm2105, %v2106, %v2104
  %v2108 = vclz %v2107
  %v2109 = vsub.s32 %v2108, 2
  %vm2110 = vcmp.gt.s32.totalorder 0, %v2109
  %v2111 = vsel %vm2110, 0, %v2109
  %v2112 = vsub.s32 32, %v2111
  %v2113 = vshll.u32 %v2104, %v2111
  %v2114 = vshrl.u32 %v2096, %v2112
  %v2115 = vor.u32 %v2113, %v2114
  %v2116 = vsub.s32 4294967266, %v2111
  %v2117 = vadd.s32 %v2116, 127
  %v2118 = vshll.u32 %v2117, 23
  %v2119 = vor.u32 4788187, %v2118
  %v2120 = vand.u32 2147483647, %v2119
  %v2122 = vcvt.s32.f32 %v2115
  %v2123 = vmul.f32 %v2122, %v2120
  %v2124 = vxor.u32 %v2123, 2147483648
  %v2125 = vsel %vm2004, %v2124, %v2123
  %v2126 = vsub.s32 4, %v2102
  %v2127 = vsel %vm2004, %v2126, %v2102
  %v2128 = vsel %vm2003, %v45, %v2125
  %v2129 = vsel %vm2003, 0, %v2127
  %v2130 = vmul.f32 %v2128, %v2128
  %v2131 = vmul.f32 %v2130, -0.001358992
  %v2132 = vadd.f32 %v2131, 0.041655596
  %v2133 = vmul.f32 %v2130, %v2132
  %v2134 = vadd.f32 %v2133, -0.4999988
  %v2135 = vmul.f32 %v2130, %v2134
  %v2136 = vadd.f32 1.0, %v2135
  %v2137 = vmul.f32 %v2128, %v2128
  %v2138 = vmul.f32 %v2137, -0.00019511016
  %v2139 = vadd.f32 %v2138, 0.008332121
  %v2140 = vmul.f32 %v2137, %v2139
  %v2141 = vadd.f32 %v2140, -0.16666654
  %v2142 = vmul.f32 %v2137, %v2141
  %v2143 = vadd.f32 %v2142, 1.0
  %v2144 = vmul.f32 %v2143, %v2128
  %vm2145 = vweird.f32 %v45
  %v2146 = vand.u32 %v2129, 3
  %vm2147 = vcmp.lt.s32.totalorder %v2146, 2
  %vm2148 = vcmp.eq.s32.totalorder %v2146, 0
  %v2149 = vxor.u32 %v2144, 2147483648
  %v2150 = vsel %vm2148, %v2136, %v2149
  %vm2151 = vcmp.eq.s32.totalorder %v2146, 2
  %v2152 = vxor.u32 %v2136, 2147483648
  %v2153 = vsel %vm2151, %v2152, %v2144
  %v2154 = vsel %vm2147, %v2150, %v2153
  %v2155 = vsel %vm2145, nan, %v2154
  %v2156 = vand.u32 2147483647, %v46
  %vm2157 = vcmp.le.f32.partialorder %v2156, 0.7853982
  %vm2158 = vcmp.lt.s32.totalorder %v46, 0
  %v2159 = vand.u32 %v46, 2139095040
  %v2160 = vshrl.u32 %v2159, 23
  %v2161 = vsub.s32 %v2160, 127
  %v2162 = vand.u32 2147483647, %v46
  %v2163 = vand.u32 %v2162, 8388607
  %v2164 = vor.u32 %v2163, 8388608
  %v2165 = vsub.s32 0, %v2164
  %v2166 = vadd.s32 %v2161, 1
  %vm2167 = vcmp.gt.s32.totalorder %v2166, 0
  %v2168 = vsel %vm2167, %v2166, 0
  %v2169 = vshrl.u32 %v2168, 5
  %v2170 = vand.u32 %v2168, 31
  %v2171 = vsub.s32 32, %v2170
  %v2172 = vshrl.u32 683565275, %v2171
  %v2173 = vshll.u32 683565275, %v2170
  %v2174 = vshrl.u32 2475754826, %v2171
  %v2175 = vor.u32 %v2173, %v2174
  %v2176 = vshll.u32 2475754826, %v2170
  %v2177 = vshrl.u32 2131351028, %v2171
  %v2178 = vor.u32 %v2176, %v2177
  %v2179 = vshll.u32 2131351028, %v2170
  %v2180 = vshrl.u32 2102212464, %v2171
  %v2181 = vor.u32 %v2179, %v2180
  %v2182 = vshll.u32 2102212464, %v2170
  %v2183 = vshrl.u32 920167782, %v2171
  %v2184 = vor.u32 %v2182, %v2183
  %v2185 = vshll.u32 920167782, %v2170
  %v2186 = vshrl.u32 1326507024, %v2171
  %v2187 = vor.u32 %v2185, %v2186
  %vm2188 = vcmp.lt.s32.totalorder %v2169, 1
  %vm2189 = vcmp.lt.s32.totalorder %v2169, 2
  %vm2190 = vcmp.lt.s32.totalorder %v2169, 3
  %vm2191 = vcmp.lt.s32.totalorder %v2169, 4
  %v2192 = vsel %vm2188, %v2172, %v2175
  %v2193 = vsel %vm2191, %v2181, 2102212464
  %v2194 = vsel %vm2190, %v2178, %v2193
  %v2195 = vsel %vm2189, %v2192, %v2194
  %v2196 = vsel %vm2188, %v2175, %v2178
  %v2197 = vsel %vm2191, %v2184, 920167782
  %v2198 = vsel %vm2190, %v2181, %v2197
  %v2199 = vsel %vm2189, %v2196, %v2198
  %v2200 = vsel %vm2188, %v2178, %v2181
  %v2201 = vsel %vm2191, %v2187, 1326507024
  %v2202 = vsel %vm2190, %v2184, %v2201
  %v2203 = vsel %vm2189, %v2200, %v2202
  %v2204 = vshll.u32 %v2164, 8
  %v2205 = vand.u32 %v2204, 65535
  %v2206 = vshrl.u32 %v2204, 16
  %v2207 = vand.u32 %v2203, 65535
  %v2208 = vshrl.u32 %v2203, 16
  %v2209 = vmul.u32 %v2205, %v2207
  %v2210 = vmul.u32 %v2205, %v2208
  %v2211 = vmul.u32 %v2206, %v2207
  %v2212 = vmul.u32 %v2206, %v2208
  %v2213 = vshll.u32 %v2210, 16
  %v2214 = vshrl.u32 %v2210, 16
  %v2215 = vshll.u32 %v2211, 16
  %v2216 = vshrl.u32 %v2211, 16
  %vm2217 = vc.u32 %v2209, %v2213
  %v2218 = vsel %vm2217, 1, 0
  %v2219 = vadd.s32 %v2209, %v2213
  %v2220 = vadd.s32 %v2212, %v2218
  %vm2221 = vc.u32 %v2219, %v2215
  %v2222 = vsel %vm2221, 1, 0
  %v2223 = vadd.s32 %v2219, %v2215
  %v2224 = vadd.s32 %v2220, %v2222
  %v2225 = vadd.s32 %v2224, %v2214
  %v2226 = vadd.s32 %v2225, %v2216
  %v2227 = vand.u32 %v2204, 65535
  %v2228 = vshrl.u32 %v2204, 16
  %v2229 = vand.u32 %v2199, 65535
  %v2230 = vshrl.u32 %v2199, 16
  %v2231 = vmul.u32 %v2227, %v2229
  %v2232 = vmul.u32 %v2227, %v2230
  %v2233 = vmul.u32 %v2228, %v2229
  %v2234 = vmul.u32 %v2228, %v2230
  %v2235 = vshll.u32 %v2232, 16
  %v2236 = vshrl.u32 %v2232, 16
  %v2237 = vshll.u32 %v2233, 16
  %v2238 = vshrl.u32 %v2233, 16
  %vm2239 = vc.u32 %v2231, %v2235
  %v2240 = vsel %vm2239, 1, 0
  %v2241 = vadd.s32 %v2231, %v2235
  %v2242 = vadd.s32 %v2234, %v2240
  %vm2243 = vc.u32 %v2241, %v2237
  %v2244 = vsel %vm2243, 1, 0
  %v2245 = vadd.s32 %v2241, %v2237
  %v2246 = vadd.s32 %v2242, %v2244
  %v2247 = vadd.s32 %v2246, %v2236
  %v2248 = vadd.s32 %v2247, %v2238
  %v2249 = vmul.u32 %v2204, %v2195
  %v2250 = vadd.s32 %v2226, %v2245
  %vm2251 = vc.u32 %v2226, %v2245
  %v2252 = vadd.s32 %v2248, 1
  %v2253 = vsel %vm2251, %v2252, %v2248
  %v2254 = vadd.s32 %v2249, %v2253
  %v2255 = vadd.s32 %v2254, 536870912
  %v2256 = vshrl.u32 %v2255, 30
  %v2257 = vshll.u32 %v2256, 30
  %v2258 = vsub.s32 %v2254, %v2257
  %vm2259 = vcmp.lt.s32.totalorder %v2258, 0
  %v2260 = vsub.s32 0, %v2258
  %v2261 = vsel %vm2259, %v2260, %v2258
  %v2262 = vclz %v2261
  %v2263 = vsub.s32 %v2262, 2
  %vm2264 = vcmp.gt.s32.totalorder 0, %v2263
  %v2265 = vsel %vm2264, 0, %v2263
  %v2266 = vsub.s32 32, %v2265
  %v2267 = vshll.u32 %v2258, %v2265
  %v2268 = vshrl.u32 %v2250, %v2266
  %v2269 = vor.u32 %v2267, %v2268
  %v2270 = vsub.s32 4294967266, %v2265
  %v2271 = vadd.s32 %v2270, 127
  %v2272 = vshll.u32 %v2271, 23
  %v2273 = vor.u32 4788187, %v2272
  %v2274 = vand.u32 2147483647, %v2273
  %v2276 = vcvt.s32.f32 %v2269
  %v2277 = vmul.f32 %v2276, %v2274
  %v2278 = vxor.u32 %v2277, 2147483648
  %v2279 = vsel %vm2158, %v2278, %v2277
  %v2280 = vsub.s32 4, %v2256
  %v2281 = vsel %vm2158, %v2280, %v2256
  %v2282 = vsel %vm2157, %v46, %v2279
  %v2283 = vsel %vm2157, 0, %v2281
  %v2284 = vmul.f32 %v2282, %v2282
  %v2285 = vmul.f32 %v2284, -0.001358992
  %v2286 = vadd.f32 %v2285, 0.041655596
  %v2287 = vmul.f32 %v2284, %v2286
  %v2288 = vadd.f32 %v2287, -0.4999988
  %v2289 = vmul.f32 %v2284, %v2288
  %v2290 = vadd.f32 1.0, %v2289
  %v2291 = vmul.f32 %v2282, %v2282
  %v2292 = vmul.f32 %v2291, -0.00019511016
  %v2293 = vadd.f32 %v2292, 0.008332121
  %v2294 = vmul.f32 %v2291, %v2293
  %v2295 = vadd.f32 %v2294, -0.16666654
  %v2296 = vmul.f32 %v2291, %v2295
  %v2297 = vadd.f32 %v2296, 1.0
  %v2298 = vmul.f32 %v2297, %v2282
  %vm2299 = vweird.f32 %v46
  %v2300 = vand.u32 %v2283, 3
  %vm2301 = vcmp.lt.s32.totalorder %v2300, 2
  %vm2302 = vcmp.eq.s32.totalorder %v2300, 0
  %v2303 = vxor.u32 %v2298, 2147483648
  %v2304 = vsel %vm2302, %v2290, %v2303
  %vm2305 = vcmp.eq.s32.totalorder %v2300, 2
  %v2306 = vxor.u32 %v2290, 2147483648
  %v2307 = vsel %vm2305, %v2306, %v2298
  %v2308 = vsel %vm2301, %v2304, %v2307
  %v2309 = vsel %vm2299, nan, %v2308
  %v2310 = vand.u32 2147483647, %v47
  %vm2311 = vcmp.le.f32.partialorder %v2310, 0.7853982
  %vm2312 = vcmp.lt.s32.totalorder %v47, 0
  %v2313 = vand.u32 %v47, 2139095040
  %v2314 = vshrl.u32 %v2313, 23
  %v2315 = vsub.s32 %v2314, 127
  %v2316 = vand.u32 2147483647, %v47
  %v2317 = vand.u32 %v2316, 8388607
  %v2318 = vor.u32 %v2317, 8388608
  %v2319 = vsub.s32 0, %v2318
  %v2320 = vadd.s32 %v2315, 1
  %vm2321 = vcmp.gt.s32.totalorder %v2320, 0
  %v2322 = vsel %vm2321, %v2320, 0
  %v2323 = vshrl.u32 %v2322, 5
  %v2324 = vand.u32 %v2322, 31
  %v2325 = vsub.s32 32, %v2324
  %v2326 = vshrl.u32 683565275, %v2325
  %v2327 = vshll.u32 683565275, %v2324
  %v2328 = vshrl.u32 2475754826, %v2325
  %v2329 = vor.u32 %v2327, %v2328
  %v2330 = vshll.u32 2475754826, %v2324
  %v2331 = vshrl.u32 2131351028, %v2325
  %v2332 = vor.u32 %v2330, %v2331
  %v2333 = vshll.u32 2131351028, %v2324
  %v2334 = vshrl.u32 2102212464, %v2325
  %v2335 = vor.u32 %v2333, %v2334
  %v2336 = vshll.u32 2102212464, %v2324
  %v2337 = vshrl.u32 920167782, %v2325
  %v2338 = vor.u32 %v2336, %v2337
  %v2339 = vshll.u32 920167782, %v2324
  %v2340 = vshrl.u32 1326507024, %v2325
  %v2341 = vor.u32 %v2339, %v2340
  %vm2342 = vcmp.lt.s32.totalorder %v2323, 1
  %vm2343 = vcmp.lt.s32.totalorder %v2323, 2
  %vm2344 = vcmp.lt.s32.totalorder %v2323, 3
  %vm2345 = vcmp.lt.s32.totalorder %v2323, 4
  %v2346 = vsel %vm2342, %v2326, %v2329
  %v2347 = vsel %vm2345, %v2335, 2102212464
  %v2348 = vsel %vm2344, %v2332, %v2347
  %v2349 = vsel %vm2343, %v2346, %v2348
  %v2350 = vsel %vm2342, %v2329, %v2332
  %v2351 = vsel %vm2345, %v2338, 920167782
  %v2352 = vsel %vm2344, %v2335, %v2351
  %v2353 = vsel %vm2343, %v2350, %v2352
  %v2354 = vsel %vm2342, %v2332, %v2335
  %v2355 = vsel %vm2345, %v2341, 1326507024
  %v2356 = vsel %vm2344, %v2338, %v2355
  %v2357 = vsel %vm2343, %v2354, %v2356
  %v2358 = vshll.u32 %v2318, 8
  %v2359 = vand.u32 %v2358, 65535
  %v2360 = vshrl.u32 %v2358, 16
  %v2361 = vand.u32 %v2357, 65535
  %v2362 = vshrl.u32 %v2357, 16
  %v2363 = vmul.u32 %v2359, %v2361
  %v2364 = vmul.u32 %v2359, %v2362
  %v2365 = vmul.u32 %v2360, %v2361
  %v2366 = vmul.u32 %v2360, %v2362
  %v2367 = vshll.u32 %v2364, 16
  %v2368 = vshrl.u32 %v2364, 16
  %v2369 = vshll.u32 %v2365, 16
  %v2370 = vshrl.u32 %v2365, 16
  %vm2371 = vc.u32 %v2363, %v2367
  %v2372 = vsel %vm2371, 1, 0
  %v2373 = vadd.s32 %v2363, %v2367
  %v2374 = vadd.s32 %v2366, %v2372
  %vm2375 = vc.u32 %v2373, %v2369
  %v2376 = vsel %vm2375, 1, 0
  %v2377 = vadd.s32 %v2373, %v2369
  %v2378 = vadd.s32 %v2374, %v2376
  %v2379 = vadd.s32 %v2378, %v2368
  %v2380 = vadd.s32 %v2379, %v2370
  %v2381 = vand.u32 %v2358, 65535
  %v2382 = vshrl.u32 %v2358, 16
  %v2383 = vand.u32 %v2353, 65535
  %v2384 = vshrl.u32 %v2353, 16
  %v2385 = vmul.u32 %v2381, %v2383
  %v2386 = vmul.u32 %v2381, %v2384
  %v2387 = vmul.u32 %v2382, %v2383
  %v2388 = vmul.u32 %v2382, %v2384
  %v2389 = vshll.u32 %v2386, 16
  %v2390 = vshrl.u32 %v2386, 16
  %v2391 = vshll.u32 %v2387, 16
  %v2392 = vshrl.u32 %v2387, 16
  %vm2393 = vc.u32 %v2385, %v2389
  %v2394 = vsel %vm2393, 1, 0
  %v2395 = vadd.s32 %v2385, %v2389
  %v2396 = vadd.s32 %v2388, %v2394
  %vm2397 = vc.u32 %v2395, %v2391
  %v2398 = vsel %vm2397, 1, 0
  %v2399 = vadd.s32 %v2395, %v2391
  %v2400 = vadd.s32 %v2396, %v2398
  %v2401 = vadd.s32 %v2400, %v2390
  %v2402 = vadd.s32 %v2401, %v2392
  %v2403 = vmul.u32 %v2358, %v2349
  %v2404 = vadd.s32 %v2380, %v2399
  %vm2405 = vc.u32 %v2380, %v2399
  %v2406 = vadd.s32 %v2402, 1
  %v2407 = vsel %vm2405, %v2406, %v2402
  %v2408 = vadd.s32 %v2403, %v2407
  %v2409 = vadd.s32 %v2408, 536870912
  %v2410 = vshrl.u32 %v2409, 30
  %v2411 = vshll.u32 %v2410, 30
  %v2412 = vsub.s32 %v2408, %v2411
  %vm2413 = vcmp.lt.s32.totalorder %v2412, 0
  %v2414 = vsub.s32 0, %v2412
  %v2415 = vsel %vm2413, %v2414, %v2412
  %v2416 = vclz %v2415
  %v2417 = vsub.s32 %v2416, 2
  %vm2418 = vcmp.gt.s32.totalorder 0, %v2417
  %v2419 = vsel %vm2418, 0, %v2417
  %v2420 = vsub.s32 32, %v2419
  %v2421 = vshll.u32 %v2412, %v2419
  %v2422 = vshrl.u32 %v2404, %v2420
  %v2423 = vor.u32 %v2421, %v2422
  %v2424 = vsub.s32 4294967266, %v2419
  %v2425 = vadd.s32 %v2424, 127
  %v2426 = vshll.u32 %v2425, 23
  %v2427 = vor.u32 4788187, %v2426
  %v2428 = vand.u32 2147483647, %v2427
  %v2430 = vcvt.s32.f32 %v2423
  %v2431 = vmul.f32 %v2430, %v2428
  %v2432 = vxor.u32 %v2431, 2147483648
  %v2433 = vsel %vm2312, %v2432, %v2431
  %v2434 = vsub.s32 4, %v2410
  %v2435 = vsel %vm2312, %v2434, %v2410
  %v2436 = vsel %vm2311, %v47, %v2433
  %v2437 = vsel %vm2311, 0, %v2435
  %v2438 = vmul.f32 %v2436, %v2436
  %v2439 = vmul.f32 %v2438, -0.001358992
  %v2440 = vadd.f32 %v2439, 0.041655596
  %v2441 = vmul.f32 %v2438, %v2440
  %v2442 = vadd.f32 %v2441, -0.4999988
  %v2443 = vmul.f32 %v2438, %v2442
  %v2444 = vadd.f32 1.0, %v2443
  %v2445 = vmul.f32 %v2436, %v2436
  %v2446 = vmul.f32 %v2445, -0.00019511016
  %v2447 = vadd.f32 %v2446, 0.008332121
  %v2448 = vmul.f32 %v2445, %v2447
  %v2449 = vadd.f32 %v2448, -0.16666654
  %v2450 = vmul.f32 %v2445, %v2449
  %v2451 = vadd.f32 %v2450, 1.0
  %v2452 = vmul.f32 %v2451, %v2436
  %vm2453 = vweird.f32 %v47
  %v2454 = vand.u32 %v2437, 3
  %vm2455 = vcmp.lt.s32.totalorder %v2454, 2
  %vm2456 = vcmp.eq.s32.totalorder %v2454, 0
  %v2457 = vxor.u32 %v2452, 2147483648
  %v2458 = vsel %vm2456, %v2444, %v2457
  %vm2459 = vcmp.eq.s32.totalorder %v2454, 2
  %v2460 = vxor.u32 %v2444, 2147483648
  %v2461 = vsel %vm2459, %v2460, %v2452
  %v2462 = vsel %vm2455, %v2458, %v2461
  %v2463 = vsel %vm2453, nan, %v2462
  %v2464 = vand.u32 2147483647, %v48
  %vm2465 = vcmp.le.f32.partialorder %v2464, 0.7853982
  %vm2466 = vcmp.lt.s32.totalorder %v48, 0
  %v2467 = vand.u32 %v48, 2139095040
  %v2468 = vshrl.u32 %v2467, 23
  %v2469 = vsub.s32 %v2468, 127
  %v2470 = vand.u32 2147483647, %v48
  %v2471 = vand.u32 %v2470, 8388607
  %v2472 = vor.u32 %v2471, 8388608
  %v2473 = vsub.s32 0, %v2472
  %v2474 = vadd.s32 %v2469, 1
  %vm2475 = vcmp.gt.s32.totalorder %v2474, 0
  %v2476 = vsel %vm2475, %v2474, 0
  %v2477 = vshrl.u32 %v2476, 5
  %v2478 = vand.u32 %v2476, 31
  %v2479 = vsub.s32 32, %v2478
  %v2480 = vshrl.u32 683565275, %v2479
  %v2481 = vshll.u32 683565275, %v2478
  %v2482 = vshrl.u32 2475754826, %v2479
  %v2483 = vor.u32 %v2481, %v2482
  %v2484 = vshll.u32 2475754826, %v2478
  %v2485 = vshrl.u32 2131351028, %v2479
  %v2486 = vor.u32 %v2484, %v2485
  %v2487 = vshll.u32 2131351028, %v2478
  %v2488 = vshrl.u32 2102212464, %v2479
  %v2489 = vor.u32 %v2487, %v2488
  %v2490 = vshll.u32 2102212464, %v2478
  %v2491 = vshrl.u32 920167782, %v2479
  %v2492 = vor.u32 %v2490, %v2491
  %v2493 = vshll.u32 920167782, %v2478
  %v2494 = vshrl.u32 1326507024, %v2479
  %v2495 = vor.u32 %v2493, %v2494
  %vm2496 = vcmp.lt.s32.totalorder %v2477, 1
  %vm2497 = vcmp.lt.s32.totalorder %v2477, 2
  %vm2498 = vcmp.lt.s32.totalorder %v2477, 3
  %vm2499 = vcmp.lt.s32.totalorder %v2477, 4
  %v2500 = vsel %vm2496, %v2480, %v2483
  %v2501 = vsel %vm2499, %v2489, 2102212464
  %v2502 = vsel %vm2498, %v2486, %v2501
  %v2503 = vsel %vm2497, %v2500, %v2502
  %v2504 = vsel %vm2496, %v2483, %v2486
  %v2505 = vsel %vm2499, %v2492, 920167782
  %v2506 = vsel %vm2498, %v2489, %v2505
  %v2507 = vsel %vm2497, %v2504, %v2506
  %v2508 = vsel %vm2496, %v2486, %v2489
  %v2509 = vsel %vm2499, %v2495, 1326507024
  %v2510 = vsel %vm2498, %v2492, %v2509
  %v2511 = vsel %vm2497, %v2508, %v2510
  %v2512 = vshll.u32 %v2472, 8
  %v2513 = vand.u32 %v2512, 65535
  %v2514 = vshrl.u32 %v2512, 16
  %v2515 = vand.u32 %v2511, 65535
  %v2516 = vshrl.u32 %v2511, 16
  %v2517 = vmul.u32 %v2513, %v2515
  %v2518 = vmul.u32 %v2513, %v2516
  %v2519 = vmul.u32 %v2514, %v2515
  %v2520 = vmul.u32 %v2514, %v2516
  %v2521 = vshll.u32 %v2518, 16
  %v2522 = vshrl.u32 %v2518, 16
  %v2523 = vshll.u32 %v2519, 16
  %v2524 = vshrl.u32 %v2519, 16
  %vm2525 = vc.u32 %v2517, %v2521
  %v2526 = vsel %vm2525, 1, 0
  %v2527 = vadd.s32 %v2517, %v2521
  %v2528 = vadd.s32 %v2520, %v2526
  %vm2529 = vc.u32 %v2527, %v2523
  %v2530 = vsel %vm2529, 1, 0
  %v2531 = vadd.s32 %v2527, %v2523
  %v2532 = vadd.s32 %v2528, %v2530
  %v2533 = vadd.s32 %v2532, %v2522
  %v2534 = vadd.s32 %v2533, %v2524
  %v2535 = vand.u32 %v2512, 65535
  %v2536 = vshrl.u32 %v2512, 16
  %v2537 = vand.u32 %v2507, 65535
  %v2538 = vshrl.u32 %v2507, 16
  %v2539 = vmul.u32 %v2535, %v2537
  %v2540 = vmul.u32 %v2535, %v2538
  %v2541 = vmul.u32 %v2536, %v2537
  %v2542 = vmul.u32 %v2536, %v2538
  %v2543 = vshll.u32 %v2540, 16
  %v2544 = vshrl.u32 %v2540, 16
  %v2545 = vshll.u32 %v2541, 16
  %v2546 = vshrl.u32 %v2541, 16
  %vm2547 = vc.u32 %v2539, %v2543
  %v2548 = vsel %vm2547, 1, 0
  %v2549 = vadd.s32 %v2539, %v2543
  %v2550 = vadd.s32 %v2542, %v2548
  %vm2551 = vc.u32 %v2549, %v2545
  %v2552 = vsel %vm2551, 1, 0
  %v2553 = vadd.s32 %v2549, %v2545
  %v2554 = vadd.s32 %v2550, %v2552
  %v2555 = vadd.s32 %v2554, %v2544
  %v2556 = vadd.s32 %v2555, %v2546
  %v2557 = vmul.u32 %v2512, %v2503
  %v2558 = vadd.s32 %v2534, %v2553
  %vm2559 = vc.u32 %v2534, %v2553
  %v2560 = vadd.s32 %v2556, 1
  %v2561 = vsel %vm2559, %v2560, %v2556
  %v2562 = vadd.s32 %v2557, %v2561
  %v2563 = vadd.s32 %v2562, 536870912
  %v2564 = vshrl.u32 %v2563, 30
  %v2565 = vshll.u32 %v2564, 30
  %v2566 = vsub.s32 %v2562, %v2565
  %vm2567 = vcmp.lt.s32.totalorder %v2566, 0
  %v2568 = vsub.s32 0, %v2566
  %v2569 = vsel %vm2567, %v2568, %v2566
  %v2570 = vclz %v2569
  %v2571 = vsub.s32 %v2570, 2
  %vm2572 = vcmp.gt.s32.totalorder 0, %v2571
  %v2573 = vsel %vm2572, 0, %v2571
  %v2574 = vsub.s32 32, %v2573
  %v2575 = vshll.u32 %v2566, %v2573
  %v2576 = vshrl.u32 %v2558, %v2574
  %v2577 = vor.u32 %v2575, %v2576
  %v2578 = vsub.s32 4294967266, %v2573
  %v2579 = vadd.s32 %v2578, 127
  %v2580 = vshll.u32 %v2579, 23
  %v2581 = vor.u32 4788187, %v2580
  %v2582 = vand.u32 2147483647, %v2581
  %v2584 = vcvt.s32.f32 %v2577
  %v2585 = vmul.f32 %v2584, %v2582
  %v2586 = vxor.u32 %v2585, 2147483648
  %v2587 = vsel %vm2466, %v2586, %v2585
  %v2588 = vsub.s32 4, %v2564
  %v2589 = vsel %vm2466, %v2588, %v2564
  %v2590 = vsel %vm2465, %v48, %v2587
  %v2591 = vsel %vm2465, 0, %v2589
  %v2592 = vmul.f32 %v2590, %v2590
  %v2593 = vmul.f32 %v2592, -0.001358992
  %v2594 = vadd.f32 %v2593, 0.041655596
  %v2595 = vmul.f32 %v2592, %v2594
  %v2596 = vadd.f32 %v2595, -0.4999988
  %v2597 = vmul.f32 %v2592, %v2596
  %v2598 = vadd.f32 1.0, %v2597
  %v2599 = vmul.f32 %v2590, %v2590
  %v2600 = vmul.f32 %v2599, -0.00019511016
  %v2601 = vadd.f32 %v2600, 0.008332121
  %v2602 = vmul.f32 %v2599, %v2601
  %v2603 = vadd.f32 %v2602, -0.16666654
  %v2604 = vmul.f32 %v2599, %v2603
  %v2605 = vadd.f32 %v2604, 1.0
  %v2606 = vmul.f32 %v2605, %v2590
  %vm2607 = vweird.f32 %v48
  %v2608 = vand.u32 %v2591, 3
  %vm2609 = vcmp.lt.s32.totalorder %v2608, 2
  %vm2610 = vcmp.eq.s32.totalorder %v2608, 0
  %v2611 = vxor.u32 %v2606, 2147483648
  %v2612 = vsel %vm2610, %v2598, %v2611
  %vm2613 = vcmp.eq.s32.totalorder %v2608, 2
  %v2614 = vxor.u32 %v2598, 2147483648
  %v2615 = vsel %vm2613, %v2614, %v2606
  %v2616 = vsel %vm2609, %v2612, %v2615
  %v2617 = vsel %vm2607, nan, %v2616
  %2618 = vxpose.xlu0.b32.start [1/16] %v1539, 128
  %2619 = vxpose.xlu0.b32.cont [2/16] %v1847, 128
  %2620 = vxpose.xlu0.b32.cont [3/16] %v2155, 128
  %2621 = vxpose.xlu0.b32.cont [4/16] %v2463, 128
  %2622 = vxpose.xlu0.b32.cont [5/16] 0.0, 128
  %2623 = vxpose.xlu0.b32.cont [6/16] 0.0, 128
  %2624 = vxpose.xlu0.b32.cont [7/16] 0.0, 128
  %2625 = vxpose.xlu0.b32.cont [8/16] 0.0, 128
  %2626 = vxpose.xlu0.b32.cont [9/16] 0.0, 128
  %2627 = vxpose.xlu0.b32.cont [10/16] 0.0, 128
  %2628 = vxpose.xlu0.b32.cont [11/16] 0.0, 128
  %2629 = vxpose.xlu0.b32.cont [12/16] 0.0, 128
  %2630 = vxpose.xlu0.b32.cont [13/16] 0.0, 128
  %2631 = vxpose.xlu0.b32.cont [14/16] 0.0, 128
  %2632 = vxpose.xlu0.b32.cont [15/16] 0.0, 128
  %2633 = vxpose.xlu0.b32.end [16/16] 0.0, 128
  %v2634 = vpop.trf.xlu0
  %v2635 = vpop.trf.xlu0
  %v2636 = vpop.trf.xlu0
  %v2637 = vpop.trf.xlu0
  %v2638 = vpop.trf.xlu0
  %v2639 = vpop.trf.xlu0
  %v2640 = vpop.trf.xlu0
  %v2641 = vpop.trf.xlu0
  %v2642 = vpop.trf.xlu0
  %v2643 = vpop.trf.xlu0
  %v2644 = vpop.trf.xlu0
  %v2645 = vpop.trf.xlu0
  %v2646 = vpop.trf.xlu0
  %v2647 = vpop.trf.xlu0
  %v2648 = vpop.trf.xlu0
  %v2649 = vpop.trf.xlu0
  %2650 = vxpose.xlu0.b32.start [1/16] %v1693, 128
  %2651 = vxpose.xlu0.b32.cont [2/16] %v2001, 128
  %2652 = vxpose.xlu0.b32.cont [3/16] %v2309, 128
  %2653 = vxpose.xlu0.b32.cont [4/16] %v2617, 128
  %2654 = vxpose.xlu0.b32.cont [5/16] 0.0, 128
  %2655 = vxpose.xlu0.b32.cont [6/16] 0.0, 128
  %2656 = vxpose.xlu0.b32.cont [7/16] 0.0, 128
  %2657 = vxpose.xlu0.b32.cont [8/16] 0.0, 128
  %2658 = vxpose.xlu0.b32.cont [9/16] 0.0, 128
  %2659 = vxpose.xlu0.b32.cont [10/16] 0.0, 128
  %2660 = vxpose.xlu0.b32.cont [11/16] 0.0, 128
  %2661 = vxpose.xlu0.b32.cont [12/16] 0.0, 128
  %2662 = vxpose.xlu0.b32.cont [13/16] 0.0, 128
  %2663 = vxpose.xlu0.b32.cont [14/16] 0.0, 128
  %2664 = vxpose.xlu0.b32.cont [15/16] 0.0, 128
  %2665 = vxpose.xlu0.b32.end [16/16] 0.0, 128
  %v2666 = vpop.trf.xlu0
  %v2667 = vpop.trf.xlu0
  %v2668 = vpop.trf.xlu0
  %v2669 = vpop.trf.xlu0
  %v2670 = vpop.trf.xlu0
  %v2671 = vpop.trf.xlu0
  %v2672 = vpop.trf.xlu0
  %v2673 = vpop.trf.xlu0
  %v2674 = vpop.trf.xlu0
  %v2675 = vpop.trf.xlu0
  %v2676 = vpop.trf.xlu0
  %v2677 = vpop.trf.xlu0
  %v2678 = vpop.trf.xlu0
  %v2679 = vpop.trf.xlu0
  %v2680 = vpop.trf.xlu0
  %v2681 = vpop.trf.xlu0
  %2714 = vrot.lane.b32.xlu0 %v2634, 32
  %v2715 = vpop.permute.xlu0 %2714
  %2716 = vrot.lane.b32.xlu0 %v2635, 32
  %v2717 = vpop.permute.xlu0 %2716
  %2718 = vrot.lane.b32.xlu0 %v2636, 32
  %v2719 = vpop.permute.xlu0 %2718
  %2720 = vrot.lane.b32.xlu0 %v2637, 32
  %v2721 = vpop.permute.xlu0 %2720
  %2722 = vrot.lane.b32.xlu0 %v2638, 32
  %v2723 = vpop.permute.xlu0 %2722
  %2724 = vrot.lane.b32.xlu0 %v2639, 32
  %v2725 = vpop.permute.xlu0 %2724
  %2726 = vrot.lane.b32.xlu0 %v2640, 32
  %v2727 = vpop.permute.xlu0 %2726
  %2728 = vrot.lane.b32.xlu0 %v2641, 32
  %v2729 = vpop.permute.xlu0 %2728
  %2730 = vrot.lane.b32.xlu0 %v2642, 32
  %v2731 = vpop.permute.xlu0 %2730
  %2732 = vrot.lane.b32.xlu0 %v2643, 32
  %v2733 = vpop.permute.xlu0 %2732
  %2734 = vrot.lane.b32.xlu0 %v2644, 32
  %v2735 = vpop.permute.xlu0 %2734
  %2736 = vrot.lane.b32.xlu0 %v2645, 32
  %v2737 = vpop.permute.xlu0 %2736
  %2738 = vrot.lane.b32.xlu0 %v2646, 32
  %v2739 = vpop.permute.xlu0 %2738
  %2740 = vrot.lane.b32.xlu0 %v2647, 32
  %v2741 = vpop.permute.xlu0 %2740
  %2742 = vrot.lane.b32.xlu0 %v2648, 32
  %v2743 = vpop.permute.xlu0 %2742
  %2744 = vrot.lane.b32.xlu0 %v2649, 32
  %v2745 = vpop.permute.xlu0 %2744
  %2746 = vrot.lane.b32.xlu0 %v2666, 32
  %v2747 = vpop.permute.xlu0 %2746
  %2748 = vrot.lane.b32.xlu0 %v2667, 32
  %v2749 = vpop.permute.xlu0 %2748
  %2750 = vrot.lane.b32.xlu0 %v2668, 32
  %v2751 = vpop.permute.xlu0 %2750
  %2752 = vrot.lane.b32.xlu0 %v2669, 32
  %v2753 = vpop.permute.xlu0 %2752
  %2754 = vrot.lane.b32.xlu0 %v2670, 32
  %v2755 = vpop.permute.xlu0 %2754
  %2756 = vrot.lane.b32.xlu0 %v2671, 32
  %v2757 = vpop.permute.xlu0 %2756
  %2758 = vrot.lane.b32.xlu0 %v2672, 32
  %v2759 = vpop.permute.xlu0 %2758
  %2760 = vrot.lane.b32.xlu0 %v2673, 32
  %v2761 = vpop.permute.xlu0 %2760
  %2762 = vrot.lane.b32.xlu0 %v2674, 32
  %v2763 = vpop.permute.xlu0 %2762
  %2764 = vrot.lane.b32.xlu0 %v2675, 32
  %v2765 = vpop.permute.xlu0 %2764
  %2766 = vrot.lane.b32.xlu0 %v2676, 32
  %v2767 = vpop.permute.xlu0 %2766
  %2768 = vrot.lane.b32.xlu0 %v2677, 32
  %v2769 = vpop.permute.xlu0 %2768
  %2770 = vrot.lane.b32.xlu0 %v2678, 32
  %v2771 = vpop.permute.xlu0 %2770
  %2772 = vrot.lane.b32.xlu0 %v2679, 32
  %v2773 = vpop.permute.xlu0 %2772
  %2774 = vrot.lane.b32.xlu0 %v2680, 32
  %v2775 = vpop.permute.xlu0 %2774
  %2776 = vrot.lane.b32.xlu0 %v2681, 32
  %v2777 = vpop.permute.xlu0 %2776
  %vm2810 = vcmask 523520
  %2811 = vst.msk [vmem:[%s2] sm:$0xff] %vm2810, %v2715
  %2812 = vst.msk [vmem:[%s2 + $0x8] sm:$0xff] %vm2810, %v2717
  %2813 = vst.msk [vmem:[%s2 + $0x10] sm:$0xff] %vm2810, %v2719
  %2814 = vst.msk [vmem:[%s2 + $0x18] sm:$0xff] %vm2810, %v2721
  %2815 = vst.msk [vmem:[%s2 + $0x20] sm:$0xff] %vm2810, %v2723
  %2816 = vst.msk [vmem:[%s2 + $0x28] sm:$0xff] %vm2810, %v2725
  %2817 = vst.msk [vmem:[%s2 + $0x30] sm:$0xff] %vm2810, %v2727
  %2818 = vst.msk [vmem:[%s2 + $0x38] sm:$0xff] %vm2810, %v2729
  %2819 = vst.msk [vmem:[%s2 + $0x40] sm:$0xff] %vm2810, %v2731
  %2820 = vst.msk [vmem:[%s2 + $0x48] sm:$0xff] %vm2810, %v2733
  %2821 = vst.msk [vmem:[%s2 + $0x50] sm:$0xff] %vm2810, %v2735
  %2822 = vst.msk [vmem:[%s2 + $0x58] sm:$0xff] %vm2810, %v2737
  %2823 = vst.msk [vmem:[%s2 + $0x60] sm:$0xff] %vm2810, %v2739
  %2824 = vst.msk [vmem:[%s2 + $0x68] sm:$0xff] %vm2810, %v2741
  %2825 = vst.msk [vmem:[%s2 + $0x70] sm:$0xff] %vm2810, %v2743
  %2826 = vst.msk [vmem:[%s2 + $0x78] sm:$0xff] %vm2810, %v2745
  %2827 = vst.msk [vmem:[%s2 + $0x80] sm:$0xff] %vm2810, %v2747
  %2828 = vst.msk [vmem:[%s2 + $0x88] sm:$0xff] %vm2810, %v2749
  %2829 = vst.msk [vmem:[%s2 + $0x90] sm:$0xff] %vm2810, %v2751
  %2830 = vst.msk [vmem:[%s2 + $0x98] sm:$0xff] %vm2810, %v2753
  %2831 = vst.msk [vmem:[%s2 + $0xa0] sm:$0xff] %vm2810, %v2755
  %2832 = vst.msk [vmem:[%s2 + $0xa8] sm:$0xff] %vm2810, %v2757
  %2833 = vst.msk [vmem:[%s2 + $0xb0] sm:$0xff] %vm2810, %v2759
  %2834 = vst.msk [vmem:[%s2 + $0xb8] sm:$0xff] %vm2810, %v2761
  %2835 = vst.msk [vmem:[%s2 + $0xc0] sm:$0xff] %vm2810, %v2763
  %2836 = vst.msk [vmem:[%s2 + $0xc8] sm:$0xff] %vm2810, %v2765
  %2837 = vst.msk [vmem:[%s2 + $0xd0] sm:$0xff] %vm2810, %v2767
  %2838 = vst.msk [vmem:[%s2 + $0xd8] sm:$0xff] %vm2810, %v2769
  %2839 = vst.msk [vmem:[%s2 + $0xe0] sm:$0xff] %vm2810, %v2771
  %2840 = vst.msk [vmem:[%s2 + $0xe8] sm:$0xff] %vm2810, %v2773
  %2841 = vst.msk [vmem:[%s2 + $0xf0] sm:$0xff] %vm2810, %v2775
  %2842 = vst.msk [vmem:[%s2 + $0xf8] sm:$0xff] %vm2810, %v2777
  // Predicated region
  $region10: #{tpu_custom_call.1} parent=0 // pred_check
    _
  $region11: #{tpu_custom_call.1} parent=0 // pred_check_branch
    %2844 = sbr.rel (0) target = $region13
  $region12: #{tpu_custom_call.1} parent=0 // pred_region
    _
  $region13: #{tpu_custom_call.1} parent=0 // pred_fallthru
    _
  // Predicated region
  $region14: #{tpu_custom_call.1} parent=0 // pred_check
    _
  $region15: #{tpu_custom_call.1} parent=0 // pred_check_branch
    %2846 = sbr.rel (0) target = $region17
  $region16: #{tpu_custom_call.1} parent=0 // pred_region
    _
  $region17: #{tpu_custom_call.1} parent=0 // pred_fallthru
    _

// kernel: run.1
$region0: #{run.1}
  #allocation0 [shape = 'u32[]', space=smem, size = 0x4, offset = 0x4, fixed_abs, tag = 'smem constant byte address 0x4 - core index']
  #allocation1 [shape = 'u32[72,128]{1,0:T(1,128)}', space=vmem, size = 0x9000, scoped, tag = 'internal scratch']
  %s0 = inlined_call_operand.vmem [shape: f32[32,1], index: 0, kind: input, shape index: {}]
  %s1 = inlined_call_operand.vmem [shape: f32[1,8], index: 1, kind: input, shape index: {}]
  %s2 = inlined_call_operand.vmem [shape: f32[64,8], index: 2, kind: output, shape index: {}]
  %s3 = sld [smem:[#allocation0]]
  $region18: #{run.1} parent=0
    _
  %s5 = ssub.s32 1, %s3
  %s6 = scalar_select 0, %s5, %s3
  // Predicated region
  $region2: #{run.1} parent=0 // pred_check
    _
  $region3: #{run.1} parent=0 // pred_check_branch
    %8 = sbr.rel (0) target = $region5
  $region4: #{run.1} parent=0 // pred_region
    _
  $region5: #{run.1} parent=0 // pred_fallthru
    _
  // Predicated region
  $region6: #{run.1} parent=0 // pred_check
    _
  $region7: #{run.1} parent=0 // pred_check_branch
    %10 = sbr.rel (0) target = $region9
  $region8: #{run.1} parent=0 // pred_region
    _
  $region9: #{run.1} parent=0 // pred_fallthru
    _
  %v11 = vld [vmem:[%s0] sm:$0xff]
  %v12 = vld [vmem:[%s0 + $0x8] sm:$0xff]
  %v13 = vld [vmem:[%s0 + $0x10] sm:$0xff]
  %v14 = vld [vmem:[%s0 + $0x18] sm:$0xff]
  %v15 = vld [vmem:[%s1] sm:$0x1]
  %17 = vset.pattern.permute.xlu0 0
  %18 = vperm.xlu0 %17, %v11
  %v19 = vpop.permute.xlu0 %18
  %22 = vset.pattern.permute.xlu0 0
  %23 = vperm.xlu0 %22, %v12
  %v24 = vpop.permute.xlu0 %23
  %27 = vset.pattern.permute.xlu0 0
  %28 = vperm.xlu0 %27, %v13
  %v29 = vpop.permute.xlu0 %28
  %32 = vset.pattern.permute.xlu0 0
  %33 = vperm.xlu0 %32, %v14
  %v34 = vpop.permute.xlu0 %33
  %v37 = vperm.slane %v15, 0
  %v39 = vmul.f32 %v19, %v37
  %v40 = vmul.f32 %v24, %v37
  %v41 = vmul.f32 %v29, %v37
  %v42 = vmul.f32 %v34, %v37
  %v43 = vand.u32 2147483647, %v39
  %vm44 = vcmp.le.f32.partialorder %v43, 0.7853982
  %vm45 = vcmp.lt.s32.totalorder %v39, 0
  %v46 = vand.u32 %v39, 2139095040
  %v47 = vshrl.u32 %v46, 23
  %v48 = vsub.s32 %v47, 127
  %v49 = vand.u32 2147483647, %v39
  %v50 = vand.u32 %v49, 8388607
  %v51 = vor.u32 %v50, 8388608
  %v52 = vsub.s32 0, %v51
  %v53 = vadd.s32 %v48, 1
  %vm54 = vcmp.gt.s32.totalorder %v53, 0
  %v55 = vsel %vm54, %v53, 0
  %v56 = vshrl.u32 %v55, 5
  %v57 = vand.u32 %v55, 31
  %v58 = vsub.s32 32, %v57
  %v59 = vshrl.u32 683565275, %v58
  %v60 = vshll.u32 683565275, %v57
  %v61 = vshrl.u32 2475754826, %v58
  %v62 = vor.u32 %v60, %v61
  %v63 = vshll.u32 2475754826, %v57
  %v64 = vshrl.u32 2131351028, %v58
  %v65 = vor.u32 %v63, %v64
  %v66 = vshll.u32 2131351028, %v57
  %v67 = vshrl.u32 2102212464, %v58
  %v68 = vor.u32 %v66, %v67
  %v69 = vshll.u32 2102212464, %v57
  %v70 = vshrl.u32 920167782, %v58
  %v71 = vor.u32 %v69, %v70
  %v72 = vshll.u32 920167782, %v57
  %v73 = vshrl.u32 1326507024, %v58
  %v74 = vor.u32 %v72, %v73
  %vm75 = vcmp.lt.s32.totalorder %v56, 1
  %vm76 = vcmp.lt.s32.totalorder %v56, 2
  %vm77 = vcmp.lt.s32.totalorder %v56, 3
  %vm78 = vcmp.lt.s32.totalorder %v56, 4
  %v79 = vsel %vm75, %v59, %v62
  %v80 = vsel %vm78, %v68, 2102212464
  %v81 = vsel %vm77, %v65, %v80
  %v82 = vsel %vm76, %v79, %v81
  %v83 = vsel %vm75, %v62, %v65
  %v84 = vsel %vm78, %v71, 920167782
  %v85 = vsel %vm77, %v68, %v84
  %v86 = vsel %vm76, %v83, %v85
  %v87 = vsel %vm75, %v65, %v68
  %v88 = vsel %vm78, %v74, 1326507024
  %v89 = vsel %vm77, %v71, %v88
  %v90 = vsel %vm76, %v87, %v89
  %v91 = vshll.u32 %v51, 8
  %v92 = vand.u32 %v91, 65535
  %v93 = vshrl.u32 %v91, 16
  %v94 = vand.u32 %v90, 65535
  %v95 = vshrl.u32 %v90, 16
  %v96 = vmul.u32 %v92, %v94
  %v97 = vmul.u32 %v92, %v95
  %v98 = vmul.u32 %v93, %v94
  %v99 = vmul.u32 %v93, %v95
  %v100 = vshll.u32 %v97, 16
  %v101 = vshrl.u32 %v97, 16
  %v102 = vshll.u32 %v98, 16
  %v103 = vshrl.u32 %v98, 16
  %vm104 = vc.u32 %v96, %v100
  %v105 = vsel %vm104, 1, 0
  %v106 = vadd.s32 %v96, %v100
  %v107 = vadd.s32 %v99, %v105
  %vm108 = vc.u32 %v106, %v102
  %v109 = vsel %vm108, 1, 0
  %v110 = vadd.s32 %v106, %v102
  %v111 = vadd.s32 %v107, %v109
  %v112 = vadd.s32 %v111, %v101
  %v113 = vadd.s32 %v112, %v103
  %v114 = vand.u32 %v91, 65535
  %v115 = vshrl.u32 %v91, 16
  %v116 = vand.u32 %v86, 65535
  %v117 = vshrl.u32 %v86, 16
  %v118 = vmul.u32 %v114, %v116
  %v119 = vmul.u32 %v114, %v117
  %v120 = vmul.u32 %v115, %v116
  %v121 = vmul.u32 %v115, %v117
  %v122 = vshll.u32 %v119, 16
  %v123 = vshrl.u32 %v119, 16
  %v124 = vshll.u32 %v120, 16
  %v125 = vshrl.u32 %v120, 16
  %vm126 = vc.u32 %v118, %v122
  %v127 = vsel %vm126, 1, 0
  %v128 = vadd.s32 %v118, %v122
  %v129 = vadd.s32 %v121, %v127
  %vm130 = vc.u32 %v128, %v124
  %v131 = vsel %vm130, 1, 0
  %v132 = vadd.s32 %v128, %v124
  %v133 = vadd.s32 %v129, %v131
  %v134 = vadd.s32 %v133, %v123
  %v135 = vadd.s32 %v134, %v125
  %v136 = vmul.u32 %v91, %v82
  %v137 = vadd.s32 %v113, %v132
  %vm138 = vc.u32 %v113, %v132
  %v139 = vadd.s32 %v135, 1
  %v140 = vsel %vm138, %v139, %v135
  %v141 = vadd.s32 %v136, %v140
  %v142 = vadd.s32 %v141, 536870912
  %v143 = vshrl.u32 %v142, 30
  %v144 = vshll.u32 %v143, 30
  %v145 = vsub.s32 %v141, %v144
  %vm146 = vcmp.lt.s32.totalorder %v145, 0
  %v147 = vsub.s32 0, %v145
  %v148 = vsel %vm146, %v147, %v145
  %v149 = vclz %v148
  %v150 = vsub.s32 %v149, 2
  %vm151 = vcmp.gt.s32.totalorder 0, %v150
  %v152 = vsel %vm151, 0, %v150
  %v153 = vsub.s32 32, %v152
  %v154 = vshll.u32 %v145, %v152
  %v155 = vshrl.u32 %v137, %v153
  %v156 = vor.u32 %v154, %v155
  %v157 = vsub.s32 4294967266, %v152
  %v158 = vadd.s32 %v157, 127
  %v159 = vshll.u32 %v158, 23
  %v160 = vor.u32 4788187, %v159
  %v161 = vand.u32 2147483647, %v160
  %v163 = vcvt.s32.f32 %v156
  %v164 = vmul.f32 %v163, %v161
  %v165 = vxor.u32 %v164, 2147483648
  %v166 = vsel %vm45, %v165, %v164
  %v167 = vsub.s32 4, %v143
  %v168 = vsel %vm45, %v167, %v143
  %v169 = vsel %vm44, %v39, %v166
  %v170 = vsel %vm44, 0, %v168
  %v171 = vmul.f32 %v169, %v169
  %v172 = vmul.f32 %v171, -0.001358992
  %v173 = vadd.f32 %v172, 0.041655596
  %v174 = vmul.f32 %v171, %v173
  %v175 = vadd.f32 %v174, -0.4999988
  %v176 = vmul.f32 %v171, %v175
  %v177 = vadd.f32 1.0, %v176
  %v178 = vmul.f32 %v169, %v169
  %v179 = vmul.f32 %v178, -0.00019511016
  %v180 = vadd.f32 %v179, 0.008332121
  %v181 = vmul.f32 %v178, %v180
  %v182 = vadd.f32 %v181, -0.16666654
  %v183 = vmul.f32 %v178, %v182
  %v184 = vadd.f32 %v183, 1.0
  %v185 = vmul.f32 %v184, %v169
  %vm186 = vweird.f32 %v39
  %v187 = vadd.s32 %v170, 3
  %v188 = vand.u32 %v187, 3
  %vm189 = vcmp.lt.s32.totalorder %v188, 2
  %vm190 = vcmp.eq.s32.totalorder %v188, 0
  %v191 = vxor.u32 %v185, 2147483648
  %v192 = vsel %vm190, %v177, %v191
  %vm193 = vcmp.eq.s32.totalorder %v188, 2
  %v194 = vxor.u32 %v177, 2147483648
  %v195 = vsel %vm193, %v194, %v185
  %v196 = vsel %vm189, %v192, %v195
  %v197 = vsel %vm186, nan, %v196
  %v198 = vand.u32 2147483647, %v40
  %vm199 = vcmp.le.f32.partialorder %v198, 0.7853982
  %vm200 = vcmp.lt.s32.totalorder %v40, 0
  %v201 = vand.u32 %v40, 2139095040
  %v202 = vshrl.u32 %v201, 23
  %v203 = vsub.s32 %v202, 127
  %v204 = vand.u32 2147483647, %v40
  %v205 = vand.u32 %v204, 8388607
  %v206 = vor.u32 %v205, 8388608
  %v207 = vsub.s32 0, %v206
  %v208 = vadd.s32 %v203, 1
  %vm209 = vcmp.gt.s32.totalorder %v208, 0
  %v210 = vsel %vm209, %v208, 0
  %v211 = vshrl.u32 %v210, 5
  %v212 = vand.u32 %v210, 31
  %v213 = vsub.s32 32, %v212
  %v214 = vshrl.u32 683565275, %v213
  %v215 = vshll.u32 683565275, %v212
  %v216 = vshrl.u32 2475754826, %v213
  %v217 = vor.u32 %v215, %v216
  %v218 = vshll.u32 2475754826, %v212
  %v219 = vshrl.u32 2131351028, %v213
  %v220 = vor.u32 %v218, %v219
  %v221 = vshll.u32 2131351028, %v212
  %v222 = vshrl.u32 2102212464, %v213
  %v223 = vor.u32 %v221, %v222
  %v224 = vshll.u32 2102212464, %v212
  %v225 = vshrl.u32 920167782, %v213
  %v226 = vor.u32 %v224, %v225
  %v227 = vshll.u32 920167782, %v212
  %v228 = vshrl.u32 1326507024, %v213
  %v229 = vor.u32 %v227, %v228
  %vm230 = vcmp.lt.s32.totalorder %v211, 1
  %vm231 = vcmp.lt.s32.totalorder %v211, 2
  %vm232 = vcmp.lt.s32.totalorder %v211, 3
  %vm233 = vcmp.lt.s32.totalorder %v211, 4
  %v234 = vsel %vm230, %v214, %v217
  %v235 = vsel %vm233, %v223, 2102212464
  %v236 = vsel %vm232, %v220, %v235
  %v237 = vsel %vm231, %v234, %v236
  %v238 = vsel %vm230, %v217, %v220
  %v239 = vsel %vm233, %v226, 920167782
  %v240 = vsel %vm232, %v223, %v239
  %v241 = vsel %vm231, %v238, %v240
  %v242 = vsel %vm230, %v220, %v223
  %v243 = vsel %vm233, %v229, 1326507024
  %v244 = vsel %vm232, %v226, %v243
  %v245 = vsel %vm231, %v242, %v244
  %v246 = vshll.u32 %v206, 8
  %v247 = vand.u32 %v246, 65535
  %v248 = vshrl.u32 %v246, 16
  %v249 = vand.u32 %v245, 65535
  %v250 = vshrl.u32 %v245, 16
  %v251 = vmul.u32 %v247, %v249
  %v252 = vmul.u32 %v247, %v250
  %v253 = vmul.u32 %v248, %v249
  %v254 = vmul.u32 %v248, %v250
  %v255 = vshll.u32 %v252, 16
  %v256 = vshrl.u32 %v252, 16
  %v257 = vshll.u32 %v253, 16
  %v258 = vshrl.u32 %v253, 16
  %vm259 = vc.u32 %v251, %v255
  %v260 = vsel %vm259, 1, 0
  %v261 = vadd.s32 %v251, %v255
  %v262 = vadd.s32 %v254, %v260
  %vm263 = vc.u32 %v261, %v257
  %v264 = vsel %vm263, 1, 0
  %v265 = vadd.s32 %v261, %v257
  %v266 = vadd.s32 %v262, %v264
  %v267 = vadd.s32 %v266, %v256
  %v268 = vadd.s32 %v267, %v258
  %v269 = vand.u32 %v246, 65535
  %v270 = vshrl.u32 %v246, 16
  %v271 = vand.u32 %v241, 65535
  %v272 = vshrl.u32 %v241, 16
  %v273 = vmul.u32 %v269, %v271
  %v274 = vmul.u32 %v269, %v272
  %v275 = vmul.u32 %v270, %v271
  %v276 = vmul.u32 %v270, %v272
  %v277 = vshll.u32 %v274, 16
  %v278 = vshrl.u32 %v274, 16
  %v279 = vshll.u32 %v275, 16
  %v280 = vshrl.u32 %v275, 16
  %vm281 = vc.u32 %v273, %v277
  %v282 = vsel %vm281, 1, 0
  %v283 = vadd.s32 %v273, %v277
  %v284 = vadd.s32 %v276, %v282
  %vm285 = vc.u32 %v283, %v279
  %v286 = vsel %vm285, 1, 0
  %v287 = vadd.s32 %v283, %v279
  %v288 = vadd.s32 %v284, %v286
  %v289 = vadd.s32 %v288, %v278
  %v290 = vadd.s32 %v289, %v280
  %v291 = vmul.u32 %v246, %v237
  %v292 = vadd.s32 %v268, %v287
  %vm293 = vc.u32 %v268, %v287
  %v294 = vadd.s32 %v290, 1
  %v295 = vsel %vm293, %v294, %v290
  %v296 = vadd.s32 %v291, %v295
  %v297 = vadd.s32 %v296, 536870912
  %v298 = vshrl.u32 %v297, 30
  %v299 = vshll.u32 %v298, 30
  %v300 = vsub.s32 %v296, %v299
  %vm301 = vcmp.lt.s32.totalorder %v300, 0
  %v302 = vsub.s32 0, %v300
  %v303 = vsel %vm301, %v302, %v300
  %v304 = vclz %v303
  %v305 = vsub.s32 %v304, 2
  %vm306 = vcmp.gt.s32.totalorder 0, %v305
  %v307 = vsel %vm306, 0, %v305
  %v308 = vsub.s32 32, %v307
  %v309 = vshll.u32 %v300, %v307
  %v310 = vshrl.u32 %v292, %v308
  %v311 = vor.u32 %v309, %v310
  %v312 = vsub.s32 4294967266, %v307
  %v313 = vadd.s32 %v312, 127
  %v314 = vshll.u32 %v313, 23
  %v315 = vor.u32 4788187, %v314
  %v316 = vand.u32 2147483647, %v315
  %v318 = vcvt.s32.f32 %v311
  %v319 = vmul.f32 %v318, %v316
  %v320 = vxor.u32 %v319, 2147483648
  %v321 = vsel %vm200, %v320, %v319
  %v322 = vsub.s32 4, %v298
  %v323 = vsel %vm200, %v322, %v298
  %v324 = vsel %vm199, %v40, %v321
  %v325 = vsel %vm199, 0, %v323
  %v326 = vmul.f32 %v324, %v324
  %v327 = vmul.f32 %v326, -0.001358992
  %v328 = vadd.f32 %v327, 0.041655596
  %v329 = vmul.f32 %v326, %v328
  %v330 = vadd.f32 %v329, -0.4999988
  %v331 = vmul.f32 %v326, %v330
  %v332 = vadd.f32 1.0, %v331
  %v333 = vmul.f32 %v324, %v324
  %v334 = vmul.f32 %v333, -0.00019511016
  %v335 = vadd.f32 %v334, 0.008332121
  %v336 = vmul.f32 %v333, %v335
  %v337 = vadd.f32 %v336, -0.16666654
  %v338 = vmul.f32 %v333, %v337
  %v339 = vadd.f32 %v338, 1.0
  %v340 = vmul.f32 %v339, %v324
  %vm341 = vweird.f32 %v40
  %v342 = vadd.s32 %v325, 3
  %v343 = vand.u32 %v342, 3
  %vm344 = vcmp.lt.s32.totalorder %v343, 2
  %vm345 = vcmp.eq.s32.totalorder %v343, 0
  %v346 = vxor.u32 %v340, 2147483648
  %v347 = vsel %vm345, %v332, %v346
  %vm348 = vcmp.eq.s32.totalorder %v343, 2
  %v349 = vxor.u32 %v332, 2147483648
  %v350 = vsel %vm348, %v349, %v340
  %v351 = vsel %vm344, %v347, %v350
  %v352 = vsel %vm341, nan, %v351
  %v353 = vand.u32 2147483647, %v41
  %vm354 = vcmp.le.f32.partialorder %v353, 0.7853982
  %vm355 = vcmp.lt.s32.totalorder %v41, 0
  %v356 = vand.u32 %v41, 2139095040
  %v357 = vshrl.u32 %v356, 23
  %v358 = vsub.s32 %v357, 127
  %v359 = vand.u32 2147483647, %v41
  %v360 = vand.u32 %v359, 8388607
  %v361 = vor.u32 %v360, 8388608
  %v362 = vsub.s32 0, %v361
  %v363 = vadd.s32 %v358, 1
  %vm364 = vcmp.gt.s32.totalorder %v363, 0
  %v365 = vsel %vm364, %v363, 0
  %v366 = vshrl.u32 %v365, 5
  %v367 = vand.u32 %v365, 31
  %v368 = vsub.s32 32, %v367
  %v369 = vshrl.u32 683565275, %v368
  %v370 = vshll.u32 683565275, %v367
  %v371 = vshrl.u32 2475754826, %v368
  %v372 = vor.u32 %v370, %v371
  %v373 = vshll.u32 2475754826, %v367
  %v374 = vshrl.u32 2131351028, %v368
  %v375 = vor.u32 %v373, %v374
  %v376 = vshll.u32 2131351028, %v367
  %v377 = vshrl.u32 2102212464, %v368
  %v378 = vor.u32 %v376, %v377
  %v379 = vshll.u32 2102212464, %v367
  %v380 = vshrl.u32 920167782, %v368
  %v381 = vor.u32 %v379, %v380
  %v382 = vshll.u32 920167782, %v367
  %v383 = vshrl.u32 1326507024, %v368
  %v384 = vor.u32 %v382, %v383
  %vm385 = vcmp.lt.s32.totalorder %v366, 1
  %vm386 = vcmp.lt.s32.totalorder %v366, 2
  %vm387 = vcmp.lt.s32.totalorder %v366, 3
  %vm388 = vcmp.lt.s32.totalorder %v366, 4
  %v389 = vsel %vm385, %v369, %v372
  %v390 = vsel %vm388, %v378, 2102212464
  %v391 = vsel %vm387, %v375, %v390
  %v392 = vsel %vm386, %v389, %v391
  %v393 = vsel %vm385, %v372, %v375
  %v394 = vsel %vm388, %v381, 920167782
  %v395 = vsel %vm387, %v378, %v394
  %v396 = vsel %vm386, %v393, %v395
  %v397 = vsel %vm385, %v375, %v378
  %v398 = vsel %vm388, %v384, 1326507024
  %v399 = vsel %vm387, %v381, %v398
  %v400 = vsel %vm386, %v397, %v399
  %v401 = vshll.u32 %v361, 8
  %v402 = vand.u32 %v401, 65535
  %v403 = vshrl.u32 %v401, 16
  %v404 = vand.u32 %v400, 65535
  %v405 = vshrl.u32 %v400, 16
  %v406 = vmul.u32 %v402, %v404
  %v407 = vmul.u32 %v402, %v405
  %v408 = vmul.u32 %v403, %v404
  %v409 = vmul.u32 %v403, %v405
  %v410 = vshll.u32 %v407, 16
  %v411 = vshrl.u32 %v407, 16
  %v412 = vshll.u32 %v408, 16
  %v413 = vshrl.u32 %v408, 16
  %vm414 = vc.u32 %v406, %v410
  %v415 = vsel %vm414, 1, 0
  %v416 = vadd.s32 %v406, %v410
  %v417 = vadd.s32 %v409, %v415
  %vm418 = vc.u32 %v416, %v412
  %v419 = vsel %vm418, 1, 0
  %v420 = vadd.s32 %v416, %v412
  %v421 = vadd.s32 %v417, %v419
  %v422 = vadd.s32 %v421, %v411
  %v423 = vadd.s32 %v422, %v413
  %v424 = vand.u32 %v401, 65535
  %v425 = vshrl.u32 %v401, 16
  %v426 = vand.u32 %v396, 65535
  %v427 = vshrl.u32 %v396, 16
  %v428 = vmul.u32 %v424, %v426
  %v429 = vmul.u32 %v424, %v427
  %v430 = vmul.u32 %v425, %v426
  %v431 = vmul.u32 %v425, %v427
  %v432 = vshll.u32 %v429, 16
  %v433 = vshrl.u32 %v429, 16
  %v434 = vshll.u32 %v430, 16
  %v435 = vshrl.u32 %v430, 16
  %vm436 = vc.u32 %v428, %v432
  %v437 = vsel %vm436, 1, 0
  %v438 = vadd.s32 %v428, %v432
  %v439 = vadd.s32 %v431, %v437
  %vm440 = vc.u32 %v438, %v434
  %v441 = vsel %vm440, 1, 0
  %v442 = vadd.s32 %v438, %v434
  %v443 = vadd.s32 %v439, %v441
  %v444 = vadd.s32 %v443, %v433
  %v445 = vadd.s32 %v444, %v435
  %v446 = vmul.u32 %v401, %v392
  %v447 = vadd.s32 %v423, %v442
  %vm448 = vc.u32 %v423, %v442
  %v449 = vadd.s32 %v445, 1
  %v450 = vsel %vm448, %v449, %v445
  %v451 = vadd.s32 %v446, %v450
  %v452 = vadd.s32 %v451, 536870912
  %v453 = vshrl.u32 %v452, 30
  %v454 = vshll.u32 %v453, 30
  %v455 = vsub.s32 %v451, %v454
  %vm456 = vcmp.lt.s32.totalorder %v455, 0
  %v457 = vsub.s32 0, %v455
  %v458 = vsel %vm456, %v457, %v455
  %v459 = vclz %v458
  %v460 = vsub.s32 %v459, 2
  %vm461 = vcmp.gt.s32.totalorder 0, %v460
  %v462 = vsel %vm461, 0, %v460
  %v463 = vsub.s32 32, %v462
  %v464 = vshll.u32 %v455, %v462
  %v465 = vshrl.u32 %v447, %v463
  %v466 = vor.u32 %v464, %v465
  %v467 = vsub.s32 4294967266, %v462
  %v468 = vadd.s32 %v467, 127
  %v469 = vshll.u32 %v468, 23
  %v470 = vor.u32 4788187, %v469
  %v471 = vand.u32 2147483647, %v470
  %v473 = vcvt.s32.f32 %v466
  %v474 = vmul.f32 %v473, %v471
  %v475 = vxor.u32 %v474, 2147483648
  %v476 = vsel %vm355, %v475, %v474
  %v477 = vsub.s32 4, %v453
  %v478 = vsel %vm355, %v477, %v453
  %v479 = vsel %vm354, %v41, %v476
  %v480 = vsel %vm354, 0, %v478
  %v481 = vmul.f32 %v479, %v479
  %v482 = vmul.f32 %v481, -0.001358992
  %v483 = vadd.f32 %v482, 0.041655596
  %v484 = vmul.f32 %v481, %v483
  %v485 = vadd.f32 %v484, -0.4999988
  %v486 = vmul.f32 %v481, %v485
  %v487 = vadd.f32 1.0, %v486
  %v488 = vmul.f32 %v479, %v479
  %v489 = vmul.f32 %v488, -0.00019511016
  %v490 = vadd.f32 %v489, 0.008332121
  %v491 = vmul.f32 %v488, %v490
  %v492 = vadd.f32 %v491, -0.16666654
  %v493 = vmul.f32 %v488, %v492
  %v494 = vadd.f32 %v493, 1.0
  %v495 = vmul.f32 %v494, %v479
  %vm496 = vweird.f32 %v41
  %v497 = vadd.s32 %v480, 3
  %v498 = vand.u32 %v497, 3
  %vm499 = vcmp.lt.s32.totalorder %v498, 2
  %vm500 = vcmp.eq.s32.totalorder %v498, 0
  %v501 = vxor.u32 %v495, 2147483648
  %v502 = vsel %vm500, %v487, %v501
  %vm503 = vcmp.eq.s32.totalorder %v498, 2
  %v504 = vxor.u32 %v487, 2147483648
  %v505 = vsel %vm503, %v504, %v495
  %v506 = vsel %vm499, %v502, %v505
  %v507 = vsel %vm496, nan, %v506
  %v508 = vand.u32 2147483647, %v42
  %vm509 = vcmp.le.f32.partialorder %v508, 0.7853982
  %vm510 = vcmp.lt.s32.totalorder %v42, 0
  %v511 = vand.u32 %v42, 2139095040
  %v512 = vshrl.u32 %v511, 23
  %v513 = vsub.s32 %v512, 127
  %v514 = vand.u32 2147483647, %v42
  %v515 = vand.u32 %v514, 8388607
  %v516 = vor.u32 %v515, 8388608
  %v517 = vsub.s32 0, %v516
  %v518 = vadd.s32 %v513, 1
  %vm519 = vcmp.gt.s32.totalorder %v518, 0
  %v520 = vsel %vm519, %v518, 0
  %v521 = vshrl.u32 %v520, 5
  %v522 = vand.u32 %v520, 31
  %v523 = vsub.s32 32, %v522
  %v524 = vshrl.u32 683565275, %v523
  %v525 = vshll.u32 683565275, %v522
  %v526 = vshrl.u32 2475754826, %v523
  %v527 = vor.u32 %v525, %v526
  %v528 = vshll.u32 2475754826, %v522
  %v529 = vshrl.u32 2131351028, %v523
  %v530 = vor.u32 %v528, %v529
  %v531 = vshll.u32 2131351028, %v522
  %v532 = vshrl.u32 2102212464, %v523
  %v533 = vor.u32 %v531, %v532
  %v534 = vshll.u32 2102212464, %v522
  %v535 = vshrl.u32 920167782, %v523
  %v536 = vor.u32 %v534, %v535
  %v537 = vshll.u32 920167782, %v522
  %v538 = vshrl.u32 1326507024, %v523
  %v539 = vor.u32 %v537, %v538
  %vm540 = vcmp.lt.s32.totalorder %v521, 1
  %vm541 = vcmp.lt.s32.totalorder %v521, 2
  %vm542 = vcmp.lt.s32.totalorder %v521, 3
  %vm543 = vcmp.lt.s32.totalorder %v521, 4
  %v544 = vsel %vm540, %v524, %v527
  %v545 = vsel %vm543, %v533, 2102212464
  %v546 = vsel %vm542, %v530, %v545
  %v547 = vsel %vm541, %v544, %v546
  %v548 = vsel %vm540, %v527, %v530
  %v549 = vsel %vm543, %v536, 920167782
  %v550 = vsel %vm542, %v533, %v549
  %v551 = vsel %vm541, %v548, %v550
  %v552 = vsel %vm540, %v530, %v533
  %v553 = vsel %vm543, %v539, 1326507024
  %v554 = vsel %vm542, %v536, %v553
  %v555 = vsel %vm541, %v552, %v554
  %v556 = vshll.u32 %v516, 8
  %v557 = vand.u32 %v556, 65535
  %v558 = vshrl.u32 %v556, 16
  %v559 = vand.u32 %v555, 65535
  %v560 = vshrl.u32 %v555, 16
  %v561 = vmul.u32 %v557, %v559
  %v562 = vmul.u32 %v557, %v560
  %v563 = vmul.u32 %v558, %v559
  %v564 = vmul.u32 %v558, %v560
  %v565 = vshll.u32 %v562, 16
  %v566 = vshrl.u32 %v562, 16
  %v567 = vshll.u32 %v563, 16
  %v568 = vshrl.u32 %v563, 16
  %vm569 = vc.u32 %v561, %v565
  %v570 = vsel %vm569, 1, 0
  %v571 = vadd.s32 %v561, %v565
  %v572 = vadd.s32 %v564, %v570
  %vm573 = vc.u32 %v571, %v567
  %v574 = vsel %vm573, 1, 0
  %v575 = vadd.s32 %v571, %v567
  %v576 = vadd.s32 %v572, %v574
  %v577 = vadd.s32 %v576, %v566
  %v578 = vadd.s32 %v577, %v568
  %v579 = vand.u32 %v556, 65535
  %v580 = vshrl.u32 %v556, 16
  %v581 = vand.u32 %v551, 65535
  %v582 = vshrl.u32 %v551, 16
  %v583 = vmul.u32 %v579, %v581
  %v584 = vmul.u32 %v579, %v582
  %v585 = vmul.u32 %v580, %v581
  %v586 = vmul.u32 %v580, %v582
  %v587 = vshll.u32 %v584, 16
  %v588 = vshrl.u32 %v584, 16
  %v589 = vshll.u32 %v585, 16
  %v590 = vshrl.u32 %v585, 16
  %vm591 = vc.u32 %v583, %v587
  %v592 = vsel %vm591, 1, 0
  %v593 = vadd.s32 %v583, %v587
  %v594 = vadd.s32 %v586, %v592
  %vm595 = vc.u32 %v593, %v589
  %v596 = vsel %vm595, 1, 0
  %v597 = vadd.s32 %v593, %v589
  %v598 = vadd.s32 %v594, %v596
  %v599 = vadd.s32 %v598, %v588
  %v600 = vadd.s32 %v599, %v590
  %v601 = vmul.u32 %v556, %v547
  %v602 = vadd.s32 %v578, %v597
  %vm603 = vc.u32 %v578, %v597
  %v604 = vadd.s32 %v600, 1
  %v605 = vsel %vm603, %v604, %v600
  %v606 = vadd.s32 %v601, %v605
  %v607 = vadd.s32 %v606, 536870912
  %v608 = vshrl.u32 %v607, 30
  %v609 = vshll.u32 %v608, 30
  %v610 = vsub.s32 %v606, %v609
  %vm611 = vcmp.lt.s32.totalorder %v610, 0
  %v612 = vsub.s32 0, %v610
  %v613 = vsel %vm611, %v612, %v610
  %v614 = vclz %v613
  %v615 = vsub.s32 %v614, 2
  %vm616 = vcmp.gt.s32.totalorder 0, %v615
  %v617 = vsel %vm616, 0, %v615
  %v618 = vsub.s32 32, %v617
  %v619 = vshll.u32 %v610, %v617
  %v620 = vshrl.u32 %v602, %v618
  %v621 = vor.u32 %v619, %v620
  %v622 = vsub.s32 4294967266, %v617
  %v623 = vadd.s32 %v622, 127
  %v624 = vshll.u32 %v623, 23
  %v625 = vor.u32 4788187, %v624
  %v626 = vand.u32 2147483647, %v625
  %v628 = vcvt.s32.f32 %v621
  %v629 = vmul.f32 %v628, %v626
  %v630 = vxor.u32 %v629, 2147483648
  %v631 = vsel %vm510, %v630, %v629
  %v632 = vsub.s32 4, %v608
  %v633 = vsel %vm510, %v632, %v608
  %v634 = vsel %vm509, %v42, %v631
  %v635 = vsel %vm509, 0, %v633
  %v636 = vmul.f32 %v634, %v634
  %v637 = vmul.f32 %v636, -0.001358992
  %v638 = vadd.f32 %v637, 0.041655596
  %v639 = vmul.f32 %v636, %v638
  %v640 = vadd.f32 %v639, -0.4999988
  %v641 = vmul.f32 %v636, %v640
  %v642 = vadd.f32 1.0, %v641
  %v643 = vmul.f32 %v634, %v634
  %v644 = vmul.f32 %v643, -0.00019511016
  %v645 = vadd.f32 %v644, 0.008332121
  %v646 = vmul.f32 %v643, %v645
  %v647 = vadd.f32 %v646, -0.16666654
  %v648 = vmul.f32 %v643, %v647
  %v649 = vadd.f32 %v648, 1.0
  %v650 = vmul.f32 %v649, %v634
  %vm651 = vweird.f32 %v42
  %v652 = vadd.s32 %v635, 3
  %v653 = vand.u32 %v652, 3
  %vm654 = vcmp.lt.s32.totalorder %v653, 2
  %vm655 = vcmp.eq.s32.totalorder %v653, 0
  %v656 = vxor.u32 %v650, 2147483648
  %v657 = vsel %vm655, %v642, %v656
  %vm658 = vcmp.eq.s32.totalorder %v653, 2
  %v659 = vxor.u32 %v642, 2147483648
  %v660 = vsel %vm658, %v659, %v650
  %v661 = vsel %vm654, %v657, %v660
  %v662 = vsel %vm651, nan, %v661
  %663 = vst [vmem:[%s2] sm:$0xff] %v197
  %664 = vst [vmem:[%s2 + $0x8] sm:$0xff] %v352
  %665 = vst [vmem:[%s2 + $0x10] sm:$0xff] %v507
  %666 = vst [vmem:[%s2 + $0x18] sm:$0xff] %v662
  %v667 = vand.u32 2147483647, %v39
  %vm668 = vcmp.le.f32.partialorder %v667, 0.7853982
  %vm669 = vcmp.lt.s32.totalorder %v39, 0
  %v670 = vand.u32 %v39, 2139095040
  %v671 = vshrl.u32 %v670, 23
  %v672 = vsub.s32 %v671, 127
  %v673 = vand.u32 2147483647, %v39
  %v674 = vand.u32 %v673, 8388607
  %v675 = vor.u32 %v674, 8388608
  %v676 = vsub.s32 0, %v675
  %v677 = vadd.s32 %v672, 1
  %vm678 = vcmp.gt.s32.totalorder %v677, 0
  %v679 = vsel %vm678, %v677, 0
  %v680 = vshrl.u32 %v679, 5
  %v681 = vand.u32 %v679, 31
  %v682 = vsub.s32 32, %v681
  %v683 = vshrl.u32 683565275, %v682
  %v684 = vshll.u32 683565275, %v681
  %v685 = vshrl.u32 2475754826, %v682
  %v686 = vor.u32 %v684, %v685
  %v687 = vshll.u32 2475754826, %v681
  %v688 = vshrl.u32 2131351028, %v682
  %v689 = vor.u32 %v687, %v688
  %v690 = vshll.u32 2131351028, %v681
  %v691 = vshrl.u32 2102212464, %v682
  %v692 = vor.u32 %v690, %v691
  %v693 = vshll.u32 2102212464, %v681
  %v694 = vshrl.u32 920167782, %v682
  %v695 = vor.u32 %v693, %v694
  %v696 = vshll.u32 920167782, %v681
  %v697 = vshrl.u32 1326507024, %v682
  %v698 = vor.u32 %v696, %v697
  %vm699 = vcmp.lt.s32.totalorder %v680, 1
  %vm700 = vcmp.lt.s32.totalorder %v680, 2
  %vm701 = vcmp.lt.s32.totalorder %v680, 3
  %vm702 = vcmp.lt.s32.totalorder %v680, 4
  %v703 = vsel %vm699, %v683, %v686
  %v704 = vsel %vm702, %v692, 2102212464
  %v705 = vsel %vm701, %v689, %v704
  %v706 = vsel %vm700, %v703, %v705
  %v707 = vsel %vm699, %v686, %v689
  %v708 = vsel %vm702, %v695, 920167782
  %v709 = vsel %vm701, %v692, %v708
  %v710 = vsel %vm700, %v707, %v709
  %v711 = vsel %vm699, %v689, %v692
  %v712 = vsel %vm702, %v698, 1326507024
  %v713 = vsel %vm701, %v695, %v712
  %v714 = vsel %vm700, %v711, %v713
  %v715 = vshll.u32 %v675, 8
  %v716 = vand.u32 %v715, 65535
  %v717 = vshrl.u32 %v715, 16
  %v718 = vand.u32 %v714, 65535
  %v719 = vshrl.u32 %v714, 16
  %v720 = vmul.u32 %v716, %v718
  %v721 = vmul.u32 %v716, %v719
  %v722 = vmul.u32 %v717, %v718
  %v723 = vmul.u32 %v717, %v719
  %v724 = vshll.u32 %v721, 16
  %v725 = vshrl.u32 %v721, 16
  %v726 = vshll.u32 %v722, 16
  %v727 = vshrl.u32 %v722, 16
  %vm728 = vc.u32 %v720, %v724
  %v729 = vsel %vm728, 1, 0
  %v730 = vadd.s32 %v720, %v724
  %v731 = vadd.s32 %v723, %v729
  %vm732 = vc.u32 %v730, %v726
  %v733 = vsel %vm732, 1, 0
  %v734 = vadd.s32 %v730, %v726
  %v735 = vadd.s32 %v731, %v733
  %v736 = vadd.s32 %v735, %v725
  %v737 = vadd.s32 %v736, %v727
  %v738 = vand.u32 %v715, 65535
  %v739 = vshrl.u32 %v715, 16
  %v740 = vand.u32 %v710, 65535
  %v741 = vshrl.u32 %v710, 16
  %v742 = vmul.u32 %v738, %v740
  %v743 = vmul.u32 %v738, %v741
  %v744 = vmul.u32 %v739, %v740
  %v745 = vmul.u32 %v739, %v741
  %v746 = vshll.u32 %v743, 16
  %v747 = vshrl.u32 %v743, 16
  %v748 = vshll.u32 %v744, 16
  %v749 = vshrl.u32 %v744, 16
  %vm750 = vc.u32 %v742, %v746
  %v751 = vsel %vm750, 1, 0
  %v752 = vadd.s32 %v742, %v746
  %v753 = vadd.s32 %v745, %v751
  %vm754 = vc.u32 %v752, %v748
  %v755 = vsel %vm754, 1, 0
  %v756 = vadd.s32 %v752, %v748
  %v757 = vadd.s32 %v753, %v755
  %v758 = vadd.s32 %v757, %v747
  %v759 = vadd.s32 %v758, %v749
  %v760 = vmul.u32 %v715, %v706
  %v761 = vadd.s32 %v737, %v756
  %vm762 = vc.u32 %v737, %v756
  %v763 = vadd.s32 %v759, 1
  %v764 = vsel %vm762, %v763, %v759
  %v765 = vadd.s32 %v760, %v764
  %v766 = vadd.s32 %v765, 536870912
  %v767 = vshrl.u32 %v766, 30
  %v768 = vshll.u32 %v767, 30
  %v769 = vsub.s32 %v765, %v768
  %vm770 = vcmp.lt.s32.totalorder %v769, 0
  %v771 = vsub.s32 0, %v769
  %v772 = vsel %vm770, %v771, %v769
  %v773 = vclz %v772
  %v774 = vsub.s32 %v773, 2
  %vm775 = vcmp.gt.s32.totalorder 0, %v774
  %v776 = vsel %vm775, 0, %v774
  %v777 = vsub.s32 32, %v776
  %v778 = vshll.u32 %v769, %v776
  %v779 = vshrl.u32 %v761, %v777
  %v780 = vor.u32 %v778, %v779
  %v781 = vsub.s32 4294967266, %v776
  %v782 = vadd.s32 %v781, 127
  %v783 = vshll.u32 %v782, 23
  %v784 = vor.u32 4788187, %v783
  %v785 = vand.u32 2147483647, %v784
  %v787 = vcvt.s32.f32 %v780
  %v788 = vmul.f32 %v787, %v785
  %v789 = vxor.u32 %v788, 2147483648
  %v790 = vsel %vm669, %v789, %v788
  %v791 = vsub.s32 4, %v767
  %v792 = vsel %vm669, %v791, %v767
  %v793 = vsel %vm668, %v39, %v790
  %v794 = vsel %vm668, 0, %v792
  %v795 = vmul.f32 %v793, %v793
  %v796 = vmul.f32 %v795, -0.001358992
  %v797 = vadd.f32 %v796, 0.041655596
  %v798 = vmul.f32 %v795, %v797
  %v799 = vadd.f32 %v798, -0.4999988
  %v800 = vmul.f32 %v795, %v799
  %v801 = vadd.f32 1.0, %v800
  %v802 = vmul.f32 %v793, %v793
  %v803 = vmul.f32 %v802, -0.00019511016
  %v804 = vadd.f32 %v803, 0.008332121
  %v805 = vmul.f32 %v802, %v804
  %v806 = vadd.f32 %v805, -0.16666654
  %v807 = vmul.f32 %v802, %v806
  %v808 = vadd.f32 %v807, 1.0
  %v809 = vmul.f32 %v808, %v793
  %vm810 = vweird.f32 %v39
  %v811 = vand.u32 %v794, 3
  %vm812 = vcmp.lt.s32.totalorder %v811, 2
  %vm813 = vcmp.eq.s32.totalorder %v811, 0
  %v814 = vxor.u32 %v809, 2147483648
  %v815 = vsel %vm813, %v801, %v814
  %vm816 = vcmp.eq.s32.totalorder %v811, 2
  %v817 = vxor.u32 %v801, 2147483648
  %v818 = vsel %vm816, %v817, %v809
  %v819 = vsel %vm812, %v815, %v818
  %v820 = vsel %vm810, nan, %v819
  %v821 = vand.u32 2147483647, %v40
  %vm822 = vcmp.le.f32.partialorder %v821, 0.7853982
  %vm823 = vcmp.lt.s32.totalorder %v40, 0
  %v824 = vand.u32 %v40, 2139095040
  %v825 = vshrl.u32 %v824, 23
  %v826 = vsub.s32 %v825, 127
  %v827 = vand.u32 2147483647, %v40
  %v828 = vand.u32 %v827, 8388607
  %v829 = vor.u32 %v828, 8388608
  %v830 = vsub.s32 0, %v829
  %v831 = vadd.s32 %v826, 1
  %vm832 = vcmp.gt.s32.totalorder %v831, 0
  %v833 = vsel %vm832, %v831, 0
  %v834 = vshrl.u32 %v833, 5
  %v835 = vand.u32 %v833, 31
  %v836 = vsub.s32 32, %v835
  %v837 = vshrl.u32 683565275, %v836
  %v838 = vshll.u32 683565275, %v835
  %v839 = vshrl.u32 2475754826, %v836
  %v840 = vor.u32 %v838, %v839
  %v841 = vshll.u32 2475754826, %v835
  %v842 = vshrl.u32 2131351028, %v836
  %v843 = vor.u32 %v841, %v842
  %v844 = vshll.u32 2131351028, %v835
  %v845 = vshrl.u32 2102212464, %v836
  %v846 = vor.u32 %v844, %v845
  %v847 = vshll.u32 2102212464, %v835
  %v848 = vshrl.u32 920167782, %v836
  %v849 = vor.u32 %v847, %v848
  %v850 = vshll.u32 920167782, %v835
  %v851 = vshrl.u32 1326507024, %v836
  %v852 = vor.u32 %v850, %v851
  %vm853 = vcmp.lt.s32.totalorder %v834, 1
  %vm854 = vcmp.lt.s32.totalorder %v834, 2
  %vm855 = vcmp.lt.s32.totalorder %v834, 3
  %vm856 = vcmp.lt.s32.totalorder %v834, 4
  %v857 = vsel %vm853, %v837, %v840
  %v858 = vsel %vm856, %v846, 2102212464
  %v859 = vsel %vm855, %v843, %v858
  %v860 = vsel %vm854, %v857, %v859
  %v861 = vsel %vm853, %v840, %v843
  %v862 = vsel %vm856, %v849, 920167782
  %v863 = vsel %vm855, %v846, %v862
  %v864 = vsel %vm854, %v861, %v863
  %v865 = vsel %vm853, %v843, %v846
  %v866 = vsel %vm856, %v852, 1326507024
  %v867 = vsel %vm855, %v849, %v866
  %v868 = vsel %vm854, %v865, %v867
  %v869 = vshll.u32 %v829, 8
  %v870 = vand.u32 %v869, 65535
  %v871 = vshrl.u32 %v869, 16
  %v872 = vand.u32 %v868, 65535
  %v873 = vshrl.u32 %v868, 16
  %v874 = vmul.u32 %v870, %v872
  %v875 = vmul.u32 %v870, %v873
  %v876 = vmul.u32 %v871, %v872
  %v877 = vmul.u32 %v871, %v873
  %v878 = vshll.u32 %v875, 16
  %v879 = vshrl.u32 %v875, 16
  %v880 = vshll.u32 %v876, 16
  %v881 = vshrl.u32 %v876, 16
  %vm882 = vc.u32 %v874, %v878
  %v883 = vsel %vm882, 1, 0
  %v884 = vadd.s32 %v874, %v878
  %v885 = vadd.s32 %v877, %v883
  %vm886 = vc.u32 %v884, %v880
  %v887 = vsel %vm886, 1, 0
  %v888 = vadd.s32 %v884, %v880
  %v889 = vadd.s32 %v885, %v887
  %v890 = vadd.s32 %v889, %v879
  %v891 = vadd.s32 %v890, %v881
  %v892 = vand.u32 %v869, 65535
  %v893 = vshrl.u32 %v869, 16
  %v894 = vand.u32 %v864, 65535
  %v895 = vshrl.u32 %v864, 16
  %v896 = vmul.u32 %v892, %v894
  %v897 = vmul.u32 %v892, %v895
  %v898 = vmul.u32 %v893, %v894
  %v899 = vmul.u32 %v893, %v895
  %v900 = vshll.u32 %v897, 16
  %v901 = vshrl.u32 %v897, 16
  %v902 = vshll.u32 %v898, 16
  %v903 = vshrl.u32 %v898, 16
  %vm904 = vc.u32 %v896, %v900
  %v905 = vsel %vm904, 1, 0
  %v906 = vadd.s32 %v896, %v900
  %v907 = vadd.s32 %v899, %v905
  %vm908 = vc.u32 %v906, %v902
  %v909 = vsel %vm908, 1, 0
  %v910 = vadd.s32 %v906, %v902
  %v911 = vadd.s32 %v907, %v909
  %v912 = vadd.s32 %v911, %v901
  %v913 = vadd.s32 %v912, %v903
  %v914 = vmul.u32 %v869, %v860
  %v915 = vadd.s32 %v891, %v910
  %vm916 = vc.u32 %v891, %v910
  %v917 = vadd.s32 %v913, 1
  %v918 = vsel %vm916, %v917, %v913
  %v919 = vadd.s32 %v914, %v918
  %v920 = vadd.s32 %v919, 536870912
  %v921 = vshrl.u32 %v920, 30
  %v922 = vshll.u32 %v921, 30
  %v923 = vsub.s32 %v919, %v922
  %vm924 = vcmp.lt.s32.totalorder %v923, 0
  %v925 = vsub.s32 0, %v923
  %v926 = vsel %vm924, %v925, %v923
  %v927 = vclz %v926
  %v928 = vsub.s32 %v927, 2
  %vm929 = vcmp.gt.s32.totalorder 0, %v928
  %v930 = vsel %vm929, 0, %v928
  %v931 = vsub.s32 32, %v930
  %v932 = vshll.u32 %v923, %v930
  %v933 = vshrl.u32 %v915, %v931
  %v934 = vor.u32 %v932, %v933
  %v935 = vsub.s32 4294967266, %v930
  %v936 = vadd.s32 %v935, 127
  %v937 = vshll.u32 %v936, 23
  %v938 = vor.u32 4788187, %v937
  %v939 = vand.u32 2147483647, %v938
  %v941 = vcvt.s32.f32 %v934
  %v942 = vmul.f32 %v941, %v939
  %v943 = vxor.u32 %v942, 2147483648
  %v944 = vsel %vm823, %v943, %v942
  %v945 = vsub.s32 4, %v921
  %v946 = vsel %vm823, %v945, %v921
  %v947 = vsel %vm822, %v40, %v944
  %v948 = vsel %vm822, 0, %v946
  %v949 = vmul.f32 %v947, %v947
  %v950 = vmul.f32 %v949, -0.001358992
  %v951 = vadd.f32 %v950, 0.041655596
  %v952 = vmul.f32 %v949, %v951
  %v953 = vadd.f32 %v952, -0.4999988
  %v954 = vmul.f32 %v949, %v953
  %v955 = vadd.f32 1.0, %v954
  %v956 = vmul.f32 %v947, %v947
  %v957 = vmul.f32 %v956, -0.00019511016
  %v958 = vadd.f32 %v957, 0.008332121
  %v959 = vmul.f32 %v956, %v958
  %v960 = vadd.f32 %v959, -0.16666654
  %v961 = vmul.f32 %v956, %v960
  %v962 = vadd.f32 %v961, 1.0
  %v963 = vmul.f32 %v962, %v947
  %vm964 = vweird.f32 %v40
  %v965 = vand.u32 %v948, 3
  %vm966 = vcmp.lt.s32.totalorder %v965, 2
  %vm967 = vcmp.eq.s32.totalorder %v965, 0
  %v968 = vxor.u32 %v963, 2147483648
  %v969 = vsel %vm967, %v955, %v968
  %vm970 = vcmp.eq.s32.totalorder %v965, 2
  %v971 = vxor.u32 %v955, 2147483648
  %v972 = vsel %vm970, %v971, %v963
  %v973 = vsel %vm966, %v969, %v972
  %v974 = vsel %vm964, nan, %v973
  %v975 = vand.u32 2147483647, %v41
  %vm976 = vcmp.le.f32.partialorder %v975, 0.7853982
  %vm977 = vcmp.lt.s32.totalorder %v41, 0
  %v978 = vand.u32 %v41, 2139095040
  %v979 = vshrl.u32 %v978, 23
  %v980 = vsub.s32 %v979, 127
  %v981 = vand.u32 2147483647, %v41
  %v982 = vand.u32 %v981, 8388607
  %v983 = vor.u32 %v982, 8388608
  %v984 = vsub.s32 0, %v983
  %v985 = vadd.s32 %v980, 1
  %vm986 = vcmp.gt.s32.totalorder %v985, 0
  %v987 = vsel %vm986, %v985, 0
  %v988 = vshrl.u32 %v987, 5
  %v989 = vand.u32 %v987, 31
  %v990 = vsub.s32 32, %v989
  %v991 = vshrl.u32 683565275, %v990
  %v992 = vshll.u32 683565275, %v989
  %v993 = vshrl.u32 2475754826, %v990
  %v994 = vor.u32 %v992, %v993
  %v995 = vshll.u32 2475754826, %v989
  %v996 = vshrl.u32 2131351028, %v990
  %v997 = vor.u32 %v995, %v996
  %v998 = vshll.u32 2131351028, %v989
  %v999 = vshrl.u32 2102212464, %v990
  %v1000 = vor.u32 %v998, %v999
  %v1001 = vshll.u32 2102212464, %v989
  %v1002 = vshrl.u32 920167782, %v990
  %v1003 = vor.u32 %v1001, %v1002
  %v1004 = vshll.u32 920167782, %v989
  %v1005 = vshrl.u32 1326507024, %v990
  %v1006 = vor.u32 %v1004, %v1005
  %vm1007 = vcmp.lt.s32.totalorder %v988, 1
  %vm1008 = vcmp.lt.s32.totalorder %v988, 2
  %vm1009 = vcmp.lt.s32.totalorder %v988, 3
  %vm1010 = vcmp.lt.s32.totalorder %v988, 4
  %v1011 = vsel %vm1007, %v991, %v994
  %v1012 = vsel %vm1010, %v1000, 2102212464
  %v1013 = vsel %vm1009, %v997, %v1012
  %v1014 = vsel %vm1008, %v1011, %v1013
  %v1015 = vsel %vm1007, %v994, %v997
  %v1016 = vsel %vm1010, %v1003, 920167782
  %v1017 = vsel %vm1009, %v1000, %v1016
  %v1018 = vsel %vm1008, %v1015, %v1017
  %v1019 = vsel %vm1007, %v997, %v1000
  %v1020 = vsel %vm1010, %v1006, 1326507024
  %v1021 = vsel %vm1009, %v1003, %v1020
  %v1022 = vsel %vm1008, %v1019, %v1021
  %v1023 = vshll.u32 %v983, 8
  %v1024 = vand.u32 %v1023, 65535
  %v1025 = vshrl.u32 %v1023, 16
  %v1026 = vand.u32 %v1022, 65535
  %v1027 = vshrl.u32 %v1022, 16
  %v1028 = vmul.u32 %v1024, %v1026
  %v1029 = vmul.u32 %v1024, %v1027
  %v1030 = vmul.u32 %v1025, %v1026
  %v1031 = vmul.u32 %v1025, %v1027
  %v1032 = vshll.u32 %v1029, 16
  %v1033 = vshrl.u32 %v1029, 16
  %v1034 = vshll.u32 %v1030, 16
  %v1035 = vshrl.u32 %v1030, 16
  %vm1036 = vc.u32 %v1028, %v1032
  %v1037 = vsel %vm1036, 1, 0
  %v1038 = vadd.s32 %v1028, %v1032
  %v1039 = vadd.s32 %v1031, %v1037
  %vm1040 = vc.u32 %v1038, %v1034
  %v1041 = vsel %vm1040, 1, 0
  %v1042 = vadd.s32 %v1038, %v1034
  %v1043 = vadd.s32 %v1039, %v1041
  %v1044 = vadd.s32 %v1043, %v1033
  %v1045 = vadd.s32 %v1044, %v1035
  %v1046 = vand.u32 %v1023, 65535
  %v1047 = vshrl.u32 %v1023, 16
  %v1048 = vand.u32 %v1018, 65535
  %v1049 = vshrl.u32 %v1018, 16
  %v1050 = vmul.u32 %v1046, %v1048
  %v1051 = vmul.u32 %v1046, %v1049
  %v1052 = vmul.u32 %v1047, %v1048
  %v1053 = vmul.u32 %v1047, %v1049
  %v1054 = vshll.u32 %v1051, 16
  %v1055 = vshrl.u32 %v1051, 16
  %v1056 = vshll.u32 %v1052, 16
  %v1057 = vshrl.u32 %v1052, 16
  %vm1058 = vc.u32 %v1050, %v1054
  %v1059 = vsel %vm1058, 1, 0
  %v1060 = vadd.s32 %v1050, %v1054
  %v1061 = vadd.s32 %v1053, %v1059
  %vm1062 = vc.u32 %v1060, %v1056
  %v1063 = vsel %vm1062, 1, 0
  %v1064 = vadd.s32 %v1060, %v1056
  %v1065 = vadd.s32 %v1061, %v1063
  %v1066 = vadd.s32 %v1065, %v1055
  %v1067 = vadd.s32 %v1066, %v1057
  %v1068 = vmul.u32 %v1023, %v1014
  %v1069 = vadd.s32 %v1045, %v1064
  %vm1070 = vc.u32 %v1045, %v1064
  %v1071 = vadd.s32 %v1067, 1
  %v1072 = vsel %vm1070, %v1071, %v1067
  %v1073 = vadd.s32 %v1068, %v1072
  %v1074 = vadd.s32 %v1073, 536870912
  %v1075 = vshrl.u32 %v1074, 30
  %v1076 = vshll.u32 %v1075, 30
  %v1077 = vsub.s32 %v1073, %v1076
  %vm1078 = vcmp.lt.s32.totalorder %v1077, 0
  %v1079 = vsub.s32 0, %v1077
  %v1080 = vsel %vm1078, %v1079, %v1077
  %v1081 = vclz %v1080
  %v1082 = vsub.s32 %v1081, 2
  %vm1083 = vcmp.gt.s32.totalorder 0, %v1082
  %v1084 = vsel %vm1083, 0, %v1082
  %v1085 = vsub.s32 32, %v1084
  %v1086 = vshll.u32 %v1077, %v1084
  %v1087 = vshrl.u32 %v1069, %v1085
  %v1088 = vor.u32 %v1086, %v1087
  %v1089 = vsub.s32 4294967266, %v1084
  %v1090 = vadd.s32 %v1089, 127
  %v1091 = vshll.u32 %v1090, 23
  %v1092 = vor.u32 4788187, %v1091
  %v1093 = vand.u32 2147483647, %v1092
  %v1095 = vcvt.s32.f32 %v1088
  %v1096 = vmul.f32 %v1095, %v1093
  %v1097 = vxor.u32 %v1096, 2147483648
  %v1098 = vsel %vm977, %v1097, %v1096
  %v1099 = vsub.s32 4, %v1075
  %v1100 = vsel %vm977, %v1099, %v1075
  %v1101 = vsel %vm976, %v41, %v1098
  %v1102 = vsel %vm976, 0, %v1100
  %v1103 = vmul.f32 %v1101, %v1101
  %v1104 = vmul.f32 %v1103, -0.001358992
  %v1105 = vadd.f32 %v1104, 0.041655596
  %v1106 = vmul.f32 %v1103, %v1105
  %v1107 = vadd.f32 %v1106, -0.4999988
  %v1108 = vmul.f32 %v1103, %v1107
  %v1109 = vadd.f32 1.0, %v1108
  %v1110 = vmul.f32 %v1101, %v1101
  %v1111 = vmul.f32 %v1110, -0.00019511016
  %v1112 = vadd.f32 %v1111, 0.008332121
  %v1113 = vmul.f32 %v1110, %v1112
  %v1114 = vadd.f32 %v1113, -0.16666654
  %v1115 = vmul.f32 %v1110, %v1114
  %v1116 = vadd.f32 %v1115, 1.0
  %v1117 = vmul.f32 %v1116, %v1101
  %vm1118 = vweird.f32 %v41
  %v1119 = vand.u32 %v1102, 3
  %vm1120 = vcmp.lt.s32.totalorder %v1119, 2
  %vm1121 = vcmp.eq.s32.totalorder %v1119, 0
  %v1122 = vxor.u32 %v1117, 2147483648
  %v1123 = vsel %vm1121, %v1109, %v1122
  %vm1124 = vcmp.eq.s32.totalorder %v1119, 2
  %v1125 = vxor.u32 %v1109, 2147483648
  %v1126 = vsel %vm1124, %v1125, %v1117
  %v1127 = vsel %vm1120, %v1123, %v1126
  %v1128 = vsel %vm1118, nan, %v1127
  %v1129 = vand.u32 2147483647, %v42
  %vm1130 = vcmp.le.f32.partialorder %v1129, 0.7853982
  %vm1131 = vcmp.lt.s32.totalorder %v42, 0
  %v1132 = vand.u32 %v42, 2139095040
  %v1133 = vshrl.u32 %v1132, 23
  %v1134 = vsub.s32 %v1133, 127
  %v1135 = vand.u32 2147483647, %v42
  %v1136 = vand.u32 %v1135, 8388607
  %v1137 = vor.u32 %v1136, 8388608
  %v1138 = vsub.s32 0, %v1137
  %v1139 = vadd.s32 %v1134, 1
  %vm1140 = vcmp.gt.s32.totalorder %v1139, 0
  %v1141 = vsel %vm1140, %v1139, 0
  %v1142 = vshrl.u32 %v1141, 5
  %v1143 = vand.u32 %v1141, 31
  %v1144 = vsub.s32 32, %v1143
  %v1145 = vshrl.u32 683565275, %v1144
  %v1146 = vshll.u32 683565275, %v1143
  %v1147 = vshrl.u32 2475754826, %v1144
  %v1148 = vor.u32 %v1146, %v1147
  %v1149 = vshll.u32 2475754826, %v1143
  %v1150 = vshrl.u32 2131351028, %v1144
  %v1151 = vor.u32 %v1149, %v1150
  %v1152 = vshll.u32 2131351028, %v1143
  %v1153 = vshrl.u32 2102212464, %v1144
  %v1154 = vor.u32 %v1152, %v1153
  %v1155 = vshll.u32 2102212464, %v1143
  %v1156 = vshrl.u32 920167782, %v1144
  %v1157 = vor.u32 %v1155, %v1156
  %v1158 = vshll.u32 920167782, %v1143
  %v1159 = vshrl.u32 1326507024, %v1144
  %v1160 = vor.u32 %v1158, %v1159
  %vm1161 = vcmp.lt.s32.totalorder %v1142, 1
  %vm1162 = vcmp.lt.s32.totalorder %v1142, 2
  %vm1163 = vcmp.lt.s32.totalorder %v1142, 3
  %vm1164 = vcmp.lt.s32.totalorder %v1142, 4
  %v1165 = vsel %vm1161, %v1145, %v1148
  %v1166 = vsel %vm1164, %v1154, 2102212464
  %v1167 = vsel %vm1163, %v1151, %v1166
  %v1168 = vsel %vm1162, %v1165, %v1167
  %v1169 = vsel %vm1161, %v1148, %v1151
  %v1170 = vsel %vm1164, %v1157, 920167782
  %v1171 = vsel %vm1163, %v1154, %v1170
  %v1172 = vsel %vm1162, %v1169, %v1171
  %v1173 = vsel %vm1161, %v1151, %v1154
  %v1174 = vsel %vm1164, %v1160, 1326507024
  %v1175 = vsel %vm1163, %v1157, %v1174
  %v1176 = vsel %vm1162, %v1173, %v1175
  %v1177 = vshll.u32 %v1137, 8
  %v1178 = vand.u32 %v1177, 65535
  %v1179 = vshrl.u32 %v1177, 16
  %v1180 = vand.u32 %v1176, 65535
  %v1181 = vshrl.u32 %v1176, 16
  %v1182 = vmul.u32 %v1178, %v1180
  %v1183 = vmul.u32 %v1178, %v1181
  %v1184 = vmul.u32 %v1179, %v1180
  %v1185 = vmul.u32 %v1179, %v1181
  %v1186 = vshll.u32 %v1183, 16
  %v1187 = vshrl.u32 %v1183, 16
  %v1188 = vshll.u32 %v1184, 16
  %v1189 = vshrl.u32 %v1184, 16
  %vm1190 = vc.u32 %v1182, %v1186
  %v1191 = vsel %vm1190, 1, 0
  %v1192 = vadd.s32 %v1182, %v1186
  %v1193 = vadd.s32 %v1185, %v1191
  %vm1194 = vc.u32 %v1192, %v1188
  %v1195 = vsel %vm1194, 1, 0
  %v1196 = vadd.s32 %v1192, %v1188
  %v1197 = vadd.s32 %v1193, %v1195
  %v1198 = vadd.s32 %v1197, %v1187
  %v1199 = vadd.s32 %v1198, %v1189
  %v1200 = vand.u32 %v1177, 65535
  %v1201 = vshrl.u32 %v1177, 16
  %v1202 = vand.u32 %v1172, 65535
  %v1203 = vshrl.u32 %v1172, 16
  %v1204 = vmul.u32 %v1200, %v1202
  %v1205 = vmul.u32 %v1200, %v1203
  %v1206 = vmul.u32 %v1201, %v1202
  %v1207 = vmul.u32 %v1201, %v1203
  %v1208 = vshll.u32 %v1205, 16
  %v1209 = vshrl.u32 %v1205, 16
  %v1210 = vshll.u32 %v1206, 16
  %v1211 = vshrl.u32 %v1206, 16
  %vm1212 = vc.u32 %v1204, %v1208
  %v1213 = vsel %vm1212, 1, 0
  %v1214 = vadd.s32 %v1204, %v1208
  %v1215 = vadd.s32 %v1207, %v1213
  %vm1216 = vc.u32 %v1214, %v1210
  %v1217 = vsel %vm1216, 1, 0
  %v1218 = vadd.s32 %v1214, %v1210
  %v1219 = vadd.s32 %v1215, %v1217
  %v1220 = vadd.s32 %v1219, %v1209
  %v1221 = vadd.s32 %v1220, %v1211
  %v1222 = vmul.u32 %v1177, %v1168
  %v1223 = vadd.s32 %v1199, %v1218
  %vm1224 = vc.u32 %v1199, %v1218
  %v1225 = vadd.s32 %v1221, 1
  %v1226 = vsel %vm1224, %v1225, %v1221
  %v1227 = vadd.s32 %v1222, %v1226
  %v1228 = vadd.s32 %v1227, 536870912
  %v1229 = vshrl.u32 %v1228, 30
  %v1230 = vshll.u32 %v1229, 30
  %v1231 = vsub.s32 %v1227, %v1230
  %vm1232 = vcmp.lt.s32.totalorder %v1231, 0
  %v1233 = vsub.s32 0, %v1231
  %v1234 = vsel %vm1232, %v1233, %v1231
  %v1235 = vclz %v1234
  %v1236 = vsub.s32 %v1235, 2
  %vm1237 = vcmp.gt.s32.totalorder 0, %v1236
  %v1238 = vsel %vm1237, 0, %v1236
  %v1239 = vsub.s32 32, %v1238
  %v1240 = vshll.u32 %v1231, %v1238
  %v1241 = vshrl.u32 %v1223, %v1239
  %v1242 = vor.u32 %v1240, %v1241
  %v1243 = vsub.s32 4294967266, %v1238
  %v1244 = vadd.s32 %v1243, 127
  %v1245 = vshll.u32 %v1244, 23
  %v1246 = vor.u32 4788187, %v1245
  %v1247 = vand.u32 2147483647, %v1246
  %v1249 = vcvt.s32.f32 %v1242
  %v1250 = vmul.f32 %v1249, %v1247
  %v1251 = vxor.u32 %v1250, 2147483648
  %v1252 = vsel %vm1131, %v1251, %v1250
  %v1253 = vsub.s32 4, %v1229
  %v1254 = vsel %vm1131, %v1253, %v1229
  %v1255 = vsel %vm1130, %v42, %v1252
  %v1256 = vsel %vm1130, 0, %v1254
  %v1257 = vmul.f32 %v1255, %v1255
  %v1258 = vmul.f32 %v1257, -0.001358992
  %v1259 = vadd.f32 %v1258, 0.041655596
  %v1260 = vmul.f32 %v1257, %v1259
  %v1261 = vadd.f32 %v1260, -0.4999988
  %v1262 = vmul.f32 %v1257, %v1261
  %v1263 = vadd.f32 1.0, %v1262
  %v1264 = vmul.f32 %v1255, %v1255
  %v1265 = vmul.f32 %v1264, -0.00019511016
  %v1266 = vadd.f32 %v1265, 0.008332121
  %v1267 = vmul.f32 %v1264, %v1266
  %v1268 = vadd.f32 %v1267, -0.16666654
  %v1269 = vmul.f32 %v1264, %v1268
  %v1270 = vadd.f32 %v1269, 1.0
  %v1271 = vmul.f32 %v1270, %v1255
  %vm1272 = vweird.f32 %v42
  %v1273 = vand.u32 %v1256, 3
  %vm1274 = vcmp.lt.s32.totalorder %v1273, 2
  %vm1275 = vcmp.eq.s32.totalorder %v1273, 0
  %v1276 = vxor.u32 %v1271, 2147483648
  %v1277 = vsel %vm1275, %v1263, %v1276
  %vm1278 = vcmp.eq.s32.totalorder %v1273, 2
  %v1279 = vxor.u32 %v1263, 2147483648
  %v1280 = vsel %vm1278, %v1279, %v1271
  %v1281 = vsel %vm1274, %v1277, %v1280
  %v1282 = vsel %vm1272, nan, %v1281
  %1283 = vst [vmem:[%s2 + $0x20] sm:$0xff] %v820
  %1284 = vst [vmem:[%s2 + $0x28] sm:$0xff] %v974
  %1285 = vst [vmem:[%s2 + $0x30] sm:$0xff] %v1128
  %1286 = vst [vmem:[%s2 + $0x38] sm:$0xff] %v1282
  // Predicated region
  $region10: #{run.1} parent=0 // pred_check
    _
  $region11: #{run.1} parent=0 // pred_check_branch
    %1288 = sbr.rel (0) target = $region13
  $region12: #{run.1} parent=0 // pred_region
    _
  $region13: #{run.1} parent=0 // pred_fallthru
    _
  // Predicated region
  $region14: #{run.1} parent=0 // pred_check
    _
  $region15: #{run.1} parent=0 // pred_check_branch
    %1290 = sbr.rel (0) target = $region17
  $region16: #{run.1} parent=0 // pred_region
    _
  $region17: #{run.1} parent=0 // pred_fallthru
    _

</llo_original>
